<compile_context>
chip_gen: v5e
topology: v5e:2x2
jax: 0.10.0
libtpu: 0.0.40
codegen_flags: <defaults>
</compile_context>

<pallas_src>
import numpy as np

import jax
import jax.numpy as jnp
from jax.experimental import pallas as pl
from jax.experimental.pallas import tpu as pltpu


BT = 8  # images per grid step; must be a multiple of 8 (sweepable: 8/16/32).


# ---------------------------------------------------------------------------
# Fused kernel: conv1+relu+pool1 -> conv2+relu+pool2 -> fc1 -> fc2 -> fc3
# One grid step = BT images.  Activation layout: (row, batch, W*C) so every
# conv tap / pool / fc slab is an aligned leading-dim slice.
# ---------------------------------------------------------------------------
def _cifarnet_kernel(x_ref, wb1_ref, b1_ref, wb2_ref, b2_ref,
                     wf1_ref, bf1_ref, wfc2_ref, bf2_ref, wfc3_ref, bf3_ref,
                     o_ref):
    f32, bf16 = jnp.float32, jnp.bfloat16
    bt = x_ref.shape[1]

    # ---- conv1 (5x5, 3->6) + bias + ReLU ------------------------------------
    # x block: (32, BT, 96) f32, lanes = w*3+ci.  Tap i = one banded matmul on
    # the merged (28*BT, 96) slab; the (kw, Cin) taps live in wb1's zeros.
    x = x_ref[...]
    y1 = jnp.dot(x[0:28].reshape(28 * bt, 96).astype(bf16), wb1_ref[0],
                 preferred_element_type=f32)
    for i in range(1, 5):                                    # unrolled
        y1 = y1 + jnp.dot(x[i:i + 28].reshape(28 * bt, 96).astype(bf16),
                          wb1_ref[i], preferred_element_type=f32)
    y1 = jnp.maximum(y1 + b1_ref[...], 0.0)                  # (28*BT, 168)

    # ---- maxpool 2x2: rows = aligned tile-group max, cols = lane-shift max --
    y1 = y1.reshape(14, 2, bt, 168)
    pr = jnp.maximum(y1[:, 0], y1[:, 1])                     # (14, BT, 168)
    p1 = jnp.maximum(pr[:, :, 0:162], pr[:, :, 6:168])       # (14, BT, 162)

    # ---- conv2 (5x5, 6->16) + bias + ReLU -----------------------------------
    # Pool1's even-column selection is folded into wb2's zero pattern.
    y2 = jnp.dot(p1[0:10].reshape(10 * bt, 162).astype(bf16), wb2_ref[0],
                 preferred_element_type=f32)
    for i in range(1, 5):                                    # unrolled
        y2 = y2 + jnp.dot(p1[i:i + 10].reshape(10 * bt, 162).astype(bf16),
                          wb2_ref[i], preferred_element_type=f32)
    y2 = jnp.maximum(y2 + b2_ref[...], 0.0)                  # (10*BT, 160)

    # ---- maxpool 2x2 --------------------------------------------------------
    y2 = y2.reshape(5, 2, bt, 160)
    q = jnp.maximum(y2[:, 0], y2[:, 1])                      # (5, BT, 160)
    m2 = jnp.maximum(q[:, :, 0:144], q[:, :, 16:160])        # (5, BT, 144)

    # ---- fc1 (400 -> 120, lane-padded to 128) + ReLU ------------------------
    # Pool2's even-column selection and PyTorch's (C,H,W) flatten order are
    # folded into wf1; tap k = pooled spatial row k, batched across BT images.
    a = jnp.dot(m2[0].astype(bf16), wf1_ref[0], preferred_element_type=f32)
    for k in range(1, 5):                                    # unrolled
        a = a + jnp.dot(m2[k].astype(bf16), wf1_ref[k],
                        preferred_element_type=f32)
    a = jnp.maximum(a + bf1_ref[...], 0.0)                   # (BT, 128), 120.. = 0

    # ---- fc2 (120 -> 84) + ReLU, fc3 (84 -> 10); all lane-padded to 128 -----
    a = jnp.maximum(jnp.dot(a.astype(bf16), wfc2_ref[...],
                            preferred_element_type=f32) + bf2_ref[...], 0.0)
    a = jnp.dot(a.astype(bf16), wfc3_ref[...],
                preferred_element_type=f32) + bf3_ref[...]

    o_ref[...] = a                                           # (BT, 128); 10.. = 0


# ---------------------------------------------------------------------------
# One-time parameter preprocessing (hoisted out of the hot path).
# Matmul weights are stored as bf16 (MXU operands); biases stay f32.
# ---------------------------------------------------------------------------
def prepare_params(params):
    w1 = np.asarray(params["conv1_w"], np.float32)       # (5,5,3,6)  HWIO
    b1 = np.asarray(params["conv1_b"], np.float32)       # (6,)
    w2 = np.asarray(params["conv2_w"], np.float32)       # (5,5,6,16)
    b2 = np.asarray(params["conv2_b"], np.float32)       # (16,)
    f1 = np.asarray(params["fc1_w"], np.float32)         # (400,120), (c,h,w) rows
    g1 = np.asarray(params["fc1_b"], np.float32)
    f2 = np.asarray(params["fc2_w"], np.float32)         # (120,84)
    g2 = np.asarray(params["fc2_b"], np.float32)
    f3 = np.asarray(params["fc3_w"], np.float32)         # (84,10)
    g3 = np.asarray(params["fc3_b"], np.float32)

    # conv1 as 5 banded matmuls: input lanes w*3+ci, output lanes wo*6+co.
    wb1 = np.zeros((5, 96, 28 * 6), np.float32)
    for i in range(5):
        for j in range(5):
            for wo in range(28):
                wb1[i, (wo + j) * 3:(wo + j) * 3 + 3, wo * 6:wo * 6 + 6] = w1[i, j]
    b1t = np.tile(b1, 28).reshape(1, 168)

    # conv2 banded matmuls; input lane 12*w+ci = pooled column w (even conv1
    # column), i.e. pool1's even-column selection folded into the zero pattern.
    wb2 = np.zeros((5, 162, 10 * 16), np.float32)
    for i in range(5):
        for j in range(5):
            for wo in range(10):
                wb2[i, 12 * (wo + j):12 * (wo + j) + 6,
                       wo * 16:wo * 16 + 16] = w2[i, j]
    b2t = np.tile(b2, 10).reshape(1, 160)

    # fc1 with pool2's even-column selection + PyTorch (C,H,W) flatten folded
    # in; output lane-padded to 128.  Tap k = pooled spatial row k.
    wf1 = np.zeros((5, 144, 128), np.float32)
    for k in range(5):
        for m in range(5):
            for c in range(16):
                wf1[k, 32 * m + c, :120] = f1[c * 25 + k * 5 + m]
    bf1 = np.zeros((1, 128), np.float32)
    bf1[0, :120] = g1

    wfc2 = np.zeros((128, 128), np.float32)
    wfc2[:120, :84] = f2
    bf2 = np.zeros((1, 128), np.float32)
    bf2[0, :84] = g2

    wfc3 = np.zeros((128, 128), np.float32)
    wfc3[:84, :10] = f3
    bf3 = np.zeros((1, 128), np.float32)
    bf3[0, :10] = g3

    bf16 = jnp.bfloat16
    return {
        "wb1": jnp.asarray(wb1, bf16), "b1": jnp.asarray(b1t),
        "wb2": jnp.asarray(wb2, bf16), "b2": jnp.asarray(b2t),
        "wf1": jnp.asarray(wf1, bf16), "bf1": jnp.asarray(bf1),
        "wfc2": jnp.asarray(wfc2, bf16), "bf2": jnp.asarray(bf2),
        "wfc3": jnp.asarray(wfc3, bf16), "bf3": jnp.asarray(bf3),
    }


# ---------------------------------------------------------------------------
# Forward wrapper: one pallas_call for the whole network, BT images per step.
# ---------------------------------------------------------------------------
@jax.jit
def cifarnet_forward(x_nchw, prep):
    assert x_nchw.shape[1:] == (3, 32, 32), "expects CIFAR-sized NCHW input"
    assert BT % 8 == 0
    B = x_nchw.shape[0]
    G = pl.cdiv(B, BT)
    B_pad = G * BT

    x = x_nchw.astype(jnp.float32)
    if B_pad != B:                       # pad batch with zero images (dropped)
        x = jnp.pad(x, ((0, B_pad - B), (0, 0), (0, 0), (0, 0)))
    # NCHW -> (H, B, W*C): rows = H, batch on the sublane axis, lanes = W*C.
    x = jnp.transpose(x, (2, 0, 3, 1)).reshape(32, B_pad, 96)

    out = pl.pallas_call(
        _cifarnet_kernel,
        out_shape=jax.ShapeDtypeStruct((B_pad, 128), jnp.float32),
        grid=(G,),
        in_specs=[
            pl.BlockSpec((32, BT, 96), lambda g: (0, g, 0)),     # x (BT images)
            pl.BlockSpec((5, 96, 168), lambda g: (0, 0, 0)),     # wb1 (banded bf16)
            pl.BlockSpec((1, 168), lambda g: (0, 0)),            # conv1 bias (tiled)
            pl.BlockSpec((5, 162, 160), lambda g: (0, 0, 0)),    # wb2 (banded bf16)
            pl.BlockSpec((1, 160), lambda g: (0, 0)),            # conv2 bias (tiled)
            pl.BlockSpec((5, 144, 128), lambda g: (0, 0, 0)),    # fc1 (folded, padded)
            pl.BlockSpec((1, 128), lambda g: (0, 0)),            # fc1 bias
            pl.BlockSpec((128, 128), lambda g: (0, 0)),          # fc2 (padded)
            pl.BlockSpec((1, 128), lambda g: (0, 0)),            # fc2 bias
            pl.BlockSpec((128, 128), lambda g: (0, 0)),          # fc3 (padded)
            pl.BlockSpec((1, 128), lambda g: (0, 0)),            # fc3 bias
        ],
        out_specs=pl.BlockSpec((BT, 128), lambda g: (g, 0)),
        compiler_params=pltpu.CompilerParams(
            dimension_semantics=("parallel",)),
        cost_estimate=pl.CostEstimate(
            flops=2_600_000 * B_pad,
            transcendentals=0,
            bytes_accessed=13_000 * B_pad + 800_000),
    )(x, prep["wb1"], prep["b1"], prep["wb2"], prep["b2"],
      prep["wf1"], prep["bf1"], prep["wfc2"], prep["bf2"],
      prep["wfc3"], prep["bf3"])

    return out[:B, :10]


# ---------------------------------------------------------------------------
# Pure-JAX reference (for numerical self-checks) and parameter init.
# ---------------------------------------------------------------------------
def cifarnet_reference(x_nchw, params, matmul_dtype=jnp.float32):
    md = matmul_dtype
    x = jnp.transpose(x_nchw, (0, 2, 3, 1)).astype(jnp.float32)
    y = jax.lax.conv_general_dilated(
        x.astype(md), params["conv1_w"].astype(md), (1, 1), "VALID",
        dimension_numbers=("NHWC", "HWIO", "NHWC"),
        preferred_element_type=jnp.float32)
    y = jnp.maximum(y + params["conv1_b"], 0.0)
    y = jax.lax.reduce_window(y, -jnp.inf, jax.lax.max,
                              (1, 2, 2, 1), (1, 2, 2, 1), "VALID")
    y = jax.lax.conv_general_dilated(
        y.astype(md), params["conv2_w"].astype(md), (1, 1), "VALID",
        dimension_numbers=("NHWC", "HWIO", "NHWC"),
        preferred_element_type=jnp.float32)
    y = jnp.maximum(y + params["conv2_b"], 0.0)
    y = jax.lax.reduce_window(y, -jnp.inf, jax.lax.max,
                              (1, 2, 2, 1), (1, 2, 2, 1), "VALID")
    B = y.shape[0]
    y = jnp.transpose(y, (0, 3, 1, 2)).reshape(B, -1)      # (C,H,W) flatten order
    y = jnp.maximum(jnp.dot(y.astype(md), params["fc1_w"].astype(md),
                            preferred_element_type=jnp.float32)
                    + params["fc1_b"], 0.0)
    y = jnp.maximum(jnp.dot(y.astype(md), params["fc2_w"].astype(md),
                            preferred_element_type=jnp.float32)
                    + params["fc2_b"], 0.0)
    return jnp.dot(y.astype(md), params["fc3_w"].astype(md),
                   preferred_element_type=jnp.float32) + params["fc3_b"]


def init_params(key):
    ks = jax.random.split(key, 10)

    def w(k, shape, fan_in):
        return jax.random.normal(k, shape, jnp.float32) / jnp.sqrt(float(fan_in))

    return {
        "conv1_w": w(ks[0], (5, 5, 3, 6), 5 * 5 * 3),
        "conv1_b": 0.01 * jax.random.normal(ks[1], (6,), jnp.float32),
        "conv2_w": w(ks[2], (5, 5, 6, 16), 5 * 5 * 6),
        "conv2_b": 0.01 * jax.random.normal(ks[3], (16,), jnp.float32),
        "fc1_w": w(ks[4], (16 * 5 * 5, 120), 16 * 5 * 5),
        "fc1_b": 0.01 * jax.random.normal(ks[5], (120,), jnp.float32),
        "fc2_w": w(ks[6], (120, 84), 120),
        "fc2_b": 0.01 * jax.random.normal(ks[7], (84,), jnp.float32),
        "fc3_w": w(ks[8], (84, 10), 84),
        "fc3_b": 0.01 * jax.random.normal(ks[9], (10,), jnp.float32),
    }


if __name__ == "__main__":
    key = jax.random.PRNGKey(0)
    kx, kp = jax.random.split(key)
    # CIFAR-sized input (the forward's 16*5*5 flatten requires 3x32x32).
    # B=12 exercises both the batched grid (2 steps of BT=8) and the B % BT
    # padding path.
    B = 12
    x = jax.random.normal(kx, (B, 3, 32, 32), jnp.float32)
    params = init_params(kp)
    prep = prepare_params(params)          # one-time banded/padded bf16 weights

    out = jax.block_until_ready(cifarnet_forward(x, prep))
    assert out.shape == (B, 10) and out.dtype == jnp.float32

    # Tight check vs. a reference that also uses bf16 matmul operands, plus a
    # loose sanity check vs. the pure-f32 reference (bf16 quantization only).
    ref_bf16 = jax.block_until_ready(
        cifarnet_reference(x, params, matmul_dtype=jnp.bfloat16))
    ref_f32 = jax.block_until_ready(cifarnet_reference(x, params))
    err_bf16 = float(jnp.max(jnp.abs(out - ref_bf16)))
    err_f32 = float(jnp.max(jnp.abs(out - ref_f32)))
    assert err_bf16 < 1e-2, f"kernel vs bf16 reference: max abs err = {err_bf16}"
    assert err_f32 < 1.5e-1, f"kernel vs f32 reference: max abs err = {err_f32}"

    print("KERNEL_OK")
</pallas_src>

<mosaic_0001>
module attributes {stable_mosaic.version = 11 : i64} {
  func.func @_cifarnet_kernel(%arg0: i32, %arg1: memref<32x8x96xf32, #tpu.memory_space<vmem>>, %arg2: memref<5x96x168xbf16, #tpu.memory_space<vmem>>, %arg3: memref<1x168xf32, #tpu.memory_space<vmem>>, %arg4: memref<5x162x160xbf16, #tpu.memory_space<vmem>>, %arg5: memref<1x160xf32, #tpu.memory_space<vmem>>, %arg6: memref<5x144x128xbf16, #tpu.memory_space<vmem>>, %arg7: memref<1x128xf32, #tpu.memory_space<vmem>>, %arg8: memref<128x128xbf16, #tpu.memory_space<vmem>>, %arg9: memref<1x128xf32, #tpu.memory_space<vmem>>, %arg10: memref<128x128xbf16, #tpu.memory_space<vmem>>, %arg11: memref<1x128xf32, #tpu.memory_space<vmem>>, %arg12: memref<8x128xf32, #tpu.memory_space<vmem>>) attributes {dimension_semantics = [#tpu.dimension_semantics<parallel>], iteration_bounds = array<i64: 2>, scalar_prefetch = 0 : i64, scratch_operands = 0 : i64, tpu.core_type = #tpu.core_type<tc>, window_params = [{transform_indices = @transform_0, window_bounds = array<i64: 32, 8, 96>}, {pipeline_mode = #tpu.pipeline_mode<synchronous>, transform_indices = @transform_1, window_bounds = array<i64: 5, 96, 168>}, {pipeline_mode = #tpu.pipeline_mode<synchronous>, transform_indices = @transform_2, window_bounds = array<i64: 1, 168>}, {pipeline_mode = #tpu.pipeline_mode<synchronous>, transform_indices = @transform_3, window_bounds = array<i64: 5, 162, 160>}, {pipeline_mode = #tpu.pipeline_mode<synchronous>, transform_indices = @transform_4, window_bounds = array<i64: 1, 160>}, {pipeline_mode = #tpu.pipeline_mode<synchronous>, transform_indices = @transform_5, window_bounds = array<i64: 5, 144, 128>}, {pipeline_mode = #tpu.pipeline_mode<synchronous>, transform_indices = @transform_6, window_bounds = array<i64: 1, 128>}, {pipeline_mode = #tpu.pipeline_mode<synchronous>, transform_indices = @transform_7, window_bounds = array<i64: 128, 128>}, {pipeline_mode = #tpu.pipeline_mode<synchronous>, transform_indices = @transform_8, window_bounds = array<i64: 1, 128>}, {pipeline_mode = #tpu.pipeline_mode<synchronous>, transform_indices = @transform_9, window_bounds = array<i64: 128, 128>}, {pipeline_mode = #tpu.pipeline_mode<synchronous>, transform_indices = @transform_10, window_bounds = array<i64: 1, 128>}, {transform_indices = @transform_11, window_bounds = array<i64: 8, 128>}]} {
    %c0 = arith.constant 0 : index
    %c0_0 = arith.constant 0 : index
    %c0_1 = arith.constant 0 : index
    %0 = vector.load %arg1[%c0, %c0_0, %c0_1] : memref<32x8x96xf32, #tpu.memory_space<vmem>>, vector<32x8x96xf32>
    %1 = vector.extract_strided_slice %0 {offsets = [0, 0, 0], sizes = [28, 8, 96], strides = [1, 1, 1]} : vector<32x8x96xf32> to vector<28x8x96xf32>
    %2 = vector.shape_cast %1 : vector<28x8x96xf32> to vector<224x96xf32>
    %3 = arith.truncf %2 : vector<224x96xf32> to vector<224x96xbf16>
    %c0_2 = arith.constant 0 : index
    %c0_3 = arith.constant 0 : index
    %c0_4 = arith.constant 0 : index
    %4 = vector.load %arg2[%c0_2, %c0_3, %c0_4] : memref<5x96x168xbf16, #tpu.memory_space<vmem>>, vector<1x96x168xbf16>
    %5 = vector.shape_cast %4 : vector<1x96x168xbf16> to vector<96x168xbf16>
    %cst = arith.constant dense<0.000000e+00> : vector<224x168xf32>
    %6 = tpu.matmul %3, %5, %cst {dimension_numbers = #tpu.dot_dimension_numbers<[1], [0], [0], [1], [0, 0, 1, 1], [], []>} : vector<224x96xbf16>, vector<96x168xbf16>, vector<224x168xf32> -> vector<224x168xf32>
    %7 = vector.extract_strided_slice %0 {offsets = [1, 0, 0], sizes = [28, 8, 96], strides = [1, 1, 1]} : vector<32x8x96xf32> to vector<28x8x96xf32>
    %8 = vector.shape_cast %7 : vector<28x8x96xf32> to vector<224x96xf32>
    %9 = arith.truncf %8 : vector<224x96xf32> to vector<224x96xbf16>
    %c1 = arith.constant 1 : index
    %c0_5 = arith.constant 0 : index
    %c0_6 = arith.constant 0 : index
    %10 = vector.load %arg2[%c1, %c0_5, %c0_6] : memref<5x96x168xbf16, #tpu.memory_space<vmem>>, vector<1x96x168xbf16>
    %11 = vector.shape_cast %10 : vector<1x96x168xbf16> to vector<96x168xbf16>
    %cst_7 = arith.constant dense<0.000000e+00> : vector<224x168xf32>
    %12 = tpu.matmul %9, %11, %cst_7 {dimension_numbers = #tpu.dot_dimension_numbers<[1], [0], [0], [1], [0, 0, 1, 1], [], []>} : vector<224x96xbf16>, vector<96x168xbf16>, vector<224x168xf32> -> vector<224x168xf32>
    %13 = arith.addf %6, %12 : vector<224x168xf32>
    %14 = vector.extract_strided_slice %0 {offsets = [2, 0, 0], sizes = [28, 8, 96], strides = [1, 1, 1]} : vector<32x8x96xf32> to vector<28x8x96xf32>
    %15 = vector.shape_cast %14 : vector<28x8x96xf32> to vector<224x96xf32>
    %16 = arith.truncf %15 : vector<224x96xf32> to vector<224x96xbf16>
    %c2 = arith.constant 2 : index
    %c0_8 = arith.constant 0 : index
    %c0_9 = arith.constant 0 : index
    %17 = vector.load %arg2[%c2, %c0_8, %c0_9] : memref<5x96x168xbf16, #tpu.memory_space<vmem>>, vector<1x96x168xbf16>
    %18 = vector.shape_cast %17 : vector<1x96x168xbf16> to vector<96x168xbf16>
    %cst_10 = arith.constant dense<0.000000e+00> : vector<224x168xf32>
    %19 = tpu.matmul %16, %18, %cst_10 {dimension_numbers = #tpu.dot_dimension_numbers<[1], [0], [0], [1], [0, 0, 1, 1], [], []>} : vector<224x96xbf16>, vector<96x168xbf16>, vector<224x168xf32> -> vector<224x168xf32>
    %20 = arith.addf %13, %19 : vector<224x168xf32>
    %21 = vector.extract_strided_slice %0 {offsets = [3, 0, 0], sizes = [28, 8, 96], strides = [1, 1, 1]} : vector<32x8x96xf32> to vector<28x8x96xf32>
    %22 = vector.shape_cast %21 : vector<28x8x96xf32> to vector<224x96xf32>
    %23 = arith.truncf %22 : vector<224x96xf32> to vector<224x96xbf16>
    %c3 = arith.constant 3 : index
    %c0_11 = arith.constant 0 : index
    %c0_12 = arith.constant 0 : index
    %24 = vector.load %arg2[%c3, %c0_11, %c0_12] : memref<5x96x168xbf16, #tpu.memory_space<vmem>>, vector<1x96x168xbf16>
    %25 = vector.shape_cast %24 : vector<1x96x168xbf16> to vector<96x168xbf16>
    %cst_13 = arith.constant dense<0.000000e+00> : vector<224x168xf32>
    %26 = tpu.matmul %23, %25, %cst_13 {dimension_numbers = #tpu.dot_dimension_numbers<[1], [0], [0], [1], [0, 0, 1, 1], [], []>} : vector<224x96xbf16>, vector<96x168xbf16>, vector<224x168xf32> -> vector<224x168xf32>
    %27 = arith.addf %20, %26 : vector<224x168xf32>
    %28 = vector.extract_strided_slice %0 {offsets = [4, 0, 0], sizes = [28, 8, 96], strides = [1, 1, 1]} : vector<32x8x96xf32> to vector<28x8x96xf32>
    %29 = vector.shape_cast %28 : vector<28x8x96xf32> to vector<224x96xf32>
    %30 = arith.truncf %29 : vector<224x96xf32> to vector<224x96xbf16>
    %c4 = arith.constant 4 : index
    %c0_14 = arith.constant 0 : index
    %c0_15 = arith.constant 0 : index
    %31 = vector.load %arg2[%c4, %c0_14, %c0_15] : memref<5x96x168xbf16, #tpu.memory_space<vmem>>, vector<1x96x168xbf16>
    %32 = vector.shape_cast %31 : vector<1x96x168xbf16> to vector<96x168xbf16>
    %cst_16 = arith.constant dense<0.000000e+00> : vector<224x168xf32>
    %33 = tpu.matmul %30, %32, %cst_16 {dimension_numbers = #tpu.dot_dimension_numbers<[1], [0], [0], [1], [0, 0, 1, 1], [], []>} : vector<224x96xbf16>, vector<96x168xbf16>, vector<224x168xf32> -> vector<224x168xf32>
    %34 = arith.addf %27, %33 : vector<224x168xf32>
    %c0_17 = arith.constant 0 : index
    %c0_18 = arith.constant 0 : index
    %35 = vector.load %arg3[%c0_17, %c0_18] : memref<1x168xf32, #tpu.memory_space<vmem>>, vector<1x168xf32>
    %36 = vector.broadcast %35 : vector<1x168xf32> to vector<224x168xf32>
    %37 = arith.addf %34, %36 : vector<224x168xf32>
    %cst_19 = arith.constant 0.000000e+00 : f32
    %38 = vector.broadcast %cst_19 : f32 to vector<224x168xf32>
    %39 = arith.maximumf %37, %38 : vector<224x168xf32>
    %40 = vector.shape_cast %39 : vector<224x168xf32> to vector<14x2x8x168xf32>
    %41 = vector.extract_strided_slice %40 {offsets = [0, 0, 0, 0], sizes = [14, 1, 8, 168], strides = [1, 1, 1, 1]} : vector<14x2x8x168xf32> to vector<14x1x8x168xf32>
    %42 = vector.shape_cast %41 : vector<14x1x8x168xf32> to vector<14x8x168xf32>
    %43 = vector.extract_strided_slice %40 {offsets = [0, 1, 0, 0], sizes = [14, 1, 8, 168], strides = [1, 1, 1, 1]} : vector<14x2x8x168xf32> to vector<14x1x8x168xf32>
    %44 = vector.shape_cast %43 : vector<14x1x8x168xf32> to vector<14x8x168xf32>
    %45 = arith.maximumf %42, %44 : vector<14x8x168xf32>
    %46 = vector.extract_strided_slice %45 {offsets = [0, 0, 0], sizes = [14, 8, 162], strides = [1, 1, 1]} : vector<14x8x168xf32> to vector<14x8x162xf32>
    %47 = vector.extract_strided_slice %45 {offsets = [0, 0, 6], sizes = [14, 8, 162], strides = [1, 1, 1]} : vector<14x8x168xf32> to vector<14x8x162xf32>
    %48 = arith.maximumf %46, %47 : vector<14x8x162xf32>
    %49 = vector.extract_strided_slice %48 {offsets = [0, 0, 0], sizes = [10, 8, 162], strides = [1, 1, 1]} : vector<14x8x162xf32> to vector<10x8x162xf32>
    %50 = vector.shape_cast %49 : vector<10x8x162xf32> to vector<80x162xf32>
    %51 = arith.truncf %50 : vector<80x162xf32> to vector<80x162xbf16>
    %c0_20 = arith.constant 0 : index
    %c0_21 = arith.constant 0 : index
    %c0_22 = arith.constant 0 : index
    %52 = vector.load %arg4[%c0_20, %c0_21, %c0_22] : memref<5x162x160xbf16, #tpu.memory_space<vmem>>, vector<1x162x160xbf16>
    %53 = vector.shape_cast %52 : vector<1x162x160xbf16> to vector<162x160xbf16>
    %cst_23 = arith.constant dense<0.000000e+00> : vector<80x160xf32>
    %54 = tpu.matmul %51, %53, %cst_23 {dimension_numbers = #tpu.dot_dimension_numbers<[1], [0], [0], [1], [0, 0, 1, 1], [], []>} : vector<80x162xbf16>, vector<162x160xbf16>, vector<80x160xf32> -> vector<80x160xf32>
    %55 = vector.extract_strided_slice %48 {offsets = [1, 0, 0], sizes = [10, 8, 162], strides = [1, 1, 1]} : vector<14x8x162xf32> to vector<10x8x162xf32>
    %56 = vector.shape_cast %55 : vector<10x8x162xf32> to vector<80x162xf32>
    %57 = arith.truncf %56 : vector<80x162xf32> to vector<80x162xbf16>
    %c1_24 = arith.constant 1 : index
    %c0_25 = arith.constant 0 : index
    %c0_26 = arith.constant 0 : index
    %58 = vector.load %arg4[%c1_24, %c0_25, %c0_26] : memref<5x162x160xbf16, #tpu.memory_space<vmem>>, vector<1x162x160xbf16>
    %59 = vector.shape_cast %58 : vector<1x162x160xbf16> to vector<162x160xbf16>
    %cst_27 = arith.constant dense<0.000000e+00> : vector<80x160xf32>
    %60 = tpu.matmul %57, %59, %cst_27 {dimension_numbers = #tpu.dot_dimension_numbers<[1], [0], [0], [1], [0, 0, 1, 1], [], []>} : vector<80x162xbf16>, vector<162x160xbf16>, vector<80x160xf32> -> vector<80x160xf32>
    %61 = arith.addf %54, %60 : vector<80x160xf32>
    %62 = vector.extract_strided_slice %48 {offsets = [2, 0, 0], sizes = [10, 8, 162], strides = [1, 1, 1]} : vector<14x8x162xf32> to vector<10x8x162xf32>
    %63 = vector.shape_cast %62 : vector<10x8x162xf32> to vector<80x162xf32>
    %64 = arith.truncf %63 : vector<80x162xf32> to vector<80x162xbf16>
    %c2_28 = arith.constant 2 : index
    %c0_29 = arith.constant 0 : index
    %c0_30 = arith.constant 0 : index
    %65 = vector.load %arg4[%c2_28, %c0_29, %c0_30] : memref<5x162x160xbf16, #tpu.memory_space<vmem>>, vector<1x162x160xbf16>
    %66 = vector.shape_cast %65 : vector<1x162x160xbf16> to vector<162x160xbf16>
    %cst_31 = arith.constant dense<0.000000e+00> : vector<80x160xf32>
    %67 = tpu.matmul %64, %66, %cst_31 {dimension_numbers = #tpu.dot_dimension_numbers<[1], [0], [0], [1], [0, 0, 1, 1], [], []>} : vector<80x162xbf16>, vector<162x160xbf16>, vector<80x160xf32> -> vector<80x160xf32>
    %68 = arith.addf %61, %67 : vector<80x160xf32>
    %69 = vector.extract_strided_slice %48 {offsets = [3, 0, 0], sizes = [10, 8, 162], strides = [1, 1, 1]} : vector<14x8x162xf32> to vector<10x8x162xf32>
    %70 = vector.shape_cast %69 : vector<10x8x162xf32> to vector<80x162xf32>
    %71 = arith.truncf %70 : vector<80x162xf32> to vector<80x162xbf16>
    %c3_32 = arith.constant 3 : index
    %c0_33 = arith.constant 0 : index
    %c0_34 = arith.constant 0 : index
    %72 = vector.load %arg4[%c3_32, %c0_33, %c0_34] : memref<5x162x160xbf16, #tpu.memory_space<vmem>>, vector<1x162x160xbf16>
    %73 = vector.shape_cast %72 : vector<1x162x160xbf16> to vector<162x160xbf16>
    %cst_35 = arith.constant dense<0.000000e+00> : vector<80x160xf32>
    %74 = tpu.matmul %71, %73, %cst_35 {dimension_numbers = #tpu.dot_dimension_numbers<[1], [0], [0], [1], [0, 0, 1, 1], [], []>} : vector<80x162xbf16>, vector<162x160xbf16>, vector<80x160xf32> -> vector<80x160xf32>
    %75 = arith.addf %68, %74 : vector<80x160xf32>
    %76 = vector.extract_strided_slice %48 {offsets = [4, 0, 0], sizes = [10, 8, 162], strides = [1, 1, 1]} : vector<14x8x162xf32> to vector<10x8x162xf32>
    %77 = vector.shape_cast %76 : vector<10x8x162xf32> to vector<80x162xf32>
    %78 = arith.truncf %77 : vector<80x162xf32> to vector<80x162xbf16>
    %c4_36 = arith.constant 4 : index
    %c0_37 = arith.constant 0 : index
    %c0_38 = arith.constant 0 : index
    %79 = vector.load %arg4[%c4_36, %c0_37, %c0_38] : memref<5x162x160xbf16, #tpu.memory_space<vmem>>, vector<1x162x160xbf16>
    %80 = vector.shape_cast %79 : vector<1x162x160xbf16> to vector<162x160xbf16>
    %cst_39 = arith.constant dense<0.000000e+00> : vector<80x160xf32>
    %81 = tpu.matmul %78, %80, %cst_39 {dimension_numbers = #tpu.dot_dimension_numbers<[1], [0], [0], [1], [0, 0, 1, 1], [], []>} : vector<80x162xbf16>, vector<162x160xbf16>, vector<80x160xf32> -> vector<80x160xf32>
    %82 = arith.addf %75, %81 : vector<80x160xf32>
    %c0_40 = arith.constant 0 : index
    %c0_41 = arith.constant 0 : index
    %83 = vector.load %arg5[%c0_40, %c0_41] : memref<1x160xf32, #tpu.memory_space<vmem>>, vector<1x160xf32>
    %84 = vector.broadcast %83 : vector<1x160xf32> to vector<80x160xf32>
    %85 = arith.addf %82, %84 : vector<80x160xf32>
    %cst_42 = arith.constant 0.000000e+00 : f32
    %86 = vector.broadcast %cst_42 : f32 to vector<80x160xf32>
    %87 = arith.maximumf %85, %86 : vector<80x160xf32>
    %88 = vector.shape_cast %87 : vector<80x160xf32> to vector<5x2x8x160xf32>
    %89 = vector.extract_strided_slice %88 {offsets = [0, 0, 0, 0], sizes = [5, 1, 8, 160], strides = [1, 1, 1, 1]} : vector<5x2x8x160xf32> to vector<5x1x8x160xf32>
    %90 = vector.shape_cast %89 : vector<5x1x8x160xf32> to vector<5x8x160xf32>
    %91 = vector.extract_strided_slice %88 {offsets = [0, 1, 0, 0], sizes = [5, 1, 8, 160], strides = [1, 1, 1, 1]} : vector<5x2x8x160xf32> to vector<5x1x8x160xf32>
    %92 = vector.shape_cast %91 : vector<5x1x8x160xf32> to vector<5x8x160xf32>
    %93 = arith.maximumf %90, %92 : vector<5x8x160xf32>
    %94 = vector.extract_strided_slice %93 {offsets = [0, 0, 0], sizes = [5, 8, 144], strides = [1, 1, 1]} : vector<5x8x160xf32> to vector<5x8x144xf32>
    %95 = vector.extract_strided_slice %93 {offsets = [0, 0, 16], sizes = [5, 8, 144], strides = [1, 1, 1]} : vector<5x8x160xf32> to vector<5x8x144xf32>
    %96 = arith.maximumf %94, %95 : vector<5x8x144xf32>
    %97 = vector.extract_strided_slice %96 {offsets = [0, 0, 0], sizes = [1, 8, 144], strides = [1, 1, 1]} : vector<5x8x144xf32> to vector<1x8x144xf32>
    %98 = vector.shape_cast %97 : vector<1x8x144xf32> to vector<8x144xf32>
    %99 = arith.truncf %98 : vector<8x144xf32> to vector<8x144xbf16>
    %c0_43 = arith.constant 0 : index
    %c0_44 = arith.constant 0 : index
    %c0_45 = arith.constant 0 : index
    %100 = vector.load %arg6[%c0_43, %c0_44, %c0_45] : memref<5x144x128xbf16, #tpu.memory_space<vmem>>, vector<1x144x128xbf16>
    %101 = vector.shape_cast %100 : vector<1x144x128xbf16> to vector<144x128xbf16>
    %cst_46 = arith.constant dense<0.000000e+00> : vector<8x128xf32>
    %102 = tpu.matmul %99, %101, %cst_46 {dimension_numbers = #tpu.dot_dimension_numbers<[1], [0], [0], [1], [0, 0, 1, 1], [], []>} : vector<8x144xbf16>, vector<144x128xbf16>, vector<8x128xf32> -> vector<8x128xf32>
    %103 = vector.extract_strided_slice %96 {offsets = [1, 0, 0], sizes = [1, 8, 144], strides = [1, 1, 1]} : vector<5x8x144xf32> to vector<1x8x144xf32>
    %104 = vector.shape_cast %103 : vector<1x8x144xf32> to vector<8x144xf32>
    %105 = arith.truncf %104 : vector<8x144xf32> to vector<8x144xbf16>
    %c1_47 = arith.constant 1 : index
    %c0_48 = arith.constant 0 : index
    %c0_49 = arith.constant 0 : index
    %106 = vector.load %arg6[%c1_47, %c0_48, %c0_49] : memref<5x144x128xbf16, #tpu.memory_space<vmem>>, vector<1x144x128xbf16>
    %107 = vector.shape_cast %106 : vector<1x144x128xbf16> to vector<144x128xbf16>
    %cst_50 = arith.constant dense<0.000000e+00> : vector<8x128xf32>
    %108 = tpu.matmul %105, %107, %cst_50 {dimension_numbers = #tpu.dot_dimension_numbers<[1], [0], [0], [1], [0, 0, 1, 1], [], []>} : vector<8x144xbf16>, vector<144x128xbf16>, vector<8x128xf32> -> vector<8x128xf32>
    %109 = arith.addf %102, %108 : vector<8x128xf32>
    %110 = vector.extract_strided_slice %96 {offsets = [2, 0, 0], sizes = [1, 8, 144], strides = [1, 1, 1]} : vector<5x8x144xf32> to vector<1x8x144xf32>
    %111 = vector.shape_cast %110 : vector<1x8x144xf32> to vector<8x144xf32>
    %112 = arith.truncf %111 : vector<8x144xf32> to vector<8x144xbf16>
    %c2_51 = arith.constant 2 : index
    %c0_52 = arith.constant 0 : index
    %c0_53 = arith.constant 0 : index
    %113 = vector.load %arg6[%c2_51, %c0_52, %c0_53] : memref<5x144x128xbf16, #tpu.memory_space<vmem>>, vector<1x144x128xbf16>
    %114 = vector.shape_cast %113 : vector<1x144x128xbf16> to vector<144x128xbf16>
    %cst_54 = arith.constant dense<0.000000e+00> : vector<8x128xf32>
    %115 = tpu.matmul %112, %114, %cst_54 {dimension_numbers = #tpu.dot_dimension_numbers<[1], [0], [0], [1], [0, 0, 1, 1], [], []>} : vector<8x144xbf16>, vector<144x128xbf16>, vector<8x128xf32> -> vector<8x128xf32>
    %116 = arith.addf %109, %115 : vector<8x128xf32>
    %117 = vector.extract_strided_slice %96 {offsets = [3, 0, 0], sizes = [1, 8, 144], strides = [1, 1, 1]} : vector<5x8x144xf32> to vector<1x8x144xf32>
    %118 = vector.shape_cast %117 : vector<1x8x144xf32> to vector<8x144xf32>
    %119 = arith.truncf %118 : vector<8x144xf32> to vector<8x144xbf16>
    %c3_55 = arith.constant 3 : index
    %c0_56 = arith.constant 0 : index
    %c0_57 = arith.constant 0 : index
    %120 = vector.load %arg6[%c3_55, %c0_56, %c0_57] : memref<5x144x128xbf16, #tpu.memory_space<vmem>>, vector<1x144x128xbf16>
    %121 = vector.shape_cast %120 : vector<1x144x128xbf16> to vector<144x128xbf16>
    %cst_58 = arith.constant dense<0.000000e+00> : vector<8x128xf32>
    %122 = tpu.matmul %119, %121, %cst_58 {dimension_numbers = #tpu.dot_dimension_numbers<[1], [0], [0], [1], [0, 0, 1, 1], [], []>} : vector<8x144xbf16>, vector<144x128xbf16>, vector<8x128xf32> -> vector<8x128xf32>
    %123 = arith.addf %116, %122 : vector<8x128xf32>
    %124 = vector.extract_strided_slice %96 {offsets = [4, 0, 0], sizes = [1, 8, 144], strides = [1, 1, 1]} : vector<5x8x144xf32> to vector<1x8x144xf32>
    %125 = vector.shape_cast %124 : vector<1x8x144xf32> to vector<8x144xf32>
    %126 = arith.truncf %125 : vector<8x144xf32> to vector<8x144xbf16>
    %c4_59 = arith.constant 4 : index
    %c0_60 = arith.constant 0 : index
    %c0_61 = arith.constant 0 : index
    %127 = vector.load %arg6[%c4_59, %c0_60, %c0_61] : memref<5x144x128xbf16, #tpu.memory_space<vmem>>, vector<1x144x128xbf16>
    %128 = vector.shape_cast %127 : vector<1x144x128xbf16> to vector<144x128xbf16>
    %cst_62 = arith.constant dense<0.000000e+00> : vector<8x128xf32>
    %129 = tpu.matmul %126, %128, %cst_62 {dimension_numbers = #tpu.dot_dimension_numbers<[1], [0], [0], [1], [0, 0, 1, 1], [], []>} : vector<8x144xbf16>, vector<144x128xbf16>, vector<8x128xf32> -> vector<8x128xf32>
    %130 = arith.addf %123, %129 : vector<8x128xf32>
    %c0_63 = arith.constant 0 : index
    %c0_64 = arith.constant 0 : index
    %131 = vector.load %arg7[%c0_63, %c0_64] : memref<1x128xf32, #tpu.memory_space<vmem>>, vector<1x128xf32>
    %132 = vector.broadcast %131 : vector<1x128xf32> to vector<8x128xf32>
    %133 = arith.addf %130, %132 : vector<8x128xf32>
    %cst_65 = arith.constant 0.000000e+00 : f32
    %134 = vector.broadcast %cst_65 : f32 to vector<8x128xf32>
    %135 = arith.maximumf %133, %134 : vector<8x128xf32>
    %136 = arith.truncf %135 : vector<8x128xf32> to vector<8x128xbf16>
    %c0_66 = arith.constant 0 : index
    %c0_67 = arith.constant 0 : index
    %137 = vector.load %arg8[%c0_66, %c0_67] : memref<128x128xbf16, #tpu.memory_space<vmem>>, vector<128x128xbf16>
    %cst_68 = arith.constant dense<0.000000e+00> : vector<8x128xf32>
    %138 = tpu.matmul %136, %137, %cst_68 {dimension_numbers = #tpu.dot_dimension_numbers<[1], [0], [0], [1], [0, 0, 1, 1], [], []>} : vector<8x128xbf16>, vector<128x128xbf16>, vector<8x128xf32> -> vector<8x128xf32>
    %c0_69 = arith.constant 0 : index
    %c0_70 = arith.constant 0 : index
    %139 = vector.load %arg9[%c0_69, %c0_70] : memref<1x128xf32, #tpu.memory_space<vmem>>, vector<1x128xf32>
    %140 = vector.broadcast %139 : vector<1x128xf32> to vector<8x128xf32>
    %141 = arith.addf %138, %140 : vector<8x128xf32>
    %cst_71 = arith.constant 0.000000e+00 : f32
    %142 = vector.broadcast %cst_71 : f32 to vector<8x128xf32>
    %143 = arith.maximumf %141, %142 : vector<8x128xf32>
    %144 = arith.truncf %143 : vector<8x128xf32> to vector<8x128xbf16>
    %c0_72 = arith.constant 0 : index
    %c0_73 = arith.constant 0 : index
    %145 = vector.load %arg10[%c0_72, %c0_73] : memref<128x128xbf16, #tpu.memory_space<vmem>>, vector<128x128xbf16>
    %cst_74 = arith.constant dense<0.000000e+00> : vector<8x128xf32>
    %146 = tpu.matmul %144, %145, %cst_74 {dimension_numbers = #tpu.dot_dimension_numbers<[1], [0], [0], [1], [0, 0, 1, 1], [], []>} : vector<8x128xbf16>, vector<128x128xbf16>, vector<8x128xf32> -> vector<8x128xf32>
    %c0_75 = arith.constant 0 : index
    %c0_76 = arith.constant 0 : index
    %147 = vector.load %arg11[%c0_75, %c0_76] : memref<1x128xf32, #tpu.memory_space<vmem>>, vector<1x128xf32>
    %148 = vector.broadcast %147 : vector<1x128xf32> to vector<8x128xf32>
    %149 = arith.addf %146, %148 : vector<8x128xf32>
    %c0_77 = arith.constant 0 : index
    %c0_78 = arith.constant 0 : index
    %150 = vector.load %arg12[%c0_77, %c0_78] : memref<8x128xf32, #tpu.memory_space<vmem>>, vector<8x128xf32>
    tpu.vector_store %arg12[%c0_77, %c0_78], %149 {strides = array<i32>} : memref<8x128xf32, #tpu.memory_space<vmem>>, vector<8x128xf32>,
    return
  }
  func.func @transform_0(%arg0: i32) -> (i32, i32, i32) {
    %c0_i32 = arith.constant 0 : i32
    %c0_i32_0 = arith.constant 0 : i32
    %c0_i32_1 = arith.constant 0 : i32
    return %c0_i32, %arg0, %c0_i32_0 : i32, i32, i32
  }
  func.func @transform_1(%arg0: i32) -> (i32, i32, i32) {
    %c0_i32 = arith.constant 0 : i32
    %c0_i32_0 = arith.constant 0 : i32
    %c0_i32_1 = arith.constant 0 : i32
    %c0_i32_2 = arith.constant 0 : i32
    return %c0_i32, %c0_i32_0, %c0_i32_1 : i32, i32, i32
  }
  func.func @transform_2(%arg0: i32) -> (i32, i32) {
    %c0_i32 = arith.constant 0 : i32
    %c0_i32_0 = arith.constant 0 : i32
    %c0_i32_1 = arith.constant 0 : i32
    return %c0_i32, %c0_i32_0 : i32, i32
  }
  func.func @transform_3(%arg0: i32) -> (i32, i32, i32) {
    %c0_i32 = arith.constant 0 : i32
    %c0_i32_0 = arith.constant 0 : i32
    %c0_i32_1 = arith.constant 0 : i32
    %c0_i32_2 = arith.constant 0 : i32
    return %c0_i32, %c0_i32_0, %c0_i32_1 : i32, i32, i32
  }
  func.func @transform_4(%arg0: i32) -> (i32, i32) {
    %c0_i32 = arith.constant 0 : i32
    %c0_i32_0 = arith.constant 0 : i32
    %c0_i32_1 = arith.constant 0 : i32
    return %c0_i32, %c0_i32_0 : i32, i32
  }
  func.func @transform_5(%arg0: i32) -> (i32, i32, i32) {
    %c0_i32 = arith.constant 0 : i32
    %c0_i32_0 = arith.constant 0 : i32
    %c0_i32_1 = arith.constant 0 : i32
    %c0_i32_2 = arith.constant 0 : i32
    return %c0_i32, %c0_i32_0, %c0_i32_1 : i32, i32, i32
  }
  func.func @transform_6(%arg0: i32) -> (i32, i32) {
    %c0_i32 = arith.constant 0 : i32
    %c0_i32_0 = arith.constant 0 : i32
    %c0_i32_1 = arith.constant 0 : i32
    return %c0_i32, %c0_i32_0 : i32, i32
  }
  func.func @transform_7(%arg0: i32) -> (i32, i32) {
    %c0_i32 = arith.constant 0 : i32
    %c0_i32_0 = arith.constant 0 : i32
    %c0_i32_1 = arith.constant 0 : i32
    return %c0_i32, %c0_i32_0 : i32, i32
  }
  func.func @transform_8(%arg0: i32) -> (i32, i32) {
    %c0_i32 = arith.constant 0 : i32
    %c0_i32_0 = arith.constant 0 : i32
    %c0_i32_1 = arith.constant 0 : i32
    return %c0_i32, %c0_i32_0 : i32, i32
  }
  func.func @transform_9(%arg0: i32) -> (i32, i32) {
    %c0_i32 = arith.constant 0 : i32
    %c0_i32_0 = arith.constant 0 : i32
    %c0_i32_1 = arith.constant 0 : i32
    return %c0_i32, %c0_i32_0 : i32, i32
  }
  func.func @transform_10(%arg0: i32) -> (i32, i32) {
    %c0_i32 = arith.constant 0 : i32
    %c0_i32_0 = arith.constant 0 : i32
    %c0_i32_1 = arith.constant 0 : i32
    return %c0_i32, %c0_i32_0 : i32, i32
  }
  func.func @transform_11(%arg0: i32) -> (i32, i32) {
    %c0_i32 = arith.constant 0 : i32
    %c0_i32_0 = arith.constant 0 : i32
    return %arg0, %c0_i32 : i32, i32
  }
}

</mosaic_0001>

<llo_original>
// kernel: cifarnet_forward.1
$region0: #{cifarnet_forward.1}
  #allocation0 [shape = 'u32[]', space=smem, size = 0x4, offset = 0x4, fixed_abs, tag = 'smem constant byte address 0x4 - core index']
  #allocation1 [shape = 'u32[72,128]{1,0:T(1,128)}', space=vmem, size = 0x9000, scoped, tag = 'internal scratch']
  %s0 = inlined_call_operand.vmem [shape: f32[32,16,96], index: 0, kind: input, shape index: {}]
  %s1 = inlined_call_operand.vmem [shape: bf16[5,96,168], index: 1, kind: input, shape index: {}]
  %s2 = inlined_call_operand.vmem [shape: f32[1,168], index: 2, kind: input, shape index: {}]
  %s3 = inlined_call_operand.vmem [shape: bf16[5,162,160], index: 3, kind: input, shape index: {}]
  %s4 = inlined_call_operand.vmem [shape: f32[1,160], index: 4, kind: input, shape index: {}]
  %s5 = inlined_call_operand.vmem [shape: bf16[5,144,128], index: 5, kind: input, shape index: {}]
  %s6 = inlined_call_operand.vmem [shape: f32[1,128], index: 6, kind: input, shape index: {}]
  %s7 = inlined_call_operand.vmem [shape: bf16[128,128], index: 7, kind: input, shape index: {}]
  %s8 = inlined_call_operand.vmem [shape: f32[1,128], index: 8, kind: input, shape index: {}]
  %s9 = inlined_call_operand.vmem [shape: bf16[128,128], index: 9, kind: input, shape index: {}]
  %s10 = inlined_call_operand.vmem [shape: f32[1,128], index: 10, kind: input, shape index: {}]
  %s11 = inlined_call_operand.hbm [shape: f32[16,128], index: 11, kind: output, shape index: {}]
  %s12 = sld [smem:[#allocation0]]
  $region115: #{cifarnet_forward.1} parent=0
    _
  %s14 = ssub.s32 1, %s12
  %s15 = scalar_select 0, %s14, %s12
  $region1: #{cifarnet_forward.1} parent=0
    #allocation2 [shape = 'u8[262144]{0}', space=vmem, size = 0x40000, scoped, tag = 'input window, operand 0']
    #allocation3 [shape = 'u8[8192]{0}', space=vmem, size = 0x2000, scoped, tag = 'output window, operand 0']
    #allocation4 [shape = 's32[2]{0}', space=sflag, size = 0x8, scoped, tag = 'scoped memory for cifarnet_forward.1']
    %16 = vsyncpa [#allocation4], 0
    %s17 = scalar_lea.sflag [#allocation4], 1
    %18 = vsyncpa %s17, 0
    loop: start=0, step=1, limit=4
    $region2: #{cifarnet_forward.1} parent=1 // loop_pre_header
      _
    $region3: #{cifarnet_forward.1} parent=1 // loop_header
      %s20 = sphi 0, %s24
      %p21 = scmp.ge.s32.totalorder %s20, 4
      %s30 = sphi 0, %s32
      %s33 = sphi 0, %s30
      %s34 = sphi 0, %s33
      %s50 = sphi 0, %s34
      %s54 = sphi 0, %s54
      %s56 = sphi 0, %s54
      %s57 = sphi 0, %s56
      %s71 = sphi 0, %s57
      %s75 = sphi 0, %s75
      %s77 = sphi 0, %s75
      %s78 = sphi 0, %s77
      %s92 = sphi 0, %s78
      %s96 = sphi 0, %s96
      %s98 = sphi 0, %s96
      %s99 = sphi 0, %s98
      %s113 = sphi 0, %s99
      %s117 = sphi 0, %s117
      %s119 = sphi 0, %s117
      %s120 = sphi 0, %s119
      %s134 = sphi 0, %s120
      %s138 = sphi 0, %s138
      %s140 = sphi 0, %s138
      %s141 = sphi 0, %s140
      %s155 = sphi 0, %s141
      %s159 = sphi 0, %s159
      %s161 = sphi 0, %s159
      %s162 = sphi 0, %s161
      %s176 = sphi 0, %s162
      %s180 = sphi 0, %s180
      %s182 = sphi 0, %s180
      %s183 = sphi 0, %s182
      %s197 = sphi 0, %s183
      %s201 = sphi 0, %s201
      %s203 = sphi 0, %s201
      %s204 = sphi 0, %s203
      %s218 = sphi 0, %s204
      %s222 = sphi 0, %s222
      %s224 = sphi 0, %s222
      %s225 = sphi 0, %s224
      %s239 = sphi 0, %s225
      %s243 = sphi 0, %s243
      %s245 = sphi 0, %s243
      %s246 = sphi 0, %s245
      %s260 = sphi 0, %s246
      %s266 = sphi 0, %s268
      %s269 = sphi 0, %s266
      %s270 = sphi 0, %s269
      %s286 = sphi 0, %s270
    $region4: #{cifarnet_forward.1} parent=1 // loop_header_branch
      %23 = sbr.rel (%p21) target = $region8
    $region5: #{cifarnet_forward.1} parent=1 // loop_body
      %s25 = ssub.s32 %s20, 1
      %s26 = ssub.s32 %s20, 2
      %s27 = sadd.s32 %s20, 1
      %s28 = ssub.s32 %s20, %s27
      %p29 = scmp.eq.s32.totalorder %s28, 0
      %s31 = sadd.s32 %s30, 1
      %s32 = scalar_select %p29, %s30, %s31
      %p35 = pneg %p29
      %p36 = scmp.eq.s32.totalorder %s20, 1
      %p37 = por %p35, %p36
      %p38 = scmp.ne.s32.totalorder %s30, %s33
      %p39 = scmp.eq.s32.totalorder %s20, 0
      %p40 = por %p38, %p39
      %p41 = scmp.ne.s32.totalorder %s30, %s33
      %p42 = scmp.eq.s32.totalorder %s25, 1
      %p43 = por %p41, %p42
      %p44 = scmp.ne.s32.totalorder %s33, %s34
      %p45 = scmp.eq.s32.totalorder %s25, 0
      %p46 = por %p44, %p45
      %p47 = scmp.ne.s32.totalorder %s33, %s34
      %p48 = scmp.eq.s32.totalorder %s26, 1
      %p49 = por %p47, %p48
      %p51 = scmp.ne.s32.totalorder %s34, %s50
      %p52 = scmp.eq.s32.totalorder %s26, 0
      %p53 = por %p51, %p52
      %s55 = sadd.s32 %s54, 1
      %p58 = scmp.eq.s32.totalorder %s20, 1
      %p59 = scmp.ne.s32.totalorder %s54, %s56
      %p60 = scmp.eq.s32.totalorder %s20, 0
      %p61 = por %p59, %p60
      %p62 = scmp.ne.s32.totalorder %s54, %s56
      %p63 = scmp.eq.s32.totalorder %s25, 1
      %p64 = por %p62, %p63
      %p65 = scmp.ne.s32.totalorder %s56, %s57
      %p66 = scmp.eq.s32.totalorder %s25, 0
      %p67 = por %p65, %p66
      %p68 = scmp.ne.s32.totalorder %s56, %s57
      %p69 = scmp.eq.s32.totalorder %s26, 1
      %p70 = por %p68, %p69
      %p72 = scmp.ne.s32.totalorder %s57, %s71
      %p73 = scmp.eq.s32.totalorder %s26, 0
      %p74 = por %p72, %p73
      %s76 = sadd.s32 %s75, 1
      %p79 = scmp.eq.s32.totalorder %s20, 1
      %p80 = scmp.ne.s32.totalorder %s75, %s77
      %p81 = scmp.eq.s32.totalorder %s20, 0
      %p82 = por %p80, %p81
      %p83 = scmp.ne.s32.totalorder %s75, %s77
      %p84 = scmp.eq.s32.totalorder %s25, 1
      %p85 = por %p83, %p84
      %p86 = scmp.ne.s32.totalorder %s77, %s78
      %p87 = scmp.eq.s32.totalorder %s25, 0
      %p88 = por %p86, %p87
      %p89 = scmp.ne.s32.totalorder %s77, %s78
      %p90 = scmp.eq.s32.totalorder %s26, 1
      %p91 = por %p89, %p90
      %p93 = scmp.ne.s32.totalorder %s78, %s92
      %p94 = scmp.eq.s32.totalorder %s26, 0
      %p95 = por %p93, %p94
      %s97 = sadd.s32 %s96, 1
      %p100 = scmp.eq.s32.totalorder %s20, 1
      %p101 = scmp.ne.s32.totalorder %s96, %s98
      %p102 = scmp.eq.s32.totalorder %s20, 0
      %p103 = por %p101, %p102
      %p104 = scmp.ne.s32.totalorder %s96, %s98
      %p105 = scmp.eq.s32.totalorder %s25, 1
      %p106 = por %p104, %p105
      %p107 = scmp.ne.s32.totalorder %s98, %s99
      %p108 = scmp.eq.s32.totalorder %s25, 0
      %p109 = por %p107, %p108
      %p110 = scmp.ne.s32.totalorder %s98, %s99
      %p111 = scmp.eq.s32.totalorder %s26, 1
      %p112 = por %p110, %p111
      %p114 = scmp.ne.s32.totalorder %s99, %s113
      %p115 = scmp.eq.s32.totalorder %s26, 0
      %p116 = por %p114, %p115
      %s118 = sadd.s32 %s117, 1
      %p121 = scmp.eq.s32.totalorder %s20, 1
      %p122 = scmp.ne.s32.totalorder %s117, %s119
      %p123 = scmp.eq.s32.totalorder %s20, 0
      %p124 = por %p122, %p123
      %p125 = scmp.ne.s32.totalorder %s117, %s119
      %p126 = scmp.eq.s32.totalorder %s25, 1
      %p127 = por %p125, %p126
      %p128 = scmp.ne.s32.totalorder %s119, %s120
      %p129 = scmp.eq.s32.totalorder %s25, 0
      %p130 = por %p128, %p129
      %p131 = scmp.ne.s32.totalorder %s119, %s120
      %p132 = scmp.eq.s32.totalorder %s26, 1
      %p133 = por %p131, %p132
      %p135 = scmp.ne.s32.totalorder %s120, %s134
      %p136 = scmp.eq.s32.totalorder %s26, 0
      %p137 = por %p135, %p136
      %s139 = sadd.s32 %s138, 1
      %p142 = scmp.eq.s32.totalorder %s20, 1
      %p143 = scmp.ne.s32.totalorder %s138, %s140
      %p144 = scmp.eq.s32.totalorder %s20, 0
      %p145 = por %p143, %p144
      %p146 = scmp.ne.s32.totalorder %s138, %s140
      %p147 = scmp.eq.s32.totalorder %s25, 1
      %p148 = por %p146, %p147
      %p149 = scmp.ne.s32.totalorder %s140, %s141
      %p150 = scmp.eq.s32.totalorder %s25, 0
      %p151 = por %p149, %p150
      %p152 = scmp.ne.s32.totalorder %s140, %s141
      %p153 = scmp.eq.s32.totalorder %s26, 1
      %p154 = por %p152, %p153
      %p156 = scmp.ne.s32.totalorder %s141, %s155
      %p157 = scmp.eq.s32.totalorder %s26, 0
      %p158 = por %p156, %p157
      %s160 = sadd.s32 %s159, 1
      %p163 = scmp.eq.s32.totalorder %s20, 1
      %p164 = scmp.ne.s32.totalorder %s159, %s161
      %p165 = scmp.eq.s32.totalorder %s20, 0
      %p166 = por %p164, %p165
      %p167 = scmp.ne.s32.totalorder %s159, %s161
      %p168 = scmp.eq.s32.totalorder %s25, 1
      %p169 = por %p167, %p168
      %p170 = scmp.ne.s32.totalorder %s161, %s162
      %p171 = scmp.eq.s32.totalorder %s25, 0
      %p172 = por %p170, %p171
      %p173 = scmp.ne.s32.totalorder %s161, %s162
      %p174 = scmp.eq.s32.totalorder %s26, 1
      %p175 = por %p173, %p174
      %p177 = scmp.ne.s32.totalorder %s162, %s176
      %p178 = scmp.eq.s32.totalorder %s26, 0
      %p179 = por %p177, %p178
      %s181 = sadd.s32 %s180, 1
      %p184 = scmp.eq.s32.totalorder %s20, 1
      %p185 = scmp.ne.s32.totalorder %s180, %s182
      %p186 = scmp.eq.s32.totalorder %s20, 0
      %p187 = por %p185, %p186
      %p188 = scmp.ne.s32.totalorder %s180, %s182
      %p189 = scmp.eq.s32.totalorder %s25, 1
      %p190 = por %p188, %p189
      %p191 = scmp.ne.s32.totalorder %s182, %s183
      %p192 = scmp.eq.s32.totalorder %s25, 0
      %p193 = por %p191, %p192
      %p194 = scmp.ne.s32.totalorder %s182, %s183
      %p195 = scmp.eq.s32.totalorder %s26, 1
      %p196 = por %p194, %p195
      %p198 = scmp.ne.s32.totalorder %s183, %s197
      %p199 = scmp.eq.s32.totalorder %s26, 0
      %p200 = por %p198, %p199
      %s202 = sadd.s32 %s201, 1
      %p205 = scmp.eq.s32.totalorder %s20, 1
      %p206 = scmp.ne.s32.totalorder %s201, %s203
      %p207 = scmp.eq.s32.totalorder %s20, 0
      %p208 = por %p206, %p207
      %p209 = scmp.ne.s32.totalorder %s201, %s203
      %p210 = scmp.eq.s32.totalorder %s25, 1
      %p211 = por %p209, %p210
      %p212 = scmp.ne.s32.totalorder %s203, %s204
      %p213 = scmp.eq.s32.totalorder %s25, 0
      %p214 = por %p212, %p213
      %p215 = scmp.ne.s32.totalorder %s203, %s204
      %p216 = scmp.eq.s32.totalorder %s26, 1
      %p217 = por %p215, %p216
      %p219 = scmp.ne.s32.totalorder %s204, %s218
      %p220 = scmp.eq.s32.totalorder %s26, 0
      %p221 = por %p219, %p220
      %s223 = sadd.s32 %s222, 1
      %p226 = scmp.eq.s32.totalorder %s20, 1
      %p227 = scmp.ne.s32.totalorder %s222, %s224
      %p228 = scmp.eq.s32.totalorder %s20, 0
      %p229 = por %p227, %p228
      %p230 = scmp.ne.s32.totalorder %s222, %s224
      %p231 = scmp.eq.s32.totalorder %s25, 1
      %p232 = por %p230, %p231
      %p233 = scmp.ne.s32.totalorder %s224, %s225
      %p234 = scmp.eq.s32.totalorder %s25, 0
      %p235 = por %p233, %p234
      %p236 = scmp.ne.s32.totalorder %s224, %s225
      %p237 = scmp.eq.s32.totalorder %s26, 1
      %p238 = por %p236, %p237
      %p240 = scmp.ne.s32.totalorder %s225, %s239
      %p241 = scmp.eq.s32.totalorder %s26, 0
      %p242 = por %p240, %p241
      %s244 = sadd.s32 %s243, 1
      %p247 = scmp.eq.s32.totalorder %s20, 1
      %p248 = scmp.ne.s32.totalorder %s243, %s245
      %p249 = scmp.eq.s32.totalorder %s20, 0
      %p250 = por %p248, %p249
      %p251 = scmp.ne.s32.totalorder %s243, %s245
      %p252 = scmp.eq.s32.totalorder %s25, 1
      %p253 = por %p251, %p252
      %p254 = scmp.ne.s32.totalorder %s245, %s246
      %p255 = scmp.eq.s32.totalorder %s25, 0
      %p256 = por %p254, %p255
      %p257 = scmp.ne.s32.totalorder %s245, %s246
      %p258 = scmp.eq.s32.totalorder %s26, 1
      %p259 = por %p257, %p258
      %p261 = scmp.ne.s32.totalorder %s246, %s260
      %p262 = scmp.eq.s32.totalorder %s26, 0
      %p263 = por %p261, %p262
      %s264 = ssub.s32 %s20, %s27
      %p265 = scmp.eq.s32.totalorder %s264, 0
      %s267 = sadd.s32 %s266, 1
      %s268 = scalar_select %p265, %s266, %s267
      %p271 = pneg %p265
      %p272 = scmp.eq.s32.totalorder %s20, 1
      %p273 = por %p271, %p272
      %p274 = scmp.ne.s32.totalorder %s266, %s269
      %p275 = scmp.eq.s32.totalorder %s20, 0
      %p276 = por %p274, %p275
      %p277 = scmp.ne.s32.totalorder %s266, %s269
      %p278 = scmp.eq.s32.totalorder %s25, 1
      %p279 = por %p277, %p278
      %p280 = scmp.ne.s32.totalorder %s269, %s270
      %p281 = scmp.eq.s32.totalorder %s25, 0
      %p282 = por %p280, %p281
      %p283 = scmp.ne.s32.totalorder %s269, %s270
      %p284 = scmp.eq.s32.totalorder %s26, 1
      %p285 = por %p283, %p284
      %p287 = scmp.ne.s32.totalorder %s270, %s286
      %p288 = scmp.eq.s32.totalorder %s26, 0
      %p289 = por %p287, %p288
      %p290 = scmp.le.s32.totalorder 1, %s20
      %p291 = scmp.lt.s32.totalorder %s20, 3
      %p292 = pnand %p290, %p291
      %p293 = pneg %p292
      // Predicated region
      $region9: #{cifarnet_forward.1} parent=5 // pred_check
        _
      $region10: #{cifarnet_forward.1} parent=5 // pred_check_branch
        %295 = sbr.rel (%p292) target = $region12
      $region11: #{cifarnet_forward.1} parent=5 // pred_region
        %s296 = ssub.s32 %s20, 1
        // Predicated region
        $region13: #{cifarnet_forward.1} parent=11 // pred_check
          %p297 = pneg %p67
        $region14: #{cifarnet_forward.1} parent=11 // pred_check_branch
          %299 = sbr.rel (%p297) target = $region16
        $region15: #{cifarnet_forward.1} parent=11 // pred_region
          _
        $region16: #{cifarnet_forward.1} parent=11 // pred_fallthru
          _
        // Predicated region
        $region17: #{cifarnet_forward.1} parent=11 // pred_check
          %p300 = pneg %p88
        $region18: #{cifarnet_forward.1} parent=11 // pred_check_branch
          %302 = sbr.rel (%p300) target = $region20
        $region19: #{cifarnet_forward.1} parent=11 // pred_region
          _
        $region20: #{cifarnet_forward.1} parent=11 // pred_fallthru
          _
        // Predicated region
        $region21: #{cifarnet_forward.1} parent=11 // pred_check
          %p303 = pneg %p109
        $region22: #{cifarnet_forward.1} parent=11 // pred_check_branch
          %305 = sbr.rel (%p303) target = $region24
        $region23: #{cifarnet_forward.1} parent=11 // pred_region
          _
        $region24: #{cifarnet_forward.1} parent=11 // pred_fallthru
          _
        // Predicated region
        $region25: #{cifarnet_forward.1} parent=11 // pred_check
          %p306 = pneg %p130
        $region26: #{cifarnet_forward.1} parent=11 // pred_check_branch
          %308 = sbr.rel (%p306) target = $region28
        $region27: #{cifarnet_forward.1} parent=11 // pred_region
          _
        $region28: #{cifarnet_forward.1} parent=11 // pred_fallthru
          _
        // Predicated region
        $region29: #{cifarnet_forward.1} parent=11 // pred_check
          %p309 = pneg %p151
        $region30: #{cifarnet_forward.1} parent=11 // pred_check_branch
          %311 = sbr.rel (%p309) target = $region32
        $region31: #{cifarnet_forward.1} parent=11 // pred_region
          _
        $region32: #{cifarnet_forward.1} parent=11 // pred_fallthru
          _
        // Predicated region
        $region33: #{cifarnet_forward.1} parent=11 // pred_check
          %p312 = pneg %p172
        $region34: #{cifarnet_forward.1} parent=11 // pred_check_branch
          %314 = sbr.rel (%p312) target = $region36
        $region35: #{cifarnet_forward.1} parent=11 // pred_region
          _
        $region36: #{cifarnet_forward.1} parent=11 // pred_fallthru
          _
        // Predicated region
        $region37: #{cifarnet_forward.1} parent=11 // pred_check
          %p315 = pneg %p193
        $region38: #{cifarnet_forward.1} parent=11 // pred_check_branch
          %317 = sbr.rel (%p315) target = $region40
        $region39: #{cifarnet_forward.1} parent=11 // pred_region
          _
        $region40: #{cifarnet_forward.1} parent=11 // pred_fallthru
          _
        // Predicated region
        $region41: #{cifarnet_forward.1} parent=11 // pred_check
          %p318 = pneg %p214
        $region42: #{cifarnet_forward.1} parent=11 // pred_check_branch
          %320 = sbr.rel (%p318) target = $region44
        $region43: #{cifarnet_forward.1} parent=11 // pred_region
          _
        $region44: #{cifarnet_forward.1} parent=11 // pred_fallthru
          _
        // Predicated region
        $region45: #{cifarnet_forward.1} parent=11 // pred_check
          %p321 = pneg %p235
        $region46: #{cifarnet_forward.1} parent=11 // pred_check_branch
          %323 = sbr.rel (%p321) target = $region48
        $region47: #{cifarnet_forward.1} parent=11 // pred_region
          _
        $region48: #{cifarnet_forward.1} parent=11 // pred_fallthru
          _
        // Predicated region
        $region49: #{cifarnet_forward.1} parent=11 // pred_check
          %p324 = pneg %p256
        $region50: #{cifarnet_forward.1} parent=11 // pred_check_branch
          %326 = sbr.rel (%p324) target = $region52
        $region51: #{cifarnet_forward.1} parent=11 // pred_region
          _
        $region52: #{cifarnet_forward.1} parent=11 // pred_fallthru
          _
      $region12: #{cifarnet_forward.1} parent=5 // pred_fallthru
        _
      %p327 = scmp.lt.s32.totalorder %s20, 2
      // Predicated region
      $region53: #{cifarnet_forward.1} parent=5 // pred_check
        %p328 = pneg %p327
      $region54: #{cifarnet_forward.1} parent=5 // pred_check_branch
        %330 = sbr.rel (%p328) target = $region56
      $region55: #{cifarnet_forward.1} parent=5 // pred_region
        // Predicated region
        $region57: #{cifarnet_forward.1} parent=55 // pred_check
          %p331 = pneg %p40
        $region58: #{cifarnet_forward.1} parent=55 // pred_check_branch
          %333 = sbr.rel (%p331) target = $region60
        $region59: #{cifarnet_forward.1} parent=55 // pred_region
          %s334 = sand.u32 %s30, 1
          %s335 = sand.u32 %s30, 1
          %s336 = smul.addr %s335, 256
          %s337 = scalar_lea.vmem [#allocation2], %s336
          %s338 = smul.addr %s20, 8
          %s339 = scalar_lea.vmem %s0, %s338
          // Predicated region
          $region61: #{cifarnet_forward.1} parent=59 // pred_check
            _
          $region62: #{cifarnet_forward.1} parent=59 // pred_check_branch
            %341 = sbr.rel (0) target = $region64
          $region63: #{cifarnet_forward.1} parent=59 // pred_region
            // Predicated region
            $region65: #{cifarnet_forward.1} parent=63 // pred_check
              _
            $region66: #{cifarnet_forward.1} parent=63 // pred_check_branch
              %343 = sbr.rel (0) target = $region68
            $region67: #{cifarnet_forward.1} parent=63 // pred_region
              // Predicated region
              $region80: #{cifarnet_forward.1} parent=67 // pred_check
                _
              $region81: #{cifarnet_forward.1} parent=67 // pred_check_branch
                %421 = sbr.rel (0) target = $region83
              $region82: #{cifarnet_forward.1} parent=67 // pred_region
                loop: start=0, step=1, limit=1
                $region84: #{cifarnet_forward.1} parent=82 // loop_pre_header
                  _
                $region85: #{cifarnet_forward.1} parent=82 // loop_header
                  %s423 = sphi 0, %s427
                  %p424 = scmp.ge.s32.totalorder %s423, 1
                  %s428 = sphi %s339, %s339
                  %s429 = sphi %s337, %s337
                $region86: #{cifarnet_forward.1} parent=82 // loop_header_branch
                  %426 = sbr.rel (%p424) target = $region90
                $region87: #{cifarnet_forward.1} parent=82 // loop_body
                  %v430 = vld [vmem:[%s428] sm:$0xff]
                  %431 = vst [vmem:[%s429] sm:$0xff] %v430
                  %v432 = vld [vmem:[%s428 + $0x10] sm:$0xff]
                  %433 = vst [vmem:[%s429 + $0x8] sm:$0xff] %v432
                  %v434 = vld [vmem:[%s428 + $0x20] sm:$0xff]
                  %435 = vst [vmem:[%s429 + $0x10] sm:$0xff] %v434
                  %v436 = vld [vmem:[%s428 + $0x30] sm:$0xff]
                  %437 = vst [vmem:[%s429 + $0x18] sm:$0xff] %v436
                  %v438 = vld [vmem:[%s428 + $0x40] sm:$0xff]
                  %439 = vst [vmem:[%s429 + $0x20] sm:$0xff] %v438
                  %v440 = vld [vmem:[%s428 + $0x50] sm:$0xff]
                  %441 = vst [vmem:[%s429 + $0x28] sm:$0xff] %v440
                  %v442 = vld [vmem:[%s428 + $0x60] sm:$0xff]
                  %443 = vst [vmem:[%s429 + $0x30] sm:$0xff] %v442
                  %v444 = vld [vmem:[%s428 + $0x70] sm:$0xff]
                  %445 = vst [vmem:[%s429 + $0x38] sm:$0xff] %v444
                  %v446 = vld [vmem:[%s428 + $0x80] sm:$0xff]
                  %447 = vst [vmem:[%s429 + $0x40] sm:$0xff] %v446
                  %v448 = vld [vmem:[%s428 + $0x90] sm:$0xff]
                  %449 = vst [vmem:[%s429 + $0x48] sm:$0xff] %v448
                  %v450 = vld [vmem:[%s428 + $0xa0] sm:$0xff]
                  %451 = vst [vmem:[%s429 + $0x50] sm:$0xff] %v450
                  %v452 = vld [vmem:[%s428 + $0xb0] sm:$0xff]
                  %453 = vst [vmem:[%s429 + $0x58] sm:$0xff] %v452
                  %v454 = vld [vmem:[%s428 + $0xc0] sm:$0xff]
                  %455 = vst [vmem:[%s429 + $0x60] sm:$0xff] %v454
                  %v456 = vld [vmem:[%s428 + $0xd0] sm:$0xff]
                  %457 = vst [vmem:[%s429 + $0x68] sm:$0xff] %v456
                  %v458 = vld [vmem:[%s428 + $0xe0] sm:$0xff]
                  %459 = vst [vmem:[%s429 + $0x70] sm:$0xff] %v458
                  %v460 = vld [vmem:[%s428 + $0xf0] sm:$0xff]
                  %461 = vst [vmem:[%s429 + $0x78] sm:$0xff] %v460
                  %v462 = vld [vmem:[%s428 + $0x100] sm:$0xff]
                  %463 = vst [vmem:[%s429 + $0x80] sm:$0xff] %v462
                  %v464 = vld [vmem:[%s428 + $0x110] sm:$0xff]
                  %465 = vst [vmem:[%s429 + $0x88] sm:$0xff] %v464
                  %v466 = vld [vmem:[%s428 + $0x120] sm:$0xff]
                  %467 = vst [vmem:[%s429 + $0x90] sm:$0xff] %v466
                  %v468 = vld [vmem:[%s428 + $0x130] sm:$0xff]
                  %469 = vst [vmem:[%s429 + $0x98] sm:$0xff] %v468
                  %v470 = vld [vmem:[%s428 + $0x140] sm:$0xff]
                  %471 = vst [vmem:[%s429 + $0xa0] sm:$0xff] %v470
                  %v472 = vld [vmem:[%s428 + $0x150] sm:$0xff]
                  %473 = vst [vmem:[%s429 + $0xa8] sm:$0xff] %v472
                  %v474 = vld [vmem:[%s428 + $0x160] sm:$0xff]
                  %475 = vst [vmem:[%s429 + $0xb0] sm:$0xff] %v474
                  %v476 = vld [vmem:[%s428 + $0x170] sm:$0xff]
                  %477 = vst [vmem:[%s429 + $0xb8] sm:$0xff] %v476
                  %v478 = vld [vmem:[%s428 + $0x180] sm:$0xff]
                  %479 = vst [vmem:[%s429 + $0xc0] sm:$0xff] %v478
                  %v480 = vld [vmem:[%s428 + $0x190] sm:$0xff]
                  %481 = vst [vmem:[%s429 + $0xc8] sm:$0xff] %v480
                  %v482 = vld [vmem:[%s428 + $0x1a0] sm:$0xff]
                  %483 = vst [vmem:[%s429 + $0xd0] sm:$0xff] %v482
                  %v484 = vld [vmem:[%s428 + $0x1b0] sm:$0xff]
                  %485 = vst [vmem:[%s429 + $0xd8] sm:$0xff] %v484
                  %v486 = vld [vmem:[%s428 + $0x1c0] sm:$0xff]
                  %487 = vst [vmem:[%s429 + $0xe0] sm:$0xff] %v486
                  %v488 = vld [vmem:[%s428 + $0x1d0] sm:$0xff]
                  %489 = vst [vmem:[%s429 + $0xe8] sm:$0xff] %v488
                  %v490 = vld [vmem:[%s428 + $0x1e0] sm:$0xff]
                  %491 = vst [vmem:[%s429 + $0xf0] sm:$0xff] %v490
                  %v492 = vld [vmem:[%s428 + $0x1f0] sm:$0xff]
                  %493 = vst [vmem:[%s429 + $0xf8] sm:$0xff] %v492
                $region88: #{cifarnet_forward.1} parent=82 // loop_footer
                  %s427 = sadd.s32 1, %s423
                $region89: #{cifarnet_forward.1} parent=82 // loop_footer_branch
                  %422 = sbr.rel target = $region85
                $region90: #{cifarnet_forward.1} parent=82 // loop_exit
                  _
              $region83: #{cifarnet_forward.1} parent=67 // pred_fallthru
                _
              // Predicated region
              $region91: #{cifarnet_forward.1} parent=67 // pred_check
                _
              $region92: #{cifarnet_forward.1} parent=67 // pred_check_branch
                %495 = sbr.rel target = $region94
              $region93: #{cifarnet_forward.1} parent=67 // pred_region
                _
              $region94: #{cifarnet_forward.1} parent=67 // pred_fallthru
                _
            $region68: #{cifarnet_forward.1} parent=63 // pred_fallthru
              _
            // Predicated region
            $region69: #{cifarnet_forward.1} parent=63 // pred_check
              _
            $region70: #{cifarnet_forward.1} parent=63 // pred_check_branch
              %345 = sbr.rel target = $region72
            $region71: #{cifarnet_forward.1} parent=63 // pred_region
              %s347 = ssub.s32 256, 1
              loop: start=0, step=1, limit=1
              $region73: #{cifarnet_forward.1} parent=71 // loop_pre_header
                _
              $region74: #{cifarnet_forward.1} parent=71 // loop_header
                %s349 = sphi 0, %s353
                %p350 = scmp.ge.s32.totalorder %s349, 1
                %s354 = sphi %s339, %s339
                %s355 = sphi %s337, %s337
              $region75: #{cifarnet_forward.1} parent=71 // loop_header_branch
                %352 = sbr.rel (%p350) target = $region79
              $region76: #{cifarnet_forward.1} parent=71 // loop_body
                %v356 = vld [vmem:[%s354] sm:%s347]
                %357 = vst [vmem:[%s355] sm:%s347] %v356
                %v358 = vld [vmem:[%s354 + $0x10] sm:%s347]
                %359 = vst [vmem:[%s355 + $0x8] sm:%s347] %v358
                %v360 = vld [vmem:[%s354 + $0x20] sm:%s347]
                %361 = vst [vmem:[%s355 + $0x10] sm:%s347] %v360
                %v362 = vld [vmem:[%s354 + $0x30] sm:%s347]
                %363 = vst [vmem:[%s355 + $0x18] sm:%s347] %v362
                %v364 = vld [vmem:[%s354 + $0x40] sm:%s347]
                %365 = vst [vmem:[%s355 + $0x20] sm:%s347] %v364
                %v366 = vld [vmem:[%s354 + $0x50] sm:%s347]
                %367 = vst [vmem:[%s355 + $0x28] sm:%s347] %v366
                %v368 = vld [vmem:[%s354 + $0x60] sm:%s347]
                %369 = vst [vmem:[%s355 + $0x30] sm:%s347] %v368
                %v370 = vld [vmem:[%s354 + $0x70] sm:%s347]
                %371 = vst [vmem:[%s355 + $0x38] sm:%s347] %v370
                %v372 = vld [vmem:[%s354 + $0x80] sm:%s347]
                %373 = vst [vmem:[%s355 + $0x40] sm:%s347] %v372
                %v374 = vld [vmem:[%s354 + $0x90] sm:%s347]
                %375 = vst [vmem:[%s355 + $0x48] sm:%s347] %v374
                %v376 = vld [vmem:[%s354 + $0xa0] sm:%s347]
                %377 = vst [vmem:[%s355 + $0x50] sm:%s347] %v376
                %v378 = vld [vmem:[%s354 + $0xb0] sm:%s347]
                %379 = vst [vmem:[%s355 + $0x58] sm:%s347] %v378
                %v380 = vld [vmem:[%s354 + $0xc0] sm:%s347]
                %381 = vst [vmem:[%s355 + $0x60] sm:%s347] %v380
                %v382 = vld [vmem:[%s354 + $0xd0] sm:%s347]
                %383 = vst [vmem:[%s355 + $0x68] sm:%s347] %v382
                %v384 = vld [vmem:[%s354 + $0xe0] sm:%s347]
                %385 = vst [vmem:[%s355 + $0x70] sm:%s347] %v384
                %v386 = vld [vmem:[%s354 + $0xf0] sm:%s347]
                %387 = vst [vmem:[%s355 + $0x78] sm:%s347] %v386
                %v388 = vld [vmem:[%s354 + $0x100] sm:%s347]
                %389 = vst [vmem:[%s355 + $0x80] sm:%s347] %v388
                %v390 = vld [vmem:[%s354 + $0x110] sm:%s347]
                %391 = vst [vmem:[%s355 + $0x88] sm:%s347] %v390
                %v392 = vld [vmem:[%s354 + $0x120] sm:%s347]
                %393 = vst [vmem:[%s355 + $0x90] sm:%s347] %v392
                %v394 = vld [vmem:[%s354 + $0x130] sm:%s347]
                %395 = vst [vmem:[%s355 + $0x98] sm:%s347] %v394
                %v396 = vld [vmem:[%s354 + $0x140] sm:%s347]
                %397 = vst [vmem:[%s355 + $0xa0] sm:%s347] %v396
                %v398 = vld [vmem:[%s354 + $0x150] sm:%s347]
                %399 = vst [vmem:[%s355 + $0xa8] sm:%s347] %v398
                %v400 = vld [vmem:[%s354 + $0x160] sm:%s347]
                %401 = vst [vmem:[%s355 + $0xb0] sm:%s347] %v400
                %v402 = vld [vmem:[%s354 + $0x170] sm:%s347]
                %403 = vst [vmem:[%s355 + $0xb8] sm:%s347] %v402
                %v404 = vld [vmem:[%s354 + $0x180] sm:%s347]
                %405 = vst [vmem:[%s355 + $0xc0] sm:%s347] %v404
                %v406 = vld [vmem:[%s354 + $0x190] sm:%s347]
                %407 = vst [vmem:[%s355 + $0xc8] sm:%s347] %v406
                %v408 = vld [vmem:[%s354 + $0x1a0] sm:%s347]
                %409 = vst [vmem:[%s355 + $0xd0] sm:%s347] %v408
                %v410 = vld [vmem:[%s354 + $0x1b0] sm:%s347]
                %411 = vst [vmem:[%s355 + $0xd8] sm:%s347] %v410
                %v412 = vld [vmem:[%s354 + $0x1c0] sm:%s347]
                %413 = vst [vmem:[%s355 + $0xe0] sm:%s347] %v412
                %v414 = vld [vmem:[%s354 + $0x1d0] sm:%s347]
                %415 = vst [vmem:[%s355 + $0xe8] sm:%s347] %v414
                %v416 = vld [vmem:[%s354 + $0x1e0] sm:%s347]
                %417 = vst [vmem:[%s355 + $0xf0] sm:%s347] %v416
                %v418 = vld [vmem:[%s354 + $0x1f0] sm:%s347]
                %419 = vst [vmem:[%s355 + $0xf8] sm:%s347] %v418
              $region77: #{cifarnet_forward.1} parent=71 // loop_footer
                %s353 = sadd.s32 1, %s349
              $region78: #{cifarnet_forward.1} parent=71 // loop_footer_branch
                %348 = sbr.rel target = $region74
              $region79: #{cifarnet_forward.1} parent=71 // loop_exit
                _
            $region72: #{cifarnet_forward.1} parent=63 // pred_fallthru
              _
          $region64: #{cifarnet_forward.1} parent=59 // pred_fallthru
            _
          %496 = vnop
        $region60: #{cifarnet_forward.1} parent=55 // pred_fallthru
          _
      $region56: #{cifarnet_forward.1} parent=5 // pred_fallthru
        _
      %p497 = scmp.le.s32.totalorder 1, %s20
      %p498 = scmp.lt.s32.totalorder %s20, 3
      %p499 = pnand %p497, %p498
      %p500 = pneg %p499
      // Predicated region
      $region95: #{cifarnet_forward.1} parent=5 // pred_check
        _
      $region96: #{cifarnet_forward.1} parent=5 // pred_check_branch
        %502 = sbr.rel (%p499) target = $region98
      $region97: #{cifarnet_forward.1} parent=5 // pred_region
        %s503 = ssub.s32 %s20, 1
        %s504 = sand.u32 %s33, 1
        %s505 = sand.u32 %s33, 1
        %s506 = smul.addr %s505, 256
        %s507 = scalar_lea.vmem [#allocation2], %s506
        // Predicated region
        $region99: #{cifarnet_forward.1} parent=97 // pred_check
          %p508 = pneg %p46
        $region100: #{cifarnet_forward.1} parent=97 // pred_check_branch
          %510 = sbr.rel (%p508) target = $region102
        $region101: #{cifarnet_forward.1} parent=97 // pred_region
          _
        $region102: #{cifarnet_forward.1} parent=97 // pred_fallthru
          _
        %s511 = sand.u32 %s33, 1
        %s512 = sand.u32 %s33, 1
        %s513 = smul.addr %s512, 256
        %s514 = scalar_lea.vmem [#allocation2], %s513
        %p515 = pneg %p46
        %p516 = pneg %p43
        %p517 = pneg %p67
        %p518 = pneg %p64
        %p519 = pneg %p88
        %p520 = pneg %p85
        %p521 = pneg %p109
        %p522 = pneg %p106
        %p523 = pneg %p130
        %p524 = pneg %p127
        %p525 = pneg %p151
        %p526 = pneg %p148
        %p527 = pneg %p172
        %p528 = pneg %p169
        %p529 = pneg %p193
        %p530 = pneg %p190
        %p531 = pneg %p214
        %p532 = pneg %p211
        %p533 = pneg %p235
        %p534 = pneg %p232
        %p535 = pneg %p256
        %p536 = pneg %p253
        %p537 = pneg %p282
        %p538 = pneg %p279
        %s539 = sand.u32 %s269, 1
        %s540 = scalar_lea.sflag [#allocation4], %s539
        %s541 = sand.u32 %s269, 1
        %s542 = smul.addr %s541, 8
        %s543 = scalar_lea.vmem [#allocation3], %s542
        %v545 = vld [vmem:[%s507] sm:$0xff]
        %v546 = vld [vmem:[%s507 + $0x8] sm:$0xff]
        %v547 = vld [vmem:[%s507 + $0x10] sm:$0xff]
        %v548 = vld [vmem:[%s507 + $0x18] sm:$0xff]
        %v549 = vld [vmem:[%s507 + $0x20] sm:$0xff]
        %v550 = vld [vmem:[%s507 + $0x28] sm:$0xff]
        %v551 = vld [vmem:[%s507 + $0x30] sm:$0xff]
        %v552 = vld [vmem:[%s507 + $0x38] sm:$0xff]
        %v553 = vld [vmem:[%s507 + $0x40] sm:$0xff]
        %v554 = vld [vmem:[%s507 + $0x48] sm:$0xff]
        %v555 = vld [vmem:[%s507 + $0x50] sm:$0xff]
        %v556 = vld [vmem:[%s507 + $0x58] sm:$0xff]
        %v557 = vld [vmem:[%s507 + $0x60] sm:$0xff]
        %v558 = vld [vmem:[%s507 + $0x68] sm:$0xff]
        %v559 = vld [vmem:[%s507 + $0x70] sm:$0xff]
        %v560 = vld [vmem:[%s507 + $0x78] sm:$0xff]
        %v561 = vld [vmem:[%s507 + $0x80] sm:$0xff]
        %v562 = vld [vmem:[%s507 + $0x88] sm:$0xff]
        %v563 = vld [vmem:[%s507 + $0x90] sm:$0xff]
        %v564 = vld [vmem:[%s507 + $0x98] sm:$0xff]
        %v565 = vld [vmem:[%s507 + $0xa0] sm:$0xff]
        %v566 = vld [vmem:[%s507 + $0xa8] sm:$0xff]
        %v567 = vld [vmem:[%s507 + $0xb0] sm:$0xff]
        %v568 = vld [vmem:[%s507 + $0xb8] sm:$0xff]
        %v569 = vld [vmem:[%s507 + $0xc0] sm:$0xff]
        %v570 = vld [vmem:[%s507 + $0xc8] sm:$0xff]
        %v571 = vld [vmem:[%s507 + $0xd0] sm:$0xff]
        %v572 = vld [vmem:[%s507 + $0xd8] sm:$0xff]
        %v573 = vld [vmem:[%s507 + $0xe0] sm:$0xff]
        %v574 = vld [vmem:[%s507 + $0xe8] sm:$0xff]
        %v575 = vld [vmem:[%s507 + $0xf0] sm:$0xff]
        %v576 = vld [vmem:[%s507 + $0xf8] sm:$0xff]
        %v577 = vpack.c.bf16 %v546, %v545
        %v578 = vpack.c.bf16 %v548, %v547
        %v579 = vpack.c.bf16 %v550, %v549
        %v580 = vpack.c.bf16 %v552, %v551
        %v581 = vpack.c.bf16 %v554, %v553
        %v582 = vpack.c.bf16 %v556, %v555
        %v583 = vpack.c.bf16 %v558, %v557
        %v584 = vpack.c.bf16 %v560, %v559
        %v585 = vpack.c.bf16 %v562, %v561
        %v586 = vpack.c.bf16 %v564, %v563
        %v587 = vpack.c.bf16 %v566, %v565
        %v588 = vpack.c.bf16 %v568, %v567
        %v589 = vpack.c.bf16 %v570, %v569
        %v590 = vpack.c.bf16 %v572, %v571
        %v591 = vld [vmem:[%s1] sm:$0xff]
        %v592 = vld [vmem:[%s1 + $0x8] sm:$0xff]
        %v593 = vld [vmem:[%s1 + $0x10] sm:$0xff]
        %v594 = vld [vmem:[%s1 + $0x18] sm:$0xff]
        %v595 = vld [vmem:[%s1 + $0x20] sm:$0xff]
        %v596 = vld [vmem:[%s1 + $0x28] sm:$0xff]
        %v597 = vld [vmem:[%s1 + $0x30] sm:$0xff]
        %v598 = vld [vmem:[%s1 + $0x38] sm:$0xff]
        %v599 = vld [vmem:[%s1 + $0x40] sm:$0xff]
        %v600 = vld [vmem:[%s1 + $0x48] sm:$0xff]
        %v601 = vld [vmem:[%s1 + $0x50] sm:$0xff]
        %v602 = vld [vmem:[%s1 + $0x58] sm:$0xff]
        %v603 = vpack.c.bf16 %v547, %v546
        %v604 = vpack.c.bf16 %v549, %v548
        %v605 = vpack.c.bf16 %v551, %v550
        %v606 = vpack.c.bf16 %v553, %v552
        %v607 = vpack.c.bf16 %v555, %v554
        %v608 = vpack.c.bf16 %v557, %v556
        %v609 = vpack.c.bf16 %v559, %v558
        %v610 = vpack.c.bf16 %v561, %v560
        %v611 = vpack.c.bf16 %v563, %v562
        %v612 = vpack.c.bf16 %v565, %v564
        %v613 = vpack.c.bf16 %v567, %v566
        %v614 = vpack.c.bf16 %v569, %v568
        %v615 = vpack.c.bf16 %v571, %v570
        %v616 = vpack.c.bf16 %v573, %v572
        %s617 = scalar_lea.vmem %s1, 96
        %v618 = vld [vmem:[%s617] sm:$0xff]
        %v619 = vld [vmem:[%s617 + $0x8] sm:$0xff]
        %v620 = vld [vmem:[%s617 + $0x10] sm:$0xff]
        %v621 = vld [vmem:[%s617 + $0x18] sm:$0xff]
        %v622 = vld [vmem:[%s617 + $0x20] sm:$0xff]
        %v623 = vld [vmem:[%s617 + $0x28] sm:$0xff]
        %v624 = vld [vmem:[%s617 + $0x30] sm:$0xff]
        %v625 = vld [vmem:[%s617 + $0x38] sm:$0xff]
        %v626 = vld [vmem:[%s617 + $0x40] sm:$0xff]
        %v627 = vld [vmem:[%s617 + $0x48] sm:$0xff]
        %v628 = vld [vmem:[%s617 + $0x50] sm:$0xff]
        %v629 = vld [vmem:[%s617 + $0x58] sm:$0xff]
        %v642 = vunpack.c.l.b16 %v618
        %v643 = vunpack.c.h.b16 %v618
        %v644 = vunpack.c.l.b16 %v619
        %v645 = vunpack.c.h.b16 %v619
        %v646 = vunpack.c.l.b16 %v620
        %v647 = vunpack.c.h.b16 %v620
        %v648 = vunpack.c.l.b16 %v621
        %v649 = vunpack.c.h.b16 %v621
        %v650 = vunpack.c.l.b16 %v622
        %v651 = vunpack.c.h.b16 %v622
        %v652 = vunpack.c.l.b16 %v623
        %v653 = vunpack.c.h.b16 %v623
        %v654 = vunpack.c.l.b16 %v624
        %v655 = vunpack.c.h.b16 %v624
        %v656 = vunpack.c.l.b16 %v625
        %v657 = vunpack.c.h.b16 %v625
        %v658 = vunpack.c.l.b16 %v626
        %v659 = vunpack.c.h.b16 %v626
        %v660 = vunpack.c.l.b16 %v627
        %v661 = vunpack.c.h.b16 %v627
        %v662 = vunpack.c.l.b16 %v628
        %v663 = vunpack.c.h.b16 %v628
        %v664 = vunpack.c.l.b16 %v629
        %v665 = vunpack.c.h.b16 %v629
        %v666 = vpack.c.b16 %v644, %v642
        %v667 = vpack.c.b16 %v645, %v643
        %v668 = vpack.c.b16 %v648, %v646
        %v669 = vpack.c.b16 %v649, %v647
        %v670 = vpack.c.b16 %v652, %v650
        %v671 = vpack.c.b16 %v653, %v651
        %v672 = vpack.c.b16 %v656, %v654
        %v673 = vpack.c.b16 %v657, %v655
        %v674 = vpack.c.b16 %v660, %v658
        %v675 = vpack.c.b16 %v661, %v659
        %v676 = vpack.c.b16 %v664, %v662
        %v677 = vpack.c.b16 %v665, %v663
        %vm690 = vcmask 785408
        %v692 = vsel %vm690, %v603, 0
        %v695 = vsel %vm690, %v604, 0
        %v698 = vsel %vm690, %v605, 0
        %v701 = vsel %vm690, %v606, 0
        %v704 = vsel %vm690, %v607, 0
        %v707 = vsel %vm690, %v608, 0
        %v710 = vsel %vm690, %v609, 0
        %v713 = vsel %vm690, %v610, 0
        %v716 = vsel %vm690, %v611, 0
        %v719 = vsel %vm690, %v612, 0
        %v722 = vsel %vm690, %v613, 0
        %v725 = vsel %vm690, %v614, 0
        %v728 = vsel %vm690, %v615, 0
        %v731 = vsel %vm690, %v616, 0
        %733 = vmatpush.bf16.msra.mxu0 0
        %734 = vmatpush.bf16.msra.mxu0 0
        %735 = vmatpush.bf16.msra.mxu0 %v676
        %736 = vmatpush.bf16.msra.mxu0 %v674
        %737 = vmatpush.bf16.msra.mxu0 %v672
        %738 = vmatpush.bf16.msra.mxu0 %v670
        %739 = vmatpush.bf16.msra.mxu0 %v668
        %740 = vmatpush.bf16.msra.mxu0 %v666
        %741 = vmatmul.bf16.gmra.mxu0 %v692
        %v742 = vpop.f32.mrf.mxu0
        %v743 = vadd.f32 0.0, %v742
        %v744 = vpop.f32.mrf.mxu0
        %v745 = vadd.f32 0.0, %v744
        %746 = vmatmul.bf16.gmra.mxu0 %v695
        %v747 = vpop.f32.mrf.mxu0
        %v748 = vadd.f32 0.0, %v747
        %v749 = vpop.f32.mrf.mxu0
        %v750 = vadd.f32 0.0, %v749
        %751 = vmatmul.bf16.gmra.mxu0 %v698
        %v752 = vpop.f32.mrf.mxu0
        %v753 = vadd.f32 0.0, %v752
        %v754 = vpop.f32.mrf.mxu0
        %v755 = vadd.f32 0.0, %v754
        %756 = vmatmul.bf16.gmra.mxu0 %v701
        %v757 = vpop.f32.mrf.mxu0
        %v758 = vadd.f32 0.0, %v757
        %v759 = vpop.f32.mrf.mxu0
        %v760 = vadd.f32 0.0, %v759
        %761 = vmatmul.bf16.gmra.mxu0 %v704
        %v762 = vpop.f32.mrf.mxu0
        %v763 = vadd.f32 0.0, %v762
        %v764 = vpop.f32.mrf.mxu0
        %v765 = vadd.f32 0.0, %v764
        %766 = vmatmul.bf16.gmra.mxu0 %v707
        %v767 = vpop.f32.mrf.mxu0
        %v768 = vadd.f32 0.0, %v767
        %v769 = vpop.f32.mrf.mxu0
        %v770 = vadd.f32 0.0, %v769
        %771 = vmatmul.bf16.gmra.mxu0 %v710
        %v772 = vpop.f32.mrf.mxu0
        %v773 = vadd.f32 0.0, %v772
        %v774 = vpop.f32.mrf.mxu0
        %v775 = vadd.f32 0.0, %v774
        %776 = vmatmul.bf16.gmra.mxu0 %v713
        %v777 = vpop.f32.mrf.mxu0
        %v778 = vadd.f32 0.0, %v777
        %v779 = vpop.f32.mrf.mxu0
        %v780 = vadd.f32 0.0, %v779
        %781 = vmatmul.bf16.gmra.mxu0 %v716
        %v782 = vpop.f32.mrf.mxu0
        %v783 = vadd.f32 0.0, %v782
        %v784 = vpop.f32.mrf.mxu0
        %v785 = vadd.f32 0.0, %v784
        %786 = vmatmul.bf16.gmra.mxu0 %v719
        %v787 = vpop.f32.mrf.mxu0
        %v788 = vadd.f32 0.0, %v787
        %v789 = vpop.f32.mrf.mxu0
        %v790 = vadd.f32 0.0, %v789
        %791 = vmatmul.bf16.gmra.mxu0 %v722
        %v792 = vpop.f32.mrf.mxu0
        %v793 = vadd.f32 0.0, %v792
        %v794 = vpop.f32.mrf.mxu0
        %v795 = vadd.f32 0.0, %v794
        %796 = vmatmul.bf16.gmra.mxu0 %v725
        %v797 = vpop.f32.mrf.mxu0
        %v798 = vadd.f32 0.0, %v797
        %v799 = vpop.f32.mrf.mxu0
        %v800 = vadd.f32 0.0, %v799
        %801 = vmatmul.bf16.gmra.mxu0 %v728
        %v802 = vpop.f32.mrf.mxu0
        %v803 = vadd.f32 0.0, %v802
        %v804 = vpop.f32.mrf.mxu0
        %v805 = vadd.f32 0.0, %v804
        %806 = vmatmul.bf16.gmra.mxu0 %v731
        %v807 = vpop.f32.mrf.mxu0
        %v808 = vadd.f32 0.0, %v807
        %v809 = vpop.f32.mrf.mxu0
        %v810 = vadd.f32 0.0, %v809
        %811 = vdwg.mxu0
        %812 = vmatpush.bf16.msra.mxu0 0
        %813 = vmatpush.bf16.msra.mxu0 0
        %814 = vmatpush.bf16.msra.mxu0 %v677
        %815 = vmatpush.bf16.msra.mxu0 %v675
        %816 = vmatpush.bf16.msra.mxu0 %v673
        %817 = vmatpush.bf16.msra.mxu0 %v671
        %818 = vmatpush.bf16.msra.mxu0 %v669
        %819 = vmatpush.bf16.msra.mxu0 %v667
        %820 = vmatmul.bf16.gmra.mxu0 %v692
        %v821 = vpop.f32.mrf.mxu0
        %v822 = vadd.f32 0.0, %v821
        %v823 = vpop.f32.mrf.mxu0
        %v824 = vadd.f32 0.0, %v823
        %825 = vmatmul.bf16.gmra.mxu0 %v695
        %v826 = vpop.f32.mrf.mxu0
        %v827 = vadd.f32 0.0, %v826
        %v828 = vpop.f32.mrf.mxu0
        %v829 = vadd.f32 0.0, %v828
        %830 = vmatmul.bf16.gmra.mxu0 %v698
        %v831 = vpop.f32.mrf.mxu0
        %v832 = vadd.f32 0.0, %v831
        %v833 = vpop.f32.mrf.mxu0
        %v834 = vadd.f32 0.0, %v833
        %835 = vmatmul.bf16.gmra.mxu0 %v701
        %v836 = vpop.f32.mrf.mxu0
        %v837 = vadd.f32 0.0, %v836
        %v838 = vpop.f32.mrf.mxu0
        %v839 = vadd.f32 0.0, %v838
        %840 = vmatmul.bf16.gmra.mxu0 %v704
        %v841 = vpop.f32.mrf.mxu0
        %v842 = vadd.f32 0.0, %v841
        %v843 = vpop.f32.mrf.mxu0
        %v844 = vadd.f32 0.0, %v843
        %845 = vmatmul.bf16.gmra.mxu0 %v707
        %v846 = vpop.f32.mrf.mxu0
        %v847 = vadd.f32 0.0, %v846
        %v848 = vpop.f32.mrf.mxu0
        %v849 = vadd.f32 0.0, %v848
        %850 = vmatmul.bf16.gmra.mxu0 %v710
        %v851 = vpop.f32.mrf.mxu0
        %v852 = vadd.f32 0.0, %v851
        %v853 = vpop.f32.mrf.mxu0
        %v854 = vadd.f32 0.0, %v853
        %855 = vmatmul.bf16.gmra.mxu0 %v713
        %v856 = vpop.f32.mrf.mxu0
        %v857 = vadd.f32 0.0, %v856
        %v858 = vpop.f32.mrf.mxu0
        %v859 = vadd.f32 0.0, %v858
        %860 = vmatmul.bf16.gmra.mxu0 %v716
        %v861 = vpop.f32.mrf.mxu0
        %v862 = vadd.f32 0.0, %v861
        %v863 = vpop.f32.mrf.mxu0
        %v864 = vadd.f32 0.0, %v863
        %865 = vmatmul.bf16.gmra.mxu0 %v719
        %v866 = vpop.f32.mrf.mxu0
        %v867 = vadd.f32 0.0, %v866
        %v868 = vpop.f32.mrf.mxu0
        %v869 = vadd.f32 0.0, %v868
        %870 = vmatmul.bf16.gmra.mxu0 %v722
        %v871 = vpop.f32.mrf.mxu0
        %v872 = vadd.f32 0.0, %v871
        %v873 = vpop.f32.mrf.mxu0
        %v874 = vadd.f32 0.0, %v873
        %875 = vmatmul.bf16.gmra.mxu0 %v725
        %v876 = vpop.f32.mrf.mxu0
        %v877 = vadd.f32 0.0, %v876
        %v878 = vpop.f32.mrf.mxu0
        %v879 = vadd.f32 0.0, %v878
        %880 = vmatmul.bf16.gmra.mxu0 %v728
        %v881 = vpop.f32.mrf.mxu0
        %v882 = vadd.f32 0.0, %v881
        %v883 = vpop.f32.mrf.mxu0
        %v884 = vadd.f32 0.0, %v883
        %885 = vmatmul.bf16.gmra.mxu0 %v731
        %v886 = vpop.f32.mrf.mxu0
        %v887 = vadd.f32 0.0, %v886
        %v888 = vpop.f32.mrf.mxu0
        %v889 = vadd.f32 0.0, %v888
        %890 = vdwg.mxu0
        %v903 = vunpack.c.l.b16 %v591
        %v904 = vunpack.c.h.b16 %v591
        %v905 = vunpack.c.l.b16 %v592
        %v906 = vunpack.c.h.b16 %v592
        %v907 = vunpack.c.l.b16 %v593
        %v908 = vunpack.c.h.b16 %v593
        %v909 = vunpack.c.l.b16 %v594
        %v910 = vunpack.c.h.b16 %v594
        %v911 = vunpack.c.l.b16 %v595
        %v912 = vunpack.c.h.b16 %v595
        %v913 = vunpack.c.l.b16 %v596
        %v914 = vunpack.c.h.b16 %v596
        %v915 = vunpack.c.l.b16 %v597
        %v916 = vunpack.c.h.b16 %v597
        %v917 = vunpack.c.l.b16 %v598
        %v918 = vunpack.c.h.b16 %v598
        %v919 = vunpack.c.l.b16 %v599
        %v920 = vunpack.c.h.b16 %v599
        %v921 = vunpack.c.l.b16 %v600
        %v922 = vunpack.c.h.b16 %v600
        %v923 = vunpack.c.l.b16 %v601
        %v924 = vunpack.c.h.b16 %v601
        %v925 = vunpack.c.l.b16 %v602
        %v926 = vunpack.c.h.b16 %v602
        %v927 = vpack.c.b16 %v905, %v903
        %v928 = vpack.c.b16 %v906, %v904
        %v929 = vpack.c.b16 %v909, %v907
        %v930 = vpack.c.b16 %v910, %v908
        %v931 = vpack.c.b16 %v913, %v911
        %v932 = vpack.c.b16 %v914, %v912
        %v933 = vpack.c.b16 %v917, %v915
        %v934 = vpack.c.b16 %v918, %v916
        %v935 = vpack.c.b16 %v921, %v919
        %v936 = vpack.c.b16 %v922, %v920
        %v937 = vpack.c.b16 %v925, %v923
        %v938 = vpack.c.b16 %v926, %v924
        %v952 = vsel %vm690, %v577, 0
        %v955 = vsel %vm690, %v578, 0
        %v958 = vsel %vm690, %v579, 0
        %v961 = vsel %vm690, %v580, 0
        %v964 = vsel %vm690, %v581, 0
        %v967 = vsel %vm690, %v582, 0
        %v970 = vsel %vm690, %v583, 0
        %v973 = vsel %vm690, %v584, 0
        %v976 = vsel %vm690, %v585, 0
        %v979 = vsel %vm690, %v586, 0
        %v982 = vsel %vm690, %v587, 0
        %v985 = vsel %vm690, %v588, 0
        %v988 = vsel %vm690, %v589, 0
        %v991 = vsel %vm690, %v590, 0
        %993 = vmatpush.bf16.msra.mxu0 0
        %994 = vmatpush.bf16.msra.mxu0 0
        %995 = vmatpush.bf16.msra.mxu0 %v937
        %996 = vmatpush.bf16.msra.mxu0 %v935
        %997 = vmatpush.bf16.msra.mxu0 %v933
        %998 = vmatpush.bf16.msra.mxu0 %v931
        %999 = vmatpush.bf16.msra.mxu0 %v929
        %1000 = vmatpush.bf16.msra.mxu0 %v927
        %1001 = vmatmul.bf16.gmra.mxu0 %v952
        %v1002 = vpop.f32.mrf.mxu0
        %v1003 = vadd.f32 %v743, %v1002
        %v1004 = vpop.f32.mrf.mxu0
        %v1005 = vadd.f32 %v745, %v1004
        %1006 = vmatmul.bf16.gmra.mxu0 %v955
        %v1007 = vpop.f32.mrf.mxu0
        %v1008 = vadd.f32 %v748, %v1007
        %v1009 = vpop.f32.mrf.mxu0
        %v1010 = vadd.f32 %v750, %v1009
        %1011 = vmatmul.bf16.gmra.mxu0 %v958
        %v1012 = vpop.f32.mrf.mxu0
        %v1013 = vadd.f32 %v753, %v1012
        %v1014 = vpop.f32.mrf.mxu0
        %v1015 = vadd.f32 %v755, %v1014
        %1016 = vmatmul.bf16.gmra.mxu0 %v961
        %v1017 = vpop.f32.mrf.mxu0
        %v1018 = vadd.f32 %v758, %v1017
        %v1019 = vpop.f32.mrf.mxu0
        %v1020 = vadd.f32 %v760, %v1019
        %1021 = vmatmul.bf16.gmra.mxu0 %v964
        %v1022 = vpop.f32.mrf.mxu0
        %v1023 = vadd.f32 %v763, %v1022
        %v1024 = vpop.f32.mrf.mxu0
        %v1025 = vadd.f32 %v765, %v1024
        %1026 = vmatmul.bf16.gmra.mxu0 %v967
        %v1027 = vpop.f32.mrf.mxu0
        %v1028 = vadd.f32 %v768, %v1027
        %v1029 = vpop.f32.mrf.mxu0
        %v1030 = vadd.f32 %v770, %v1029
        %1031 = vmatmul.bf16.gmra.mxu0 %v970
        %v1032 = vpop.f32.mrf.mxu0
        %v1033 = vadd.f32 %v773, %v1032
        %v1034 = vpop.f32.mrf.mxu0
        %v1035 = vadd.f32 %v775, %v1034
        %1036 = vmatmul.bf16.gmra.mxu0 %v973
        %v1037 = vpop.f32.mrf.mxu0
        %v1038 = vadd.f32 %v778, %v1037
        %v1039 = vpop.f32.mrf.mxu0
        %v1040 = vadd.f32 %v780, %v1039
        %1041 = vmatmul.bf16.gmra.mxu0 %v976
        %v1042 = vpop.f32.mrf.mxu0
        %v1043 = vadd.f32 %v783, %v1042
        %v1044 = vpop.f32.mrf.mxu0
        %v1045 = vadd.f32 %v785, %v1044
        %1046 = vmatmul.bf16.gmra.mxu0 %v979
        %v1047 = vpop.f32.mrf.mxu0
        %v1048 = vadd.f32 %v788, %v1047
        %v1049 = vpop.f32.mrf.mxu0
        %v1050 = vadd.f32 %v790, %v1049
        %1051 = vmatmul.bf16.gmra.mxu0 %v982
        %v1052 = vpop.f32.mrf.mxu0
        %v1053 = vadd.f32 %v793, %v1052
        %v1054 = vpop.f32.mrf.mxu0
        %v1055 = vadd.f32 %v795, %v1054
        %1056 = vmatmul.bf16.gmra.mxu0 %v985
        %v1057 = vpop.f32.mrf.mxu0
        %v1058 = vadd.f32 %v798, %v1057
        %v1059 = vpop.f32.mrf.mxu0
        %v1060 = vadd.f32 %v800, %v1059
        %1061 = vmatmul.bf16.gmra.mxu0 %v988
        %v1062 = vpop.f32.mrf.mxu0
        %v1063 = vadd.f32 %v803, %v1062
        %v1064 = vpop.f32.mrf.mxu0
        %v1065 = vadd.f32 %v805, %v1064
        %1066 = vmatmul.bf16.gmra.mxu0 %v991
        %v1067 = vpop.f32.mrf.mxu0
        %v1068 = vadd.f32 %v808, %v1067
        %v1069 = vpop.f32.mrf.mxu0
        %v1070 = vadd.f32 %v810, %v1069
        %1071 = vdwg.mxu0
        %1072 = vmatpush.bf16.msra.mxu0 0
        %1073 = vmatpush.bf16.msra.mxu0 0
        %1074 = vmatpush.bf16.msra.mxu0 %v938
        %1075 = vmatpush.bf16.msra.mxu0 %v936
        %1076 = vmatpush.bf16.msra.mxu0 %v934
        %1077 = vmatpush.bf16.msra.mxu0 %v932
        %1078 = vmatpush.bf16.msra.mxu0 %v930
        %1079 = vmatpush.bf16.msra.mxu0 %v928
        %1080 = vmatmul.bf16.gmra.mxu0 %v952
        %v1081 = vpop.f32.mrf.mxu0
        %v1082 = vadd.f32 %v822, %v1081
        %v1083 = vpop.f32.mrf.mxu0
        %v1084 = vadd.f32 %v824, %v1083
        %1085 = vmatmul.bf16.gmra.mxu0 %v955
        %v1086 = vpop.f32.mrf.mxu0
        %v1087 = vadd.f32 %v827, %v1086
        %v1088 = vpop.f32.mrf.mxu0
        %v1089 = vadd.f32 %v829, %v1088
        %1090 = vmatmul.bf16.gmra.mxu0 %v958
        %v1091 = vpop.f32.mrf.mxu0
        %v1092 = vadd.f32 %v832, %v1091
        %v1093 = vpop.f32.mrf.mxu0
        %v1094 = vadd.f32 %v834, %v1093
        %1095 = vmatmul.bf16.gmra.mxu0 %v961
        %v1096 = vpop.f32.mrf.mxu0
        %v1097 = vadd.f32 %v837, %v1096
        %v1098 = vpop.f32.mrf.mxu0
        %v1099 = vadd.f32 %v839, %v1098
        %1100 = vmatmul.bf16.gmra.mxu0 %v964
        %v1101 = vpop.f32.mrf.mxu0
        %v1102 = vadd.f32 %v842, %v1101
        %v1103 = vpop.f32.mrf.mxu0
        %v1104 = vadd.f32 %v844, %v1103
        %1105 = vmatmul.bf16.gmra.mxu0 %v967
        %v1106 = vpop.f32.mrf.mxu0
        %v1107 = vadd.f32 %v847, %v1106
        %v1108 = vpop.f32.mrf.mxu0
        %v1109 = vadd.f32 %v849, %v1108
        %1110 = vmatmul.bf16.gmra.mxu0 %v970
        %v1111 = vpop.f32.mrf.mxu0
        %v1112 = vadd.f32 %v852, %v1111
        %v1113 = vpop.f32.mrf.mxu0
        %v1114 = vadd.f32 %v854, %v1113
        %1115 = vmatmul.bf16.gmra.mxu0 %v973
        %v1116 = vpop.f32.mrf.mxu0
        %v1117 = vadd.f32 %v857, %v1116
        %v1118 = vpop.f32.mrf.mxu0
        %v1119 = vadd.f32 %v859, %v1118
        %1120 = vmatmul.bf16.gmra.mxu0 %v976
        %v1121 = vpop.f32.mrf.mxu0
        %v1122 = vadd.f32 %v862, %v1121
        %v1123 = vpop.f32.mrf.mxu0
        %v1124 = vadd.f32 %v864, %v1123
        %1125 = vmatmul.bf16.gmra.mxu0 %v979
        %v1126 = vpop.f32.mrf.mxu0
        %v1127 = vadd.f32 %v867, %v1126
        %v1128 = vpop.f32.mrf.mxu0
        %v1129 = vadd.f32 %v869, %v1128
        %1130 = vmatmul.bf16.gmra.mxu0 %v982
        %v1131 = vpop.f32.mrf.mxu0
        %v1132 = vadd.f32 %v872, %v1131
        %v1133 = vpop.f32.mrf.mxu0
        %v1134 = vadd.f32 %v874, %v1133
        %1135 = vmatmul.bf16.gmra.mxu0 %v985
        %v1136 = vpop.f32.mrf.mxu0
        %v1137 = vadd.f32 %v877, %v1136
        %v1138 = vpop.f32.mrf.mxu0
        %v1139 = vadd.f32 %v879, %v1138
        %1140 = vmatmul.bf16.gmra.mxu0 %v988
        %v1141 = vpop.f32.mrf.mxu0
        %v1142 = vadd.f32 %v882, %v1141
        %v1143 = vpop.f32.mrf.mxu0
        %v1144 = vadd.f32 %v884, %v1143
        %1145 = vmatmul.bf16.gmra.mxu0 %v991
        %v1146 = vpop.f32.mrf.mxu0
        %v1147 = vadd.f32 %v887, %v1146
        %v1148 = vpop.f32.mrf.mxu0
        %v1149 = vadd.f32 %v889, %v1148
        %1150 = vdwg.mxu0
        %v1151 = vpack.c.bf16 %v574, %v573
        %s1152 = scalar_lea.vmem %s1, 192
        %v1153 = vld [vmem:[%s1152] sm:$0xff]
        %v1154 = vld [vmem:[%s1152 + $0x8] sm:$0xff]
        %v1155 = vld [vmem:[%s1152 + $0x10] sm:$0xff]
        %v1156 = vld [vmem:[%s1152 + $0x18] sm:$0xff]
        %v1157 = vld [vmem:[%s1152 + $0x20] sm:$0xff]
        %v1158 = vld [vmem:[%s1152 + $0x28] sm:$0xff]
        %v1159 = vld [vmem:[%s1152 + $0x30] sm:$0xff]
        %v1160 = vld [vmem:[%s1152 + $0x38] sm:$0xff]
        %v1161 = vld [vmem:[%s1152 + $0x40] sm:$0xff]
        %v1162 = vld [vmem:[%s1152 + $0x48] sm:$0xff]
        %v1163 = vld [vmem:[%s1152 + $0x50] sm:$0xff]
        %v1164 = vld [vmem:[%s1152 + $0x58] sm:$0xff]
        %v1177 = vunpack.c.l.b16 %v1153
        %v1178 = vunpack.c.h.b16 %v1153
        %v1179 = vunpack.c.l.b16 %v1154
        %v1180 = vunpack.c.h.b16 %v1154
        %v1181 = vunpack.c.l.b16 %v1155
        %v1182 = vunpack.c.h.b16 %v1155
        %v1183 = vunpack.c.l.b16 %v1156
        %v1184 = vunpack.c.h.b16 %v1156
        %v1185 = vunpack.c.l.b16 %v1157
        %v1186 = vunpack.c.h.b16 %v1157
        %v1187 = vunpack.c.l.b16 %v1158
        %v1188 = vunpack.c.h.b16 %v1158
        %v1189 = vunpack.c.l.b16 %v1159
        %v1190 = vunpack.c.h.b16 %v1159
        %v1191 = vunpack.c.l.b16 %v1160
        %v1192 = vunpack.c.h.b16 %v1160
        %v1193 = vunpack.c.l.b16 %v1161
        %v1194 = vunpack.c.h.b16 %v1161
        %v1195 = vunpack.c.l.b16 %v1162
        %v1196 = vunpack.c.h.b16 %v1162
        %v1197 = vunpack.c.l.b16 %v1163
        %v1198 = vunpack.c.h.b16 %v1163
        %v1199 = vunpack.c.l.b16 %v1164
        %v1200 = vunpack.c.h.b16 %v1164
        %v1201 = vpack.c.b16 %v1179, %v1177
        %v1202 = vpack.c.b16 %v1180, %v1178
        %v1203 = vpack.c.b16 %v1183, %v1181
        %v1204 = vpack.c.b16 %v1184, %v1182
        %v1205 = vpack.c.b16 %v1187, %v1185
        %v1206 = vpack.c.b16 %v1188, %v1186
        %v1207 = vpack.c.b16 %v1191, %v1189
        %v1208 = vpack.c.b16 %v1192, %v1190
        %v1209 = vpack.c.b16 %v1195, %v1193
        %v1210 = vpack.c.b16 %v1196, %v1194
        %v1211 = vpack.c.b16 %v1199, %v1197
        %v1212 = vpack.c.b16 %v1200, %v1198
        %v1226 = vsel %vm690, %v1151, 0
        %1228 = vmatpush.bf16.msra.mxu0 0
        %1229 = vmatpush.bf16.msra.mxu0 0
        %1230 = vmatpush.bf16.msra.mxu0 %v1211
        %1231 = vmatpush.bf16.msra.mxu0 %v1209
        %1232 = vmatpush.bf16.msra.mxu0 %v1207
        %1233 = vmatpush.bf16.msra.mxu0 %v1205
        %1234 = vmatpush.bf16.msra.mxu0 %v1203
        %1235 = vmatpush.bf16.msra.mxu0 %v1201
        %1236 = vmatmul.bf16.gmra.mxu0 %v955
        %v1237 = vpop.f32.mrf.mxu0
        %v1238 = vadd.f32 0.0, %v1237
        %v1239 = vpop.f32.mrf.mxu0
        %v1240 = vadd.f32 0.0, %v1239
        %1241 = vmatmul.bf16.gmra.mxu0 %v958
        %v1242 = vpop.f32.mrf.mxu0
        %v1243 = vadd.f32 0.0, %v1242
        %v1244 = vpop.f32.mrf.mxu0
        %v1245 = vadd.f32 0.0, %v1244
        %1246 = vmatmul.bf16.gmra.mxu0 %v961
        %v1247 = vpop.f32.mrf.mxu0
        %v1248 = vadd.f32 0.0, %v1247
        %v1249 = vpop.f32.mrf.mxu0
        %v1250 = vadd.f32 0.0, %v1249
        %1251 = vmatmul.bf16.gmra.mxu0 %v964
        %v1252 = vpop.f32.mrf.mxu0
        %v1253 = vadd.f32 0.0, %v1252
        %v1254 = vpop.f32.mrf.mxu0
        %v1255 = vadd.f32 0.0, %v1254
        %1256 = vmatmul.bf16.gmra.mxu0 %v967
        %v1257 = vpop.f32.mrf.mxu0
        %v1258 = vadd.f32 0.0, %v1257
        %v1259 = vpop.f32.mrf.mxu0
        %v1260 = vadd.f32 0.0, %v1259
        %1261 = vmatmul.bf16.gmra.mxu0 %v970
        %v1262 = vpop.f32.mrf.mxu0
        %v1263 = vadd.f32 0.0, %v1262
        %v1264 = vpop.f32.mrf.mxu0
        %v1265 = vadd.f32 0.0, %v1264
        %1266 = vmatmul.bf16.gmra.mxu0 %v973
        %v1267 = vpop.f32.mrf.mxu0
        %v1268 = vadd.f32 0.0, %v1267
        %v1269 = vpop.f32.mrf.mxu0
        %v1270 = vadd.f32 0.0, %v1269
        %1271 = vmatmul.bf16.gmra.mxu0 %v976
        %v1272 = vpop.f32.mrf.mxu0
        %v1273 = vadd.f32 0.0, %v1272
        %v1274 = vpop.f32.mrf.mxu0
        %v1275 = vadd.f32 0.0, %v1274
        %1276 = vmatmul.bf16.gmra.mxu0 %v979
        %v1277 = vpop.f32.mrf.mxu0
        %v1278 = vadd.f32 0.0, %v1277
        %v1279 = vpop.f32.mrf.mxu0
        %v1280 = vadd.f32 0.0, %v1279
        %1281 = vmatmul.bf16.gmra.mxu0 %v982
        %v1282 = vpop.f32.mrf.mxu0
        %v1283 = vadd.f32 0.0, %v1282
        %v1284 = vpop.f32.mrf.mxu0
        %v1285 = vadd.f32 0.0, %v1284
        %1286 = vmatmul.bf16.gmra.mxu0 %v985
        %v1287 = vpop.f32.mrf.mxu0
        %v1288 = vadd.f32 0.0, %v1287
        %v1289 = vpop.f32.mrf.mxu0
        %v1290 = vadd.f32 0.0, %v1289
        %1291 = vmatmul.bf16.gmra.mxu0 %v988
        %v1292 = vpop.f32.mrf.mxu0
        %v1293 = vadd.f32 0.0, %v1292
        %v1294 = vpop.f32.mrf.mxu0
        %v1295 = vadd.f32 0.0, %v1294
        %1296 = vmatmul.bf16.gmra.mxu0 %v991
        %v1297 = vpop.f32.mrf.mxu0
        %v1298 = vadd.f32 0.0, %v1297
        %v1299 = vpop.f32.mrf.mxu0
        %v1300 = vadd.f32 0.0, %v1299
        %1301 = vmatmul.bf16.gmra.mxu0 %v1226
        %v1302 = vpop.f32.mrf.mxu0
        %v1303 = vadd.f32 0.0, %v1302
        %v1304 = vpop.f32.mrf.mxu0
        %v1305 = vadd.f32 0.0, %v1304
        %1306 = vdwg.mxu0
        %1307 = vmatpush.bf16.msra.mxu0 0
        %1308 = vmatpush.bf16.msra.mxu0 0
        %1309 = vmatpush.bf16.msra.mxu0 %v1212
        %1310 = vmatpush.bf16.msra.mxu0 %v1210
        %1311 = vmatpush.bf16.msra.mxu0 %v1208
        %1312 = vmatpush.bf16.msra.mxu0 %v1206
        %1313 = vmatpush.bf16.msra.mxu0 %v1204
        %1314 = vmatpush.bf16.msra.mxu0 %v1202
        %1315 = vmatmul.bf16.gmra.mxu0 %v955
        %v1316 = vpop.f32.mrf.mxu0
        %v1317 = vadd.f32 0.0, %v1316
        %v1318 = vpop.f32.mrf.mxu0
        %v1319 = vadd.f32 0.0, %v1318
        %1320 = vmatmul.bf16.gmra.mxu0 %v958
        %v1321 = vpop.f32.mrf.mxu0
        %v1322 = vadd.f32 0.0, %v1321
        %v1323 = vpop.f32.mrf.mxu0
        %v1324 = vadd.f32 0.0, %v1323
        %1325 = vmatmul.bf16.gmra.mxu0 %v961
        %v1326 = vpop.f32.mrf.mxu0
        %v1327 = vadd.f32 0.0, %v1326
        %v1328 = vpop.f32.mrf.mxu0
        %v1329 = vadd.f32 0.0, %v1328
        %1330 = vmatmul.bf16.gmra.mxu0 %v964
        %v1331 = vpop.f32.mrf.mxu0
        %v1332 = vadd.f32 0.0, %v1331
        %v1333 = vpop.f32.mrf.mxu0
        %v1334 = vadd.f32 0.0, %v1333
        %1335 = vmatmul.bf16.gmra.mxu0 %v967
        %v1336 = vpop.f32.mrf.mxu0
        %v1337 = vadd.f32 0.0, %v1336
        %v1338 = vpop.f32.mrf.mxu0
        %v1339 = vadd.f32 0.0, %v1338
        %1340 = vmatmul.bf16.gmra.mxu0 %v970
        %v1341 = vpop.f32.mrf.mxu0
        %v1342 = vadd.f32 0.0, %v1341
        %v1343 = vpop.f32.mrf.mxu0
        %v1344 = vadd.f32 0.0, %v1343
        %1345 = vmatmul.bf16.gmra.mxu0 %v973
        %v1346 = vpop.f32.mrf.mxu0
        %v1347 = vadd.f32 0.0, %v1346
        %v1348 = vpop.f32.mrf.mxu0
        %v1349 = vadd.f32 0.0, %v1348
        %1350 = vmatmul.bf16.gmra.mxu0 %v976
        %v1351 = vpop.f32.mrf.mxu0
        %v1352 = vadd.f32 0.0, %v1351
        %v1353 = vpop.f32.mrf.mxu0
        %v1354 = vadd.f32 0.0, %v1353
        %1355 = vmatmul.bf16.gmra.mxu0 %v979
        %v1356 = vpop.f32.mrf.mxu0
        %v1357 = vadd.f32 0.0, %v1356
        %v1358 = vpop.f32.mrf.mxu0
        %v1359 = vadd.f32 0.0, %v1358
        %1360 = vmatmul.bf16.gmra.mxu0 %v982
        %v1361 = vpop.f32.mrf.mxu0
        %v1362 = vadd.f32 0.0, %v1361
        %v1363 = vpop.f32.mrf.mxu0
        %v1364 = vadd.f32 0.0, %v1363
        %1365 = vmatmul.bf16.gmra.mxu0 %v985
        %v1366 = vpop.f32.mrf.mxu0
        %v1367 = vadd.f32 0.0, %v1366
        %v1368 = vpop.f32.mrf.mxu0
        %v1369 = vadd.f32 0.0, %v1368
        %1370 = vmatmul.bf16.gmra.mxu0 %v988
        %v1371 = vpop.f32.mrf.mxu0
        %v1372 = vadd.f32 0.0, %v1371
        %v1373 = vpop.f32.mrf.mxu0
        %v1374 = vadd.f32 0.0, %v1373
        %1375 = vmatmul.bf16.gmra.mxu0 %v991
        %v1376 = vpop.f32.mrf.mxu0
        %v1377 = vadd.f32 0.0, %v1376
        %v1378 = vpop.f32.mrf.mxu0
        %v1379 = vadd.f32 0.0, %v1378
        %1380 = vmatmul.bf16.gmra.mxu0 %v1226
        %v1381 = vpop.f32.mrf.mxu0
        %v1382 = vadd.f32 0.0, %v1381
        %v1383 = vpop.f32.mrf.mxu0
        %v1384 = vadd.f32 0.0, %v1383
        %1385 = vdwg.mxu0
        %v1386 = vadd.f32 %v1003, %v1238
        %v1387 = vadd.f32 %v1082, %v1317
        %v1388 = vadd.f32 %v1005, %v1240
        %v1389 = vadd.f32 %v1084, %v1319
        %v1390 = vadd.f32 %v1008, %v1243
        %v1391 = vadd.f32 %v1087, %v1322
        %v1392 = vadd.f32 %v1010, %v1245
        %v1393 = vadd.f32 %v1089, %v1324
        %v1394 = vadd.f32 %v1013, %v1248
        %v1395 = vadd.f32 %v1092, %v1327
        %v1396 = vadd.f32 %v1015, %v1250
        %v1397 = vadd.f32 %v1094, %v1329
        %v1398 = vadd.f32 %v1018, %v1253
        %v1399 = vadd.f32 %v1097, %v1332
        %v1400 = vadd.f32 %v1020, %v1255
        %v1401 = vadd.f32 %v1099, %v1334
        %v1402 = vadd.f32 %v1023, %v1258
        %v1403 = vadd.f32 %v1102, %v1337
        %v1404 = vadd.f32 %v1025, %v1260
        %v1405 = vadd.f32 %v1104, %v1339
        %v1406 = vadd.f32 %v1028, %v1263
        %v1407 = vadd.f32 %v1107, %v1342
        %v1408 = vadd.f32 %v1030, %v1265
        %v1409 = vadd.f32 %v1109, %v1344
        %v1410 = vadd.f32 %v1033, %v1268
        %v1411 = vadd.f32 %v1112, %v1347
        %v1412 = vadd.f32 %v1035, %v1270
        %v1413 = vadd.f32 %v1114, %v1349
        %v1414 = vadd.f32 %v1038, %v1273
        %v1415 = vadd.f32 %v1117, %v1352
        %v1416 = vadd.f32 %v1040, %v1275
        %v1417 = vadd.f32 %v1119, %v1354
        %v1418 = vadd.f32 %v1043, %v1278
        %v1419 = vadd.f32 %v1122, %v1357
        %v1420 = vadd.f32 %v1045, %v1280
        %v1421 = vadd.f32 %v1124, %v1359
        %v1422 = vadd.f32 %v1048, %v1283
        %v1423 = vadd.f32 %v1127, %v1362
        %v1424 = vadd.f32 %v1050, %v1285
        %v1425 = vadd.f32 %v1129, %v1364
        %v1426 = vadd.f32 %v1053, %v1288
        %v1427 = vadd.f32 %v1132, %v1367
        %v1428 = vadd.f32 %v1055, %v1290
        %v1429 = vadd.f32 %v1134, %v1369
        %v1430 = vadd.f32 %v1058, %v1293
        %v1431 = vadd.f32 %v1137, %v1372
        %v1432 = vadd.f32 %v1060, %v1295
        %v1433 = vadd.f32 %v1139, %v1374
        %v1434 = vadd.f32 %v1063, %v1298
        %v1435 = vadd.f32 %v1142, %v1377
        %v1436 = vadd.f32 %v1065, %v1300
        %v1437 = vadd.f32 %v1144, %v1379
        %v1438 = vadd.f32 %v1068, %v1303
        %v1439 = vadd.f32 %v1147, %v1382
        %v1440 = vadd.f32 %v1070, %v1305
        %v1441 = vadd.f32 %v1149, %v1384
        %v1442 = vpack.c.bf16 %v575, %v574
        %s1443 = scalar_lea.vmem %s1, 288
        %v1444 = vld [vmem:[%s1443] sm:$0xff]
        %v1445 = vld [vmem:[%s1443 + $0x8] sm:$0xff]
        %v1446 = vld [vmem:[%s1443 + $0x10] sm:$0xff]
        %v1447 = vld [vmem:[%s1443 + $0x18] sm:$0xff]
        %v1448 = vld [vmem:[%s1443 + $0x20] sm:$0xff]
        %v1449 = vld [vmem:[%s1443 + $0x28] sm:$0xff]
        %v1450 = vld [vmem:[%s1443 + $0x30] sm:$0xff]
        %v1451 = vld [vmem:[%s1443 + $0x38] sm:$0xff]
        %v1452 = vld [vmem:[%s1443 + $0x40] sm:$0xff]
        %v1453 = vld [vmem:[%s1443 + $0x48] sm:$0xff]
        %v1454 = vld [vmem:[%s1443 + $0x50] sm:$0xff]
        %v1455 = vld [vmem:[%s1443 + $0x58] sm:$0xff]
        %v1468 = vunpack.c.l.b16 %v1444
        %v1469 = vunpack.c.h.b16 %v1444
        %v1470 = vunpack.c.l.b16 %v1445
        %v1471 = vunpack.c.h.b16 %v1445
        %v1472 = vunpack.c.l.b16 %v1446
        %v1473 = vunpack.c.h.b16 %v1446
        %v1474 = vunpack.c.l.b16 %v1447
        %v1475 = vunpack.c.h.b16 %v1447
        %v1476 = vunpack.c.l.b16 %v1448
        %v1477 = vunpack.c.h.b16 %v1448
        %v1478 = vunpack.c.l.b16 %v1449
        %v1479 = vunpack.c.h.b16 %v1449
        %v1480 = vunpack.c.l.b16 %v1450
        %v1481 = vunpack.c.h.b16 %v1450
        %v1482 = vunpack.c.l.b16 %v1451
        %v1483 = vunpack.c.h.b16 %v1451
        %v1484 = vunpack.c.l.b16 %v1452
        %v1485 = vunpack.c.h.b16 %v1452
        %v1486 = vunpack.c.l.b16 %v1453
        %v1487 = vunpack.c.h.b16 %v1453
        %v1488 = vunpack.c.l.b16 %v1454
        %v1489 = vunpack.c.h.b16 %v1454
        %v1490 = vunpack.c.l.b16 %v1455
        %v1491 = vunpack.c.h.b16 %v1455
        %v1492 = vpack.c.b16 %v1470, %v1468
        %v1493 = vpack.c.b16 %v1471, %v1469
        %v1494 = vpack.c.b16 %v1474, %v1472
        %v1495 = vpack.c.b16 %v1475, %v1473
        %v1496 = vpack.c.b16 %v1478, %v1476
        %v1497 = vpack.c.b16 %v1479, %v1477
        %v1498 = vpack.c.b16 %v1482, %v1480
        %v1499 = vpack.c.b16 %v1483, %v1481
        %v1500 = vpack.c.b16 %v1486, %v1484
        %v1501 = vpack.c.b16 %v1487, %v1485
        %v1502 = vpack.c.b16 %v1490, %v1488
        %v1503 = vpack.c.b16 %v1491, %v1489
        %v1517 = vsel %vm690, %v1442, 0
        %1519 = vmatpush.bf16.msra.mxu0 0
        %1520 = vmatpush.bf16.msra.mxu0 0
        %1521 = vmatpush.bf16.msra.mxu0 %v1502
        %1522 = vmatpush.bf16.msra.mxu0 %v1500
        %1523 = vmatpush.bf16.msra.mxu0 %v1498
        %1524 = vmatpush.bf16.msra.mxu0 %v1496
        %1525 = vmatpush.bf16.msra.mxu0 %v1494
        %1526 = vmatpush.bf16.msra.mxu0 %v1492
        %1527 = vmatmul.bf16.gmra.mxu0 %v695
        %v1528 = vpop.f32.mrf.mxu0
        %v1529 = vadd.f32 0.0, %v1528
        %v1530 = vpop.f32.mrf.mxu0
        %v1531 = vadd.f32 0.0, %v1530
        %1532 = vmatmul.bf16.gmra.mxu0 %v698
        %v1533 = vpop.f32.mrf.mxu0
        %v1534 = vadd.f32 0.0, %v1533
        %v1535 = vpop.f32.mrf.mxu0
        %v1536 = vadd.f32 0.0, %v1535
        %1537 = vmatmul.bf16.gmra.mxu0 %v701
        %v1538 = vpop.f32.mrf.mxu0
        %v1539 = vadd.f32 0.0, %v1538
        %v1540 = vpop.f32.mrf.mxu0
        %v1541 = vadd.f32 0.0, %v1540
        %1542 = vmatmul.bf16.gmra.mxu0 %v704
        %v1543 = vpop.f32.mrf.mxu0
        %v1544 = vadd.f32 0.0, %v1543
        %v1545 = vpop.f32.mrf.mxu0
        %v1546 = vadd.f32 0.0, %v1545
        %1547 = vmatmul.bf16.gmra.mxu0 %v707
        %v1548 = vpop.f32.mrf.mxu0
        %v1549 = vadd.f32 0.0, %v1548
        %v1550 = vpop.f32.mrf.mxu0
        %v1551 = vadd.f32 0.0, %v1550
        %1552 = vmatmul.bf16.gmra.mxu0 %v710
        %v1553 = vpop.f32.mrf.mxu0
        %v1554 = vadd.f32 0.0, %v1553
        %v1555 = vpop.f32.mrf.mxu0
        %v1556 = vadd.f32 0.0, %v1555
        %1557 = vmatmul.bf16.gmra.mxu0 %v713
        %v1558 = vpop.f32.mrf.mxu0
        %v1559 = vadd.f32 0.0, %v1558
        %v1560 = vpop.f32.mrf.mxu0
        %v1561 = vadd.f32 0.0, %v1560
        %1562 = vmatmul.bf16.gmra.mxu0 %v716
        %v1563 = vpop.f32.mrf.mxu0
        %v1564 = vadd.f32 0.0, %v1563
        %v1565 = vpop.f32.mrf.mxu0
        %v1566 = vadd.f32 0.0, %v1565
        %1567 = vmatmul.bf16.gmra.mxu0 %v719
        %v1568 = vpop.f32.mrf.mxu0
        %v1569 = vadd.f32 0.0, %v1568
        %v1570 = vpop.f32.mrf.mxu0
        %v1571 = vadd.f32 0.0, %v1570
        %1572 = vmatmul.bf16.gmra.mxu0 %v722
        %v1573 = vpop.f32.mrf.mxu0
        %v1574 = vadd.f32 0.0, %v1573
        %v1575 = vpop.f32.mrf.mxu0
        %v1576 = vadd.f32 0.0, %v1575
        %1577 = vmatmul.bf16.gmra.mxu0 %v725
        %v1578 = vpop.f32.mrf.mxu0
        %v1579 = vadd.f32 0.0, %v1578
        %v1580 = vpop.f32.mrf.mxu0
        %v1581 = vadd.f32 0.0, %v1580
        %1582 = vmatmul.bf16.gmra.mxu0 %v728
        %v1583 = vpop.f32.mrf.mxu0
        %v1584 = vadd.f32 0.0, %v1583
        %v1585 = vpop.f32.mrf.mxu0
        %v1586 = vadd.f32 0.0, %v1585
        %1587 = vmatmul.bf16.gmra.mxu0 %v731
        %v1588 = vpop.f32.mrf.mxu0
        %v1589 = vadd.f32 0.0, %v1588
        %v1590 = vpop.f32.mrf.mxu0
        %v1591 = vadd.f32 0.0, %v1590
        %1592 = vmatmul.bf16.gmra.mxu0 %v1517
        %v1593 = vpop.f32.mrf.mxu0
        %v1594 = vadd.f32 0.0, %v1593
        %v1595 = vpop.f32.mrf.mxu0
        %v1596 = vadd.f32 0.0, %v1595
        %1597 = vdwg.mxu0
        %1598 = vmatpush.bf16.msra.mxu0 0
        %1599 = vmatpush.bf16.msra.mxu0 0
        %1600 = vmatpush.bf16.msra.mxu0 %v1503
        %1601 = vmatpush.bf16.msra.mxu0 %v1501
        %1602 = vmatpush.bf16.msra.mxu0 %v1499
        %1603 = vmatpush.bf16.msra.mxu0 %v1497
        %1604 = vmatpush.bf16.msra.mxu0 %v1495
        %1605 = vmatpush.bf16.msra.mxu0 %v1493
        %1606 = vmatmul.bf16.gmra.mxu0 %v695
        %v1607 = vpop.f32.mrf.mxu0
        %v1608 = vadd.f32 0.0, %v1607
        %v1609 = vpop.f32.mrf.mxu0
        %v1610 = vadd.f32 0.0, %v1609
        %1611 = vmatmul.bf16.gmra.mxu0 %v698
        %v1612 = vpop.f32.mrf.mxu0
        %v1613 = vadd.f32 0.0, %v1612
        %v1614 = vpop.f32.mrf.mxu0
        %v1615 = vadd.f32 0.0, %v1614
        %1616 = vmatmul.bf16.gmra.mxu0 %v701
        %v1617 = vpop.f32.mrf.mxu0
        %v1618 = vadd.f32 0.0, %v1617
        %v1619 = vpop.f32.mrf.mxu0
        %v1620 = vadd.f32 0.0, %v1619
        %1621 = vmatmul.bf16.gmra.mxu0 %v704
        %v1622 = vpop.f32.mrf.mxu0
        %v1623 = vadd.f32 0.0, %v1622
        %v1624 = vpop.f32.mrf.mxu0
        %v1625 = vadd.f32 0.0, %v1624
        %1626 = vmatmul.bf16.gmra.mxu0 %v707
        %v1627 = vpop.f32.mrf.mxu0
        %v1628 = vadd.f32 0.0, %v1627
        %v1629 = vpop.f32.mrf.mxu0
        %v1630 = vadd.f32 0.0, %v1629
        %1631 = vmatmul.bf16.gmra.mxu0 %v710
        %v1632 = vpop.f32.mrf.mxu0
        %v1633 = vadd.f32 0.0, %v1632
        %v1634 = vpop.f32.mrf.mxu0
        %v1635 = vadd.f32 0.0, %v1634
        %1636 = vmatmul.bf16.gmra.mxu0 %v713
        %v1637 = vpop.f32.mrf.mxu0
        %v1638 = vadd.f32 0.0, %v1637
        %v1639 = vpop.f32.mrf.mxu0
        %v1640 = vadd.f32 0.0, %v1639
        %1641 = vmatmul.bf16.gmra.mxu0 %v716
        %v1642 = vpop.f32.mrf.mxu0
        %v1643 = vadd.f32 0.0, %v1642
        %v1644 = vpop.f32.mrf.mxu0
        %v1645 = vadd.f32 0.0, %v1644
        %1646 = vmatmul.bf16.gmra.mxu0 %v719
        %v1647 = vpop.f32.mrf.mxu0
        %v1648 = vadd.f32 0.0, %v1647
        %v1649 = vpop.f32.mrf.mxu0
        %v1650 = vadd.f32 0.0, %v1649
        %1651 = vmatmul.bf16.gmra.mxu0 %v722
        %v1652 = vpop.f32.mrf.mxu0
        %v1653 = vadd.f32 0.0, %v1652
        %v1654 = vpop.f32.mrf.mxu0
        %v1655 = vadd.f32 0.0, %v1654
        %1656 = vmatmul.bf16.gmra.mxu0 %v725
        %v1657 = vpop.f32.mrf.mxu0
        %v1658 = vadd.f32 0.0, %v1657
        %v1659 = vpop.f32.mrf.mxu0
        %v1660 = vadd.f32 0.0, %v1659
        %1661 = vmatmul.bf16.gmra.mxu0 %v728
        %v1662 = vpop.f32.mrf.mxu0
        %v1663 = vadd.f32 0.0, %v1662
        %v1664 = vpop.f32.mrf.mxu0
        %v1665 = vadd.f32 0.0, %v1664
        %1666 = vmatmul.bf16.gmra.mxu0 %v731
        %v1667 = vpop.f32.mrf.mxu0
        %v1668 = vadd.f32 0.0, %v1667
        %v1669 = vpop.f32.mrf.mxu0
        %v1670 = vadd.f32 0.0, %v1669
        %1671 = vmatmul.bf16.gmra.mxu0 %v1517
        %v1672 = vpop.f32.mrf.mxu0
        %v1673 = vadd.f32 0.0, %v1672
        %v1674 = vpop.f32.mrf.mxu0
        %v1675 = vadd.f32 0.0, %v1674
        %1676 = vdwg.mxu0
        %v1677 = vadd.f32 %v1386, %v1529
        %v1678 = vadd.f32 %v1387, %v1608
        %v1679 = vadd.f32 %v1388, %v1531
        %v1680 = vadd.f32 %v1389, %v1610
        %v1681 = vadd.f32 %v1390, %v1534
        %v1682 = vadd.f32 %v1391, %v1613
        %v1683 = vadd.f32 %v1392, %v1536
        %v1684 = vadd.f32 %v1393, %v1615
        %v1685 = vadd.f32 %v1394, %v1539
        %v1686 = vadd.f32 %v1395, %v1618
        %v1687 = vadd.f32 %v1396, %v1541
        %v1688 = vadd.f32 %v1397, %v1620
        %v1689 = vadd.f32 %v1398, %v1544
        %v1690 = vadd.f32 %v1399, %v1623
        %v1691 = vadd.f32 %v1400, %v1546
        %v1692 = vadd.f32 %v1401, %v1625
        %v1693 = vadd.f32 %v1402, %v1549
        %v1694 = vadd.f32 %v1403, %v1628
        %v1695 = vadd.f32 %v1404, %v1551
        %v1696 = vadd.f32 %v1405, %v1630
        %v1697 = vadd.f32 %v1406, %v1554
        %v1698 = vadd.f32 %v1407, %v1633
        %v1699 = vadd.f32 %v1408, %v1556
        %v1700 = vadd.f32 %v1409, %v1635
        %v1701 = vadd.f32 %v1410, %v1559
        %v1702 = vadd.f32 %v1411, %v1638
        %v1703 = vadd.f32 %v1412, %v1561
        %v1704 = vadd.f32 %v1413, %v1640
        %v1705 = vadd.f32 %v1414, %v1564
        %v1706 = vadd.f32 %v1415, %v1643
        %v1707 = vadd.f32 %v1416, %v1566
        %v1708 = vadd.f32 %v1417, %v1645
        %v1709 = vadd.f32 %v1418, %v1569
        %v1710 = vadd.f32 %v1419, %v1648
        %v1711 = vadd.f32 %v1420, %v1571
        %v1712 = vadd.f32 %v1421, %v1650
        %v1713 = vadd.f32 %v1422, %v1574
        %v1714 = vadd.f32 %v1423, %v1653
        %v1715 = vadd.f32 %v1424, %v1576
        %v1716 = vadd.f32 %v1425, %v1655
        %v1717 = vadd.f32 %v1426, %v1579
        %v1718 = vadd.f32 %v1427, %v1658
        %v1719 = vadd.f32 %v1428, %v1581
        %v1720 = vadd.f32 %v1429, %v1660
        %v1721 = vadd.f32 %v1430, %v1584
        %v1722 = vadd.f32 %v1431, %v1663
        %v1723 = vadd.f32 %v1432, %v1586
        %v1724 = vadd.f32 %v1433, %v1665
        %v1725 = vadd.f32 %v1434, %v1589
        %v1726 = vadd.f32 %v1435, %v1668
        %v1727 = vadd.f32 %v1436, %v1591
        %v1728 = vadd.f32 %v1437, %v1670
        %v1729 = vadd.f32 %v1438, %v1594
        %v1730 = vadd.f32 %v1439, %v1673
        %v1731 = vadd.f32 %v1440, %v1596
        %v1732 = vadd.f32 %v1441, %v1675
        %v1733 = vpack.c.bf16 %v576, %v575
        %s1734 = scalar_lea.vmem %s1, 384
        %v1735 = vld [vmem:[%s1734] sm:$0xff]
        %v1736 = vld [vmem:[%s1734 + $0x8] sm:$0xff]
        %v1737 = vld [vmem:[%s1734 + $0x10] sm:$0xff]
        %v1738 = vld [vmem:[%s1734 + $0x18] sm:$0xff]
        %v1739 = vld [vmem:[%s1734 + $0x20] sm:$0xff]
        %v1740 = vld [vmem:[%s1734 + $0x28] sm:$0xff]
        %v1741 = vld [vmem:[%s1734 + $0x30] sm:$0xff]
        %v1742 = vld [vmem:[%s1734 + $0x38] sm:$0xff]
        %v1743 = vld [vmem:[%s1734 + $0x40] sm:$0xff]
        %v1744 = vld [vmem:[%s1734 + $0x48] sm:$0xff]
        %v1745 = vld [vmem:[%s1734 + $0x50] sm:$0xff]
        %v1746 = vld [vmem:[%s1734 + $0x58] sm:$0xff]
        %v1759 = vunpack.c.l.b16 %v1735
        %v1760 = vunpack.c.h.b16 %v1735
        %v1761 = vunpack.c.l.b16 %v1736
        %v1762 = vunpack.c.h.b16 %v1736
        %v1763 = vunpack.c.l.b16 %v1737
        %v1764 = vunpack.c.h.b16 %v1737
        %v1765 = vunpack.c.l.b16 %v1738
        %v1766 = vunpack.c.h.b16 %v1738
        %v1767 = vunpack.c.l.b16 %v1739
        %v1768 = vunpack.c.h.b16 %v1739
        %v1769 = vunpack.c.l.b16 %v1740
        %v1770 = vunpack.c.h.b16 %v1740
        %v1771 = vunpack.c.l.b16 %v1741
        %v1772 = vunpack.c.h.b16 %v1741
        %v1773 = vunpack.c.l.b16 %v1742
        %v1774 = vunpack.c.h.b16 %v1742
        %v1775 = vunpack.c.l.b16 %v1743
        %v1776 = vunpack.c.h.b16 %v1743
        %v1777 = vunpack.c.l.b16 %v1744
        %v1778 = vunpack.c.h.b16 %v1744
        %v1779 = vunpack.c.l.b16 %v1745
        %v1780 = vunpack.c.h.b16 %v1745
        %v1781 = vunpack.c.l.b16 %v1746
        %v1782 = vunpack.c.h.b16 %v1746
        %v1783 = vpack.c.b16 %v1761, %v1759
        %v1784 = vpack.c.b16 %v1762, %v1760
        %v1785 = vpack.c.b16 %v1765, %v1763
        %v1786 = vpack.c.b16 %v1766, %v1764
        %v1787 = vpack.c.b16 %v1769, %v1767
        %v1788 = vpack.c.b16 %v1770, %v1768
        %v1789 = vpack.c.b16 %v1773, %v1771
        %v1790 = vpack.c.b16 %v1774, %v1772
        %v1791 = vpack.c.b16 %v1777, %v1775
        %v1792 = vpack.c.b16 %v1778, %v1776
        %v1793 = vpack.c.b16 %v1781, %v1779
        %v1794 = vpack.c.b16 %v1782, %v1780
        %v1808 = vsel %vm690, %v1733, 0
        %1810 = vmatpush.bf16.msra.mxu0 0
        %1811 = vmatpush.bf16.msra.mxu0 0
        %1812 = vmatpush.bf16.msra.mxu0 %v1793
        %1813 = vmatpush.bf16.msra.mxu0 %v1791
        %1814 = vmatpush.bf16.msra.mxu0 %v1789
        %1815 = vmatpush.bf16.msra.mxu0 %v1787
        %1816 = vmatpush.bf16.msra.mxu0 %v1785
        %1817 = vmatpush.bf16.msra.mxu0 %v1783
        %1818 = vmatmul.bf16.gmra.mxu0 %v958
        %v1819 = vpop.f32.mrf.mxu0
        %v1820 = vadd.f32 0.0, %v1819
        %v1821 = vpop.f32.mrf.mxu0
        %v1822 = vadd.f32 0.0, %v1821
        %1823 = vmatmul.bf16.gmra.mxu0 %v961
        %v1824 = vpop.f32.mrf.mxu0
        %v1825 = vadd.f32 0.0, %v1824
        %v1826 = vpop.f32.mrf.mxu0
        %v1827 = vadd.f32 0.0, %v1826
        %1828 = vmatmul.bf16.gmra.mxu0 %v964
        %v1829 = vpop.f32.mrf.mxu0
        %v1830 = vadd.f32 0.0, %v1829
        %v1831 = vpop.f32.mrf.mxu0
        %v1832 = vadd.f32 0.0, %v1831
        %1833 = vmatmul.bf16.gmra.mxu0 %v967
        %v1834 = vpop.f32.mrf.mxu0
        %v1835 = vadd.f32 0.0, %v1834
        %v1836 = vpop.f32.mrf.mxu0
        %v1837 = vadd.f32 0.0, %v1836
        %1838 = vmatmul.bf16.gmra.mxu0 %v970
        %v1839 = vpop.f32.mrf.mxu0
        %v1840 = vadd.f32 0.0, %v1839
        %v1841 = vpop.f32.mrf.mxu0
        %v1842 = vadd.f32 0.0, %v1841
        %1843 = vmatmul.bf16.gmra.mxu0 %v973
        %v1844 = vpop.f32.mrf.mxu0
        %v1845 = vadd.f32 0.0, %v1844
        %v1846 = vpop.f32.mrf.mxu0
        %v1847 = vadd.f32 0.0, %v1846
        %1848 = vmatmul.bf16.gmra.mxu0 %v976
        %v1849 = vpop.f32.mrf.mxu0
        %v1850 = vadd.f32 0.0, %v1849
        %v1851 = vpop.f32.mrf.mxu0
        %v1852 = vadd.f32 0.0, %v1851
        %1853 = vmatmul.bf16.gmra.mxu0 %v979
        %v1854 = vpop.f32.mrf.mxu0
        %v1855 = vadd.f32 0.0, %v1854
        %v1856 = vpop.f32.mrf.mxu0
        %v1857 = vadd.f32 0.0, %v1856
        %1858 = vmatmul.bf16.gmra.mxu0 %v982
        %v1859 = vpop.f32.mrf.mxu0
        %v1860 = vadd.f32 0.0, %v1859
        %v1861 = vpop.f32.mrf.mxu0
        %v1862 = vadd.f32 0.0, %v1861
        %1863 = vmatmul.bf16.gmra.mxu0 %v985
        %v1864 = vpop.f32.mrf.mxu0
        %v1865 = vadd.f32 0.0, %v1864
        %v1866 = vpop.f32.mrf.mxu0
        %v1867 = vadd.f32 0.0, %v1866
        %1868 = vmatmul.bf16.gmra.mxu0 %v988
        %v1869 = vpop.f32.mrf.mxu0
        %v1870 = vadd.f32 0.0, %v1869
        %v1871 = vpop.f32.mrf.mxu0
        %v1872 = vadd.f32 0.0, %v1871
        %1873 = vmatmul.bf16.gmra.mxu0 %v991
        %v1874 = vpop.f32.mrf.mxu0
        %v1875 = vadd.f32 0.0, %v1874
        %v1876 = vpop.f32.mrf.mxu0
        %v1877 = vadd.f32 0.0, %v1876
        %1878 = vmatmul.bf16.gmra.mxu0 %v1226
        %v1879 = vpop.f32.mrf.mxu0
        %v1880 = vadd.f32 0.0, %v1879
        %v1881 = vpop.f32.mrf.mxu0
        %v1882 = vadd.f32 0.0, %v1881
        %1883 = vmatmul.bf16.gmra.mxu0 %v1808
        %v1884 = vpop.f32.mrf.mxu0
        %v1885 = vadd.f32 0.0, %v1884
        %v1886 = vpop.f32.mrf.mxu0
        %v1887 = vadd.f32 0.0, %v1886
        %1888 = vdwg.mxu0
        %1889 = vmatpush.bf16.msra.mxu0 0
        %1890 = vmatpush.bf16.msra.mxu0 0
        %1891 = vmatpush.bf16.msra.mxu0 %v1794
        %1892 = vmatpush.bf16.msra.mxu0 %v1792
        %1893 = vmatpush.bf16.msra.mxu0 %v1790
        %1894 = vmatpush.bf16.msra.mxu0 %v1788
        %1895 = vmatpush.bf16.msra.mxu0 %v1786
        %1896 = vmatpush.bf16.msra.mxu0 %v1784
        %1897 = vmatmul.bf16.gmra.mxu0 %v958
        %v1898 = vpop.f32.mrf.mxu0
        %v1899 = vadd.f32 0.0, %v1898
        %v1900 = vpop.f32.mrf.mxu0
        %v1901 = vadd.f32 0.0, %v1900
        %1902 = vmatmul.bf16.gmra.mxu0 %v961
        %v1903 = vpop.f32.mrf.mxu0
        %v1904 = vadd.f32 0.0, %v1903
        %v1905 = vpop.f32.mrf.mxu0
        %v1906 = vadd.f32 0.0, %v1905
        %1907 = vmatmul.bf16.gmra.mxu0 %v964
        %v1908 = vpop.f32.mrf.mxu0
        %v1909 = vadd.f32 0.0, %v1908
        %v1910 = vpop.f32.mrf.mxu0
        %v1911 = vadd.f32 0.0, %v1910
        %1912 = vmatmul.bf16.gmra.mxu0 %v967
        %v1913 = vpop.f32.mrf.mxu0
        %v1914 = vadd.f32 0.0, %v1913
        %v1915 = vpop.f32.mrf.mxu0
        %v1916 = vadd.f32 0.0, %v1915
        %1917 = vmatmul.bf16.gmra.mxu0 %v970
        %v1918 = vpop.f32.mrf.mxu0
        %v1919 = vadd.f32 0.0, %v1918
        %v1920 = vpop.f32.mrf.mxu0
        %v1921 = vadd.f32 0.0, %v1920
        %1922 = vmatmul.bf16.gmra.mxu0 %v973
        %v1923 = vpop.f32.mrf.mxu0
        %v1924 = vadd.f32 0.0, %v1923
        %v1925 = vpop.f32.mrf.mxu0
        %v1926 = vadd.f32 0.0, %v1925
        %1927 = vmatmul.bf16.gmra.mxu0 %v976
        %v1928 = vpop.f32.mrf.mxu0
        %v1929 = vadd.f32 0.0, %v1928
        %v1930 = vpop.f32.mrf.mxu0
        %v1931 = vadd.f32 0.0, %v1930
        %1932 = vmatmul.bf16.gmra.mxu0 %v979
        %v1933 = vpop.f32.mrf.mxu0
        %v1934 = vadd.f32 0.0, %v1933
        %v1935 = vpop.f32.mrf.mxu0
        %v1936 = vadd.f32 0.0, %v1935
        %1937 = vmatmul.bf16.gmra.mxu0 %v982
        %v1938 = vpop.f32.mrf.mxu0
        %v1939 = vadd.f32 0.0, %v1938
        %v1940 = vpop.f32.mrf.mxu0
        %v1941 = vadd.f32 0.0, %v1940
        %1942 = vmatmul.bf16.gmra.mxu0 %v985
        %v1943 = vpop.f32.mrf.mxu0
        %v1944 = vadd.f32 0.0, %v1943
        %v1945 = vpop.f32.mrf.mxu0
        %v1946 = vadd.f32 0.0, %v1945
        %1947 = vmatmul.bf16.gmra.mxu0 %v988
        %v1948 = vpop.f32.mrf.mxu0
        %v1949 = vadd.f32 0.0, %v1948
        %v1950 = vpop.f32.mrf.mxu0
        %v1951 = vadd.f32 0.0, %v1950
        %1952 = vmatmul.bf16.gmra.mxu0 %v991
        %v1953 = vpop.f32.mrf.mxu0
        %v1954 = vadd.f32 0.0, %v1953
        %v1955 = vpop.f32.mrf.mxu0
        %v1956 = vadd.f32 0.0, %v1955
        %1957 = vmatmul.bf16.gmra.mxu0 %v1226
        %v1958 = vpop.f32.mrf.mxu0
        %v1959 = vadd.f32 0.0, %v1958
        %v1960 = vpop.f32.mrf.mxu0
        %v1961 = vadd.f32 0.0, %v1960
        %1962 = vmatmul.bf16.gmra.mxu0 %v1808
        %v1963 = vpop.f32.mrf.mxu0
        %v1964 = vadd.f32 0.0, %v1963
        %v1965 = vpop.f32.mrf.mxu0
        %v1966 = vadd.f32 0.0, %v1965
        %1967 = vdwg.mxu0
        %v1968 = vadd.f32 %v1677, %v1820
        %v1969 = vadd.f32 %v1678, %v1899
        %v1970 = vadd.f32 %v1679, %v1822
        %v1971 = vadd.f32 %v1680, %v1901
        %v1972 = vadd.f32 %v1681, %v1825
        %v1973 = vadd.f32 %v1682, %v1904
        %v1974 = vadd.f32 %v1683, %v1827
        %v1975 = vadd.f32 %v1684, %v1906
        %v1976 = vadd.f32 %v1685, %v1830
        %v1977 = vadd.f32 %v1686, %v1909
        %v1978 = vadd.f32 %v1687, %v1832
        %v1979 = vadd.f32 %v1688, %v1911
        %v1980 = vadd.f32 %v1689, %v1835
        %v1981 = vadd.f32 %v1690, %v1914
        %v1982 = vadd.f32 %v1691, %v1837
        %v1983 = vadd.f32 %v1692, %v1916
        %v1984 = vadd.f32 %v1693, %v1840
        %v1985 = vadd.f32 %v1694, %v1919
        %v1986 = vadd.f32 %v1695, %v1842
        %v1987 = vadd.f32 %v1696, %v1921
        %v1988 = vadd.f32 %v1697, %v1845
        %v1989 = vadd.f32 %v1698, %v1924
        %v1990 = vadd.f32 %v1699, %v1847
        %v1991 = vadd.f32 %v1700, %v1926
        %v1992 = vadd.f32 %v1701, %v1850
        %v1993 = vadd.f32 %v1702, %v1929
        %v1994 = vadd.f32 %v1703, %v1852
        %v1995 = vadd.f32 %v1704, %v1931
        %v1996 = vadd.f32 %v1705, %v1855
        %v1997 = vadd.f32 %v1706, %v1934
        %v1998 = vadd.f32 %v1707, %v1857
        %v1999 = vadd.f32 %v1708, %v1936
        %v2000 = vadd.f32 %v1709, %v1860
        %v2001 = vadd.f32 %v1710, %v1939
        %v2002 = vadd.f32 %v1711, %v1862
        %v2003 = vadd.f32 %v1712, %v1941
        %v2004 = vadd.f32 %v1713, %v1865
        %v2005 = vadd.f32 %v1714, %v1944
        %v2006 = vadd.f32 %v1715, %v1867
        %v2007 = vadd.f32 %v1716, %v1946
        %v2008 = vadd.f32 %v1717, %v1870
        %v2009 = vadd.f32 %v1718, %v1949
        %v2010 = vadd.f32 %v1719, %v1872
        %v2011 = vadd.f32 %v1720, %v1951
        %v2012 = vadd.f32 %v1721, %v1875
        %v2013 = vadd.f32 %v1722, %v1954
        %v2014 = vadd.f32 %v1723, %v1877
        %v2015 = vadd.f32 %v1724, %v1956
        %v2016 = vadd.f32 %v1725, %v1880
        %v2017 = vadd.f32 %v1726, %v1959
        %v2018 = vadd.f32 %v1727, %v1882
        %v2019 = vadd.f32 %v1728, %v1961
        %v2020 = vadd.f32 %v1729, %v1885
        %v2021 = vadd.f32 %v1730, %v1964
        %v2022 = vadd.f32 %v1731, %v1887
        %v2023 = vadd.f32 %v1732, %v1966
        %v2024 = vld [vmem:[%s2] sm:$0x3]
        %v2026 = vperm.slane %v2024, 0
        %v2027 = vperm.slane %v2024, 1
        %v2030 = vadd.f32 %v1968, %v2026
        %v2031 = vadd.f32 %v1969, %v2027
        %v2032 = vadd.f32 %v1970, %v2026
        %v2033 = vadd.f32 %v1971, %v2027
        %v2034 = vadd.f32 %v1972, %v2026
        %v2035 = vadd.f32 %v1973, %v2027
        %v2036 = vadd.f32 %v1974, %v2026
        %v2037 = vadd.f32 %v1975, %v2027
        %v2038 = vadd.f32 %v1976, %v2026
        %v2039 = vadd.f32 %v1977, %v2027
        %v2040 = vadd.f32 %v1978, %v2026
        %v2041 = vadd.f32 %v1979, %v2027
        %v2042 = vadd.f32 %v1980, %v2026
        %v2043 = vadd.f32 %v1981, %v2027
        %v2044 = vadd.f32 %v1982, %v2026
        %v2045 = vadd.f32 %v1983, %v2027
        %v2046 = vadd.f32 %v1984, %v2026
        %v2047 = vadd.f32 %v1985, %v2027
        %v2048 = vadd.f32 %v1986, %v2026
        %v2049 = vadd.f32 %v1987, %v2027
        %v2050 = vadd.f32 %v1988, %v2026
        %v2051 = vadd.f32 %v1989, %v2027
        %v2052 = vadd.f32 %v1990, %v2026
        %v2053 = vadd.f32 %v1991, %v2027
        %v2054 = vadd.f32 %v1992, %v2026
        %v2055 = vadd.f32 %v1993, %v2027
        %v2056 = vadd.f32 %v1994, %v2026
        %v2057 = vadd.f32 %v1995, %v2027
        %v2058 = vadd.f32 %v1996, %v2026
        %v2059 = vadd.f32 %v1997, %v2027
        %v2060 = vadd.f32 %v1998, %v2026
        %v2061 = vadd.f32 %v1999, %v2027
        %v2062 = vadd.f32 %v2000, %v2026
        %v2063 = vadd.f32 %v2001, %v2027
        %v2064 = vadd.f32 %v2002, %v2026
        %v2065 = vadd.f32 %v2003, %v2027
        %v2066 = vadd.f32 %v2004, %v2026
        %v2067 = vadd.f32 %v2005, %v2027
        %v2068 = vadd.f32 %v2006, %v2026
        %v2069 = vadd.f32 %v2007, %v2027
        %v2070 = vadd.f32 %v2008, %v2026
        %v2071 = vadd.f32 %v2009, %v2027
        %v2072 = vadd.f32 %v2010, %v2026
        %v2073 = vadd.f32 %v2011, %v2027
        %v2074 = vadd.f32 %v2012, %v2026
        %v2075 = vadd.f32 %v2013, %v2027
        %v2076 = vadd.f32 %v2014, %v2026
        %v2077 = vadd.f32 %v2015, %v2027
        %v2078 = vadd.f32 %v2016, %v2026
        %v2079 = vadd.f32 %v2017, %v2027
        %v2080 = vadd.f32 %v2018, %v2026
        %v2081 = vadd.f32 %v2019, %v2027
        %v2082 = vadd.f32 %v2020, %v2026
        %v2083 = vadd.f32 %v2021, %v2027
        %v2084 = vadd.f32 %v2022, %v2026
        %v2085 = vadd.f32 %v2023, %v2027
        %v2086 = vmax.f32 %v2030, 0.0
        %v2087 = vmax.f32 %v2031, 0.0
        %v2088 = vmax.f32 %v2032, 0.0
        %v2089 = vmax.f32 %v2033, 0.0
        %v2090 = vmax.f32 %v2034, 0.0
        %v2091 = vmax.f32 %v2035, 0.0
        %v2092 = vmax.f32 %v2036, 0.0
        %v2093 = vmax.f32 %v2037, 0.0
        %v2094 = vmax.f32 %v2038, 0.0
        %v2095 = vmax.f32 %v2039, 0.0
        %v2096 = vmax.f32 %v2040, 0.0
        %v2097 = vmax.f32 %v2041, 0.0
        %v2098 = vmax.f32 %v2042, 0.0
        %v2099 = vmax.f32 %v2043, 0.0
        %v2100 = vmax.f32 %v2044, 0.0
        %v2101 = vmax.f32 %v2045, 0.0
        %v2102 = vmax.f32 %v2046, 0.0
        %v2103 = vmax.f32 %v2047, 0.0
        %v2104 = vmax.f32 %v2048, 0.0
        %v2105 = vmax.f32 %v2049, 0.0
        %v2106 = vmax.f32 %v2050, 0.0
        %v2107 = vmax.f32 %v2051, 0.0
        %v2108 = vmax.f32 %v2052, 0.0
        %v2109 = vmax.f32 %v2053, 0.0
        %v2110 = vmax.f32 %v2054, 0.0
        %v2111 = vmax.f32 %v2055, 0.0
        %v2112 = vmax.f32 %v2056, 0.0
        %v2113 = vmax.f32 %v2057, 0.0
        %v2114 = vmax.f32 %v2058, 0.0
        %v2115 = vmax.f32 %v2059, 0.0
        %v2116 = vmax.f32 %v2060, 0.0
        %v2117 = vmax.f32 %v2061, 0.0
        %v2118 = vmax.f32 %v2062, 0.0
        %v2119 = vmax.f32 %v2063, 0.0
        %v2120 = vmax.f32 %v2064, 0.0
        %v2121 = vmax.f32 %v2065, 0.0
        %v2122 = vmax.f32 %v2066, 0.0
        %v2123 = vmax.f32 %v2067, 0.0
        %v2124 = vmax.f32 %v2068, 0.0
        %v2125 = vmax.f32 %v2069, 0.0
        %v2126 = vmax.f32 %v2070, 0.0
        %v2127 = vmax.f32 %v2071, 0.0
        %v2128 = vmax.f32 %v2072, 0.0
        %v2129 = vmax.f32 %v2073, 0.0
        %v2130 = vmax.f32 %v2074, 0.0
        %v2131 = vmax.f32 %v2075, 0.0
        %v2132 = vmax.f32 %v2076, 0.0
        %v2133 = vmax.f32 %v2077, 0.0
        %v2134 = vmax.f32 %v2078, 0.0
        %v2135 = vmax.f32 %v2079, 0.0
        %v2136 = vmax.f32 %v2080, 0.0
        %v2137 = vmax.f32 %v2081, 0.0
        %v2138 = vmax.f32 %v2082, 0.0
        %v2139 = vmax.f32 %v2083, 0.0
        %v2140 = vmax.f32 %v2084, 0.0
        %v2141 = vmax.f32 %v2085, 0.0
        %v2142 = vmax.f32 %v2086, %v2088
        %v2143 = vmax.f32 %v2087, %v2089
        %v2144 = vmax.f32 %v2090, %v2092
        %v2145 = vmax.f32 %v2091, %v2093
        %v2146 = vmax.f32 %v2094, %v2096
        %v2147 = vmax.f32 %v2095, %v2097
        %v2148 = vmax.f32 %v2098, %v2100
        %v2149 = vmax.f32 %v2099, %v2101
        %v2150 = vmax.f32 %v2102, %v2104
        %v2151 = vmax.f32 %v2103, %v2105
        %v2152 = vmax.f32 %v2106, %v2108
        %v2153 = vmax.f32 %v2107, %v2109
        %v2154 = vmax.f32 %v2110, %v2112
        %v2155 = vmax.f32 %v2111, %v2113
        %v2156 = vmax.f32 %v2114, %v2116
        %v2157 = vmax.f32 %v2115, %v2117
        %v2158 = vmax.f32 %v2118, %v2120
        %v2159 = vmax.f32 %v2119, %v2121
        %v2160 = vmax.f32 %v2122, %v2124
        %v2161 = vmax.f32 %v2123, %v2125
        %v2162 = vmax.f32 %v2126, %v2128
        %v2163 = vmax.f32 %v2127, %v2129
        %v2164 = vmax.f32 %v2130, %v2132
        %v2165 = vmax.f32 %v2131, %v2133
        %v2166 = vmax.f32 %v2134, %v2136
        %v2167 = vmax.f32 %v2135, %v2137
        %v2168 = vmax.f32 %v2138, %v2140
        %v2169 = vmax.f32 %v2139, %v2141
        %2198 = vrot.lane.b32.xlu0 %v2142, 122
        %v2199 = vpop.permute.xlu0 %2198
        %2200 = vrot.lane.b32.xlu0 %v2143, 122
        %v2201 = vpop.permute.xlu0 %2200
        %2202 = vrot.lane.b32.xlu0 %v2144, 122
        %v2203 = vpop.permute.xlu0 %2202
        %2204 = vrot.lane.b32.xlu0 %v2145, 122
        %v2205 = vpop.permute.xlu0 %2204
        %2206 = vrot.lane.b32.xlu0 %v2146, 122
        %v2207 = vpop.permute.xlu0 %2206
        %2208 = vrot.lane.b32.xlu0 %v2147, 122
        %v2209 = vpop.permute.xlu0 %2208
        %2210 = vrot.lane.b32.xlu0 %v2148, 122
        %v2211 = vpop.permute.xlu0 %2210
        %2212 = vrot.lane.b32.xlu0 %v2149, 122
        %v2213 = vpop.permute.xlu0 %2212
        %2214 = vrot.lane.b32.xlu0 %v2150, 122
        %v2215 = vpop.permute.xlu0 %2214
        %2216 = vrot.lane.b32.xlu0 %v2151, 122
        %v2217 = vpop.permute.xlu0 %2216
        %2218 = vrot.lane.b32.xlu0 %v2152, 122
        %v2219 = vpop.permute.xlu0 %2218
        %2220 = vrot.lane.b32.xlu0 %v2153, 122
        %v2221 = vpop.permute.xlu0 %2220
        %2222 = vrot.lane.b32.xlu0 %v2154, 122
        %v2223 = vpop.permute.xlu0 %2222
        %2224 = vrot.lane.b32.xlu0 %v2155, 122
        %v2225 = vpop.permute.xlu0 %2224
        %2226 = vrot.lane.b32.xlu0 %v2156, 122
        %v2227 = vpop.permute.xlu0 %2226
        %2228 = vrot.lane.b32.xlu0 %v2157, 122
        %v2229 = vpop.permute.xlu0 %2228
        %2230 = vrot.lane.b32.xlu0 %v2158, 122
        %v2231 = vpop.permute.xlu0 %2230
        %2232 = vrot.lane.b32.xlu0 %v2159, 122
        %v2233 = vpop.permute.xlu0 %2232
        %2234 = vrot.lane.b32.xlu0 %v2160, 122
        %v2235 = vpop.permute.xlu0 %2234
        %2236 = vrot.lane.b32.xlu0 %v2161, 122
        %v2237 = vpop.permute.xlu0 %2236
        %2238 = vrot.lane.b32.xlu0 %v2162, 122
        %v2239 = vpop.permute.xlu0 %2238
        %2240 = vrot.lane.b32.xlu0 %v2163, 122
        %v2241 = vpop.permute.xlu0 %2240
        %2242 = vrot.lane.b32.xlu0 %v2164, 122
        %v2243 = vpop.permute.xlu0 %2242
        %2244 = vrot.lane.b32.xlu0 %v2165, 122
        %v2245 = vpop.permute.xlu0 %2244
        %2246 = vrot.lane.b32.xlu0 %v2166, 122
        %v2247 = vpop.permute.xlu0 %2246
        %2248 = vrot.lane.b32.xlu0 %v2167, 122
        %v2249 = vpop.permute.xlu0 %2248
        %2250 = vrot.lane.b32.xlu0 %v2168, 122
        %v2251 = vpop.permute.xlu0 %2250
        %2252 = vrot.lane.b32.xlu0 %v2169, 122
        %v2253 = vpop.permute.xlu0 %2252
        %vm2254 = vcmask 998400
        %v2255 = vsel %vm2254, %v2199, %v2201
        %v2256 = vsel %vm2254, %v2203, %v2205
        %v2257 = vsel %vm2254, %v2207, %v2209
        %v2258 = vsel %vm2254, %v2211, %v2213
        %v2259 = vsel %vm2254, %v2215, %v2217
        %v2260 = vsel %vm2254, %v2219, %v2221
        %v2261 = vsel %vm2254, %v2223, %v2225
        %v2262 = vsel %vm2254, %v2227, %v2229
        %v2263 = vsel %vm2254, %v2231, %v2233
        %v2264 = vsel %vm2254, %v2235, %v2237
        %v2265 = vsel %vm2254, %v2239, %v2241
        %v2266 = vsel %vm2254, %v2243, %v2245
        %v2267 = vsel %vm2254, %v2247, %v2249
        %v2268 = vsel %vm2254, %v2251, %v2253
        %v2297 = vmax.f32 %v2142, %v2255
        %v2298 = vmax.f32 %v2143, %v2201
        %v2299 = vmax.f32 %v2144, %v2256
        %v2300 = vmax.f32 %v2145, %v2205
        %v2301 = vmax.f32 %v2146, %v2257
        %v2302 = vmax.f32 %v2147, %v2209
        %v2303 = vmax.f32 %v2148, %v2258
        %v2304 = vmax.f32 %v2149, %v2213
        %v2305 = vmax.f32 %v2150, %v2259
        %v2306 = vmax.f32 %v2151, %v2217
        %v2307 = vmax.f32 %v2152, %v2260
        %v2308 = vmax.f32 %v2153, %v2221
        %v2309 = vmax.f32 %v2154, %v2261
        %v2310 = vmax.f32 %v2155, %v2225
        %v2311 = vmax.f32 %v2156, %v2262
        %v2312 = vmax.f32 %v2157, %v2229
        %v2313 = vmax.f32 %v2158, %v2263
        %v2314 = vmax.f32 %v2159, %v2233
        %v2315 = vmax.f32 %v2160, %v2264
        %v2316 = vmax.f32 %v2161, %v2237
        %v2317 = vmax.f32 %v2162, %v2265
        %v2318 = vmax.f32 %v2163, %v2241
        %v2319 = vmax.f32 %v2164, %v2266
        %v2320 = vmax.f32 %v2165, %v2245
        %v2321 = vmax.f32 %v2166, %v2267
        %v2322 = vmax.f32 %v2167, %v2249
        %v2323 = vmax.f32 %v2168, %v2268
        %v2324 = vmax.f32 %v2169, %v2253
        %v2325 = vpack.c.bf16 %v2299, %v2297
        %v2326 = vpack.c.bf16 %v2300, %v2298
        %v2327 = vpack.c.bf16 %v2303, %v2301
        %v2328 = vpack.c.bf16 %v2304, %v2302
        %v2329 = vpack.c.bf16 %v2307, %v2305
        %v2330 = vpack.c.bf16 %v2308, %v2306
        %v2331 = vpack.c.bf16 %v2311, %v2309
        %v2332 = vpack.c.bf16 %v2312, %v2310
        %v2333 = vpack.c.bf16 %v2315, %v2313
        %v2334 = vpack.c.bf16 %v2316, %v2314
        %v2335 = vld [vmem:[%s3] sm:$0xff]
        %v2336 = vld [vmem:[%s3 + $0x8] sm:$0xff]
        %v2337 = vld [vmem:[%s3 + $0x10] sm:$0xff]
        %v2338 = vld [vmem:[%s3 + $0x18] sm:$0xff]
        %v2339 = vld [vmem:[%s3 + $0x20] sm:$0xff]
        %v2340 = vld [vmem:[%s3 + $0x28] sm:$0xff]
        %v2341 = vld [vmem:[%s3 + $0x30] sm:$0xff]
        %v2342 = vld [vmem:[%s3 + $0x38] sm:$0xff]
        %v2343 = vld [vmem:[%s3 + $0x40] sm:$0xff]
        %v2344 = vld [vmem:[%s3 + $0x48] sm:$0xff]
        %v2345 = vld [vmem:[%s3 + $0x50] sm:$0xff]
        %v2346 = vld [vmem:[%s3 + $0x58] sm:$0xff]
        %v2347 = vld [vmem:[%s3 + $0x60] sm:$0xff]
        %v2348 = vld [vmem:[%s3 + $0x68] sm:$0xff]
        %v2349 = vld [vmem:[%s3 + $0x70] sm:$0xff]
        %v2350 = vld [vmem:[%s3 + $0x78] sm:$0xff]
        %v2351 = vld [vmem:[%s3 + $0x80] sm:$0xff]
        %v2352 = vld [vmem:[%s3 + $0x88] sm:$0xff]
        %v2353 = vld [vmem:[%s3 + $0x90] sm:$0xff]
        %v2354 = vld [vmem:[%s3 + $0x98] sm:$0xff]
        %v2355 = vld [vmem:[%s3 + $0xa0] sm:$0x11]
        %v2356 = vpack.c.bf16 %v2301, %v2299
        %v2357 = vpack.c.bf16 %v2302, %v2300
        %v2358 = vpack.c.bf16 %v2305, %v2303
        %v2359 = vpack.c.bf16 %v2306, %v2304
        %v2360 = vpack.c.bf16 %v2309, %v2307
        %v2361 = vpack.c.bf16 %v2310, %v2308
        %v2362 = vpack.c.bf16 %v2313, %v2311
        %v2363 = vpack.c.bf16 %v2314, %v2312
        %v2364 = vpack.c.bf16 %v2317, %v2315
        %v2365 = vpack.c.bf16 %v2318, %v2316
        %s2366 = scalar_lea.vmem %s3, 168
        %v2367 = vld [vmem:[%s2366] sm:$0xff]
        %v2368 = vld [vmem:[%s2366 + $0x8] sm:$0xff]
        %v2369 = vld [vmem:[%s2366 + $0x10] sm:$0xff]
        %v2370 = vld [vmem:[%s2366 + $0x18] sm:$0xff]
        %v2371 = vld [vmem:[%s2366 + $0x20] sm:$0xff]
        %v2372 = vld [vmem:[%s2366 + $0x28] sm:$0xff]
        %v2373 = vld [vmem:[%s2366 + $0x30] sm:$0xff]
        %v2374 = vld [vmem:[%s2366 + $0x38] sm:$0xff]
        %v2375 = vld [vmem:[%s2366 + $0x40] sm:$0xff]
        %v2376 = vld [vmem:[%s2366 + $0x48] sm:$0xff]
        %v2377 = vld [vmem:[%s2366 + $0x50] sm:$0xff]
        %v2378 = vld [vmem:[%s2366 + $0x58] sm:$0xff]
        %v2379 = vld [vmem:[%s2366 + $0x60] sm:$0xff]
        %v2380 = vld [vmem:[%s2366 + $0x68] sm:$0xff]
        %v2381 = vld [vmem:[%s2366 + $0x70] sm:$0xff]
        %v2382 = vld [vmem:[%s2366 + $0x78] sm:$0xff]
        %v2383 = vld [vmem:[%s2366 + $0x80] sm:$0xff]
        %v2384 = vld [vmem:[%s2366 + $0x88] sm:$0xff]
        %v2385 = vld [vmem:[%s2366 + $0x90] sm:$0xff]
        %v2386 = vld [vmem:[%s2366 + $0x98] sm:$0xff]
        %v2387 = vld [vmem:[%s2366 + $0xa0] sm:$0x11]
        %v2409 = vunpack.c.l.b16 %v2367
        %v2410 = vunpack.c.h.b16 %v2367
        %v2411 = vunpack.c.l.b16 %v2368
        %v2412 = vunpack.c.h.b16 %v2368
        %v2413 = vunpack.c.l.b16 %v2369
        %v2414 = vunpack.c.h.b16 %v2369
        %v2415 = vunpack.c.l.b16 %v2370
        %v2416 = vunpack.c.h.b16 %v2370
        %v2417 = vunpack.c.l.b16 %v2371
        %v2418 = vunpack.c.h.b16 %v2371
        %v2419 = vunpack.c.l.b16 %v2372
        %v2420 = vunpack.c.h.b16 %v2372
        %v2421 = vunpack.c.l.b16 %v2373
        %v2422 = vunpack.c.h.b16 %v2373
        %v2423 = vunpack.c.l.b16 %v2374
        %v2424 = vunpack.c.h.b16 %v2374
        %v2425 = vunpack.c.l.b16 %v2375
        %v2426 = vunpack.c.h.b16 %v2375
        %v2427 = vunpack.c.l.b16 %v2376
        %v2428 = vunpack.c.h.b16 %v2376
        %v2429 = vunpack.c.l.b16 %v2377
        %v2430 = vunpack.c.h.b16 %v2377
        %v2431 = vunpack.c.l.b16 %v2378
        %v2432 = vunpack.c.h.b16 %v2378
        %v2433 = vunpack.c.l.b16 %v2379
        %v2434 = vunpack.c.h.b16 %v2379
        %v2435 = vunpack.c.l.b16 %v2380
        %v2436 = vunpack.c.h.b16 %v2380
        %v2437 = vunpack.c.l.b16 %v2381
        %v2438 = vunpack.c.h.b16 %v2381
        %v2439 = vunpack.c.l.b16 %v2382
        %v2440 = vunpack.c.h.b16 %v2382
        %v2441 = vunpack.c.l.b16 %v2383
        %v2442 = vunpack.c.h.b16 %v2383
        %v2443 = vunpack.c.l.b16 %v2384
        %v2444 = vunpack.c.h.b16 %v2384
        %v2445 = vunpack.c.l.b16 %v2385
        %v2446 = vunpack.c.h.b16 %v2385
        %v2447 = vunpack.c.l.b16 %v2386
        %v2448 = vunpack.c.h.b16 %v2386
        %v2449 = vunpack.c.l.b16 %v2387
        %v2450 = vunpack.c.h.b16 %v2387
        %v2451 = vpack.c.b16 %v2411, %v2409
        %v2452 = vpack.c.b16 %v2412, %v2410
        %v2453 = vpack.c.b16 %v2415, %v2413
        %v2454 = vpack.c.b16 %v2416, %v2414
        %v2455 = vpack.c.b16 %v2419, %v2417
        %v2456 = vpack.c.b16 %v2420, %v2418
        %v2457 = vpack.c.b16 %v2423, %v2421
        %v2458 = vpack.c.b16 %v2424, %v2422
        %v2459 = vpack.c.b16 %v2427, %v2425
        %v2460 = vpack.c.b16 %v2428, %v2426
        %v2461 = vpack.c.b16 %v2431, %v2429
        %v2462 = vpack.c.b16 %v2432, %v2430
        %v2463 = vpack.c.b16 %v2435, %v2433
        %v2464 = vpack.c.b16 %v2436, %v2434
        %v2465 = vpack.c.b16 %v2439, %v2437
        %v2466 = vpack.c.b16 %v2440, %v2438
        %v2467 = vpack.c.b16 %v2443, %v2441
        %v2468 = vpack.c.b16 %v2444, %v2442
        %v2469 = vpack.c.b16 %v2447, %v2445
        %v2470 = vpack.c.b16 %v2448, %v2446
        %v2471 = vpack.c.b16 %v2449, %v2449
        %v2472 = vpack.c.b16 %v2450, %v2450
        %vm2493 = vcmask 277504
        %v2495 = vsel %vm2493, %v2357, 0
        %v2498 = vsel %vm2493, %v2359, 0
        %v2501 = vsel %vm2493, %v2361, 0
        %v2504 = vsel %vm2493, %v2363, 0
        %v2507 = vsel %vm2493, %v2365, 0
        %vm2509 = vcmask 1040384
        %v2511 = vsel %vm2509, %v2471, 0
        %v2514 = vsel %vm2509, %v2472, 0
        %2516 = vmatpush.bf16.msra.mxu0 %v2465
        %2517 = vmatpush.bf16.msra.mxu0 %v2463
        %2518 = vmatpush.bf16.msra.mxu0 %v2461
        %2519 = vmatpush.bf16.msra.mxu0 %v2459
        %2520 = vmatpush.bf16.msra.mxu0 %v2457
        %2521 = vmatpush.bf16.msra.mxu0 %v2455
        %2522 = vmatpush.bf16.msra.mxu0 %v2453
        %2523 = vmatpush.bf16.msra.mxu0 %v2451
        %2524 = vmatmul.bf16.gmra.mxu0 %v2356
        %v2525 = vpop.f32.mrf.mxu0
        %v2526 = vadd.f32 0.0, %v2525
        %v2527 = vpop.f32.mrf.mxu0
        %v2528 = vadd.f32 0.0, %v2527
        %2529 = vmatmul.bf16.gmra.mxu0 %v2358
        %v2530 = vpop.f32.mrf.mxu0
        %v2531 = vadd.f32 0.0, %v2530
        %v2532 = vpop.f32.mrf.mxu0
        %v2533 = vadd.f32 0.0, %v2532
        %2534 = vmatmul.bf16.gmra.mxu0 %v2360
        %v2535 = vpop.f32.mrf.mxu0
        %v2536 = vadd.f32 0.0, %v2535
        %v2537 = vpop.f32.mrf.mxu0
        %v2538 = vadd.f32 0.0, %v2537
        %2539 = vmatmul.bf16.gmra.mxu0 %v2362
        %v2540 = vpop.f32.mrf.mxu0
        %v2541 = vadd.f32 0.0, %v2540
        %v2542 = vpop.f32.mrf.mxu0
        %v2543 = vadd.f32 0.0, %v2542
        %2544 = vmatmul.bf16.gmra.mxu0 %v2364
        %v2545 = vpop.f32.mrf.mxu0
        %v2546 = vadd.f32 0.0, %v2545
        %v2547 = vpop.f32.mrf.mxu0
        %v2548 = vadd.f32 0.0, %v2547
        %2549 = vdwg.mxu0
        %2550 = vmatpush.bf16.msra.mxu0 0
        %2551 = vmatpush.bf16.msra.mxu0 0
        %2552 = vmatpush.bf16.msra.mxu0 0
        %2553 = vmatpush.bf16.msra.mxu0 0
        %2554 = vmatpush.bf16.msra.mxu0 0
        %2555 = vmatpush.bf16.msra.mxu0 %v2511
        %2556 = vmatpush.bf16.msra.mxu0 %v2469
        %2557 = vmatpush.bf16.msra.mxu0 %v2467
        %2558 = vmatmul.bf16.gmra.mxu0 %v2495
        %v2559 = vpop.f32.mrf.mxu0
        %v2560 = vadd.f32 %v2526, %v2559
        %v2561 = vpop.f32.mrf.mxu0
        %v2562 = vadd.f32 %v2528, %v2561
        %2563 = vmatmul.bf16.gmra.mxu0 %v2498
        %v2564 = vpop.f32.mrf.mxu0
        %v2565 = vadd.f32 %v2531, %v2564
        %v2566 = vpop.f32.mrf.mxu0
        %v2567 = vadd.f32 %v2533, %v2566
        %2568 = vmatmul.bf16.gmra.mxu0 %v2501
        %v2569 = vpop.f32.mrf.mxu0
        %v2570 = vadd.f32 %v2536, %v2569
        %v2571 = vpop.f32.mrf.mxu0
        %v2572 = vadd.f32 %v2538, %v2571
        %2573 = vmatmul.bf16.gmra.mxu0 %v2504
        %v2574 = vpop.f32.mrf.mxu0
        %v2575 = vadd.f32 %v2541, %v2574
        %v2576 = vpop.f32.mrf.mxu0
        %v2577 = vadd.f32 %v2543, %v2576
        %2578 = vmatmul.bf16.gmra.mxu0 %v2507
        %v2579 = vpop.f32.mrf.mxu0
        %v2580 = vadd.f32 %v2546, %v2579
        %v2581 = vpop.f32.mrf.mxu0
        %v2582 = vadd.f32 %v2548, %v2581
        %2583 = vdwg.mxu0
        %2584 = vmatpush.bf16.msra.mxu0 %v2466
        %2585 = vmatpush.bf16.msra.mxu0 %v2464
        %2586 = vmatpush.bf16.msra.mxu0 %v2462
        %2587 = vmatpush.bf16.msra.mxu0 %v2460
        %2588 = vmatpush.bf16.msra.mxu0 %v2458
        %2589 = vmatpush.bf16.msra.mxu0 %v2456
        %2590 = vmatpush.bf16.msra.mxu0 %v2454
        %2591 = vmatpush.bf16.msra.mxu0 %v2452
        %2592 = vmatmul.bf16.gmra.mxu0 %v2356
        %v2593 = vpop.f32.mrf.mxu0
        %v2594 = vadd.f32 0.0, %v2593
        %v2595 = vpop.f32.mrf.mxu0
        %v2596 = vadd.f32 0.0, %v2595
        %2597 = vmatmul.bf16.gmra.mxu0 %v2358
        %v2598 = vpop.f32.mrf.mxu0
        %v2599 = vadd.f32 0.0, %v2598
        %v2600 = vpop.f32.mrf.mxu0
        %v2601 = vadd.f32 0.0, %v2600
        %2602 = vmatmul.bf16.gmra.mxu0 %v2360
        %v2603 = vpop.f32.mrf.mxu0
        %v2604 = vadd.f32 0.0, %v2603
        %v2605 = vpop.f32.mrf.mxu0
        %v2606 = vadd.f32 0.0, %v2605
        %2607 = vmatmul.bf16.gmra.mxu0 %v2362
        %v2608 = vpop.f32.mrf.mxu0
        %v2609 = vadd.f32 0.0, %v2608
        %v2610 = vpop.f32.mrf.mxu0
        %v2611 = vadd.f32 0.0, %v2610
        %2612 = vmatmul.bf16.gmra.mxu0 %v2364
        %v2613 = vpop.f32.mrf.mxu0
        %v2614 = vadd.f32 0.0, %v2613
        %v2615 = vpop.f32.mrf.mxu0
        %v2616 = vadd.f32 0.0, %v2615
        %2617 = vdwg.mxu0
        %2618 = vmatpush.bf16.msra.mxu0 0
        %2619 = vmatpush.bf16.msra.mxu0 0
        %2620 = vmatpush.bf16.msra.mxu0 0
        %2621 = vmatpush.bf16.msra.mxu0 0
        %2622 = vmatpush.bf16.msra.mxu0 0
        %2623 = vmatpush.bf16.msra.mxu0 %v2514
        %2624 = vmatpush.bf16.msra.mxu0 %v2470
        %2625 = vmatpush.bf16.msra.mxu0 %v2468
        %2626 = vmatmul.bf16.gmra.mxu0 %v2495
        %v2627 = vpop.f32.mrf.mxu0
        %v2628 = vadd.f32 %v2594, %v2627
        %v2629 = vpop.f32.mrf.mxu0
        %v2630 = vadd.f32 %v2596, %v2629
        %2631 = vmatmul.bf16.gmra.mxu0 %v2498
        %v2632 = vpop.f32.mrf.mxu0
        %v2633 = vadd.f32 %v2599, %v2632
        %v2634 = vpop.f32.mrf.mxu0
        %v2635 = vadd.f32 %v2601, %v2634
        %2636 = vmatmul.bf16.gmra.mxu0 %v2501
        %v2637 = vpop.f32.mrf.mxu0
        %v2638 = vadd.f32 %v2604, %v2637
        %v2639 = vpop.f32.mrf.mxu0
        %v2640 = vadd.f32 %v2606, %v2639
        %2641 = vmatmul.bf16.gmra.mxu0 %v2504
        %v2642 = vpop.f32.mrf.mxu0
        %v2643 = vadd.f32 %v2609, %v2642
        %v2644 = vpop.f32.mrf.mxu0
        %v2645 = vadd.f32 %v2611, %v2644
        %2646 = vmatmul.bf16.gmra.mxu0 %v2507
        %v2647 = vpop.f32.mrf.mxu0
        %v2648 = vadd.f32 %v2614, %v2647
        %v2649 = vpop.f32.mrf.mxu0
        %v2650 = vadd.f32 %v2616, %v2649
        %2651 = vdwg.mxu0
        %v2673 = vunpack.c.l.b16 %v2335
        %v2674 = vunpack.c.h.b16 %v2335
        %v2675 = vunpack.c.l.b16 %v2336
        %v2676 = vunpack.c.h.b16 %v2336
        %v2677 = vunpack.c.l.b16 %v2337
        %v2678 = vunpack.c.h.b16 %v2337
        %v2679 = vunpack.c.l.b16 %v2338
        %v2680 = vunpack.c.h.b16 %v2338
        %v2681 = vunpack.c.l.b16 %v2339
        %v2682 = vunpack.c.h.b16 %v2339
        %v2683 = vunpack.c.l.b16 %v2340
        %v2684 = vunpack.c.h.b16 %v2340
        %v2685 = vunpack.c.l.b16 %v2341
        %v2686 = vunpack.c.h.b16 %v2341
        %v2687 = vunpack.c.l.b16 %v2342
        %v2688 = vunpack.c.h.b16 %v2342
        %v2689 = vunpack.c.l.b16 %v2343
        %v2690 = vunpack.c.h.b16 %v2343
        %v2691 = vunpack.c.l.b16 %v2344
        %v2692 = vunpack.c.h.b16 %v2344
        %v2693 = vunpack.c.l.b16 %v2345
        %v2694 = vunpack.c.h.b16 %v2345
        %v2695 = vunpack.c.l.b16 %v2346
        %v2696 = vunpack.c.h.b16 %v2346
        %v2697 = vunpack.c.l.b16 %v2347
        %v2698 = vunpack.c.h.b16 %v2347
        %v2699 = vunpack.c.l.b16 %v2348
        %v2700 = vunpack.c.h.b16 %v2348
        %v2701 = vunpack.c.l.b16 %v2349
        %v2702 = vunpack.c.h.b16 %v2349
        %v2703 = vunpack.c.l.b16 %v2350
        %v2704 = vunpack.c.h.b16 %v2350
        %v2705 = vunpack.c.l.b16 %v2351
        %v2706 = vunpack.c.h.b16 %v2351
        %v2707 = vunpack.c.l.b16 %v2352
        %v2708 = vunpack.c.h.b16 %v2352
        %v2709 = vunpack.c.l.b16 %v2353
        %v2710 = vunpack.c.h.b16 %v2353
        %v2711 = vunpack.c.l.b16 %v2354
        %v2712 = vunpack.c.h.b16 %v2354
        %v2713 = vunpack.c.l.b16 %v2355
        %v2714 = vunpack.c.h.b16 %v2355
        %v2715 = vpack.c.b16 %v2675, %v2673
        %v2716 = vpack.c.b16 %v2676, %v2674
        %v2717 = vpack.c.b16 %v2679, %v2677
        %v2718 = vpack.c.b16 %v2680, %v2678
        %v2719 = vpack.c.b16 %v2683, %v2681
        %v2720 = vpack.c.b16 %v2684, %v2682
        %v2721 = vpack.c.b16 %v2687, %v2685
        %v2722 = vpack.c.b16 %v2688, %v2686
        %v2723 = vpack.c.b16 %v2691, %v2689
        %v2724 = vpack.c.b16 %v2692, %v2690
        %v2725 = vpack.c.b16 %v2695, %v2693
        %v2726 = vpack.c.b16 %v2696, %v2694
        %v2727 = vpack.c.b16 %v2699, %v2697
        %v2728 = vpack.c.b16 %v2700, %v2698
        %v2729 = vpack.c.b16 %v2703, %v2701
        %v2730 = vpack.c.b16 %v2704, %v2702
        %v2731 = vpack.c.b16 %v2707, %v2705
        %v2732 = vpack.c.b16 %v2708, %v2706
        %v2733 = vpack.c.b16 %v2711, %v2709
        %v2734 = vpack.c.b16 %v2712, %v2710
        %v2735 = vpack.c.b16 %v2713, %v2713
        %v2736 = vpack.c.b16 %v2714, %v2714
        %v2758 = vsel %vm2493, %v2326, 0
        %v2761 = vsel %vm2493, %v2328, 0
        %v2764 = vsel %vm2493, %v2330, 0
        %v2767 = vsel %vm2493, %v2332, 0
        %v2770 = vsel %vm2493, %v2334, 0
        %v2773 = vsel %vm2509, %v2735, 0
        %v2776 = vsel %vm2509, %v2736, 0
        %2778 = vmatpush.bf16.msra.mxu0 %v2729
        %2779 = vmatpush.bf16.msra.mxu0 %v2727
        %2780 = vmatpush.bf16.msra.mxu0 %v2725
        %2781 = vmatpush.bf16.msra.mxu0 %v2723
        %2782 = vmatpush.bf16.msra.mxu0 %v2721
        %2783 = vmatpush.bf16.msra.mxu0 %v2719
        %2784 = vmatpush.bf16.msra.mxu0 %v2717
        %2785 = vmatpush.bf16.msra.mxu0 %v2715
        %2786 = vmatmul.bf16.gmra.mxu0 %v2325
        %v2787 = vpop.f32.mrf.mxu0
        %v2788 = vadd.f32 %v2560, %v2787
        %v2789 = vpop.f32.mrf.mxu0
        %v2790 = vadd.f32 %v2562, %v2789
        %2791 = vmatmul.bf16.gmra.mxu0 %v2327
        %v2792 = vpop.f32.mrf.mxu0
        %v2793 = vadd.f32 %v2565, %v2792
        %v2794 = vpop.f32.mrf.mxu0
        %v2795 = vadd.f32 %v2567, %v2794
        %2796 = vmatmul.bf16.gmra.mxu0 %v2329
        %v2797 = vpop.f32.mrf.mxu0
        %v2798 = vadd.f32 %v2570, %v2797
        %v2799 = vpop.f32.mrf.mxu0
        %v2800 = vadd.f32 %v2572, %v2799
        %2801 = vmatmul.bf16.gmra.mxu0 %v2331
        %v2802 = vpop.f32.mrf.mxu0
        %v2803 = vadd.f32 %v2575, %v2802
        %v2804 = vpop.f32.mrf.mxu0
        %v2805 = vadd.f32 %v2577, %v2804
        %2806 = vmatmul.bf16.gmra.mxu0 %v2333
        %v2807 = vpop.f32.mrf.mxu0
        %v2808 = vadd.f32 %v2580, %v2807
        %v2809 = vpop.f32.mrf.mxu0
        %v2810 = vadd.f32 %v2582, %v2809
        %2811 = vdwg.mxu0
        %2812 = vmatpush.bf16.msra.mxu0 0
        %2813 = vmatpush.bf16.msra.mxu0 0
        %2814 = vmatpush.bf16.msra.mxu0 0
        %2815 = vmatpush.bf16.msra.mxu0 0
        %2816 = vmatpush.bf16.msra.mxu0 0
        %2817 = vmatpush.bf16.msra.mxu0 %v2773
        %2818 = vmatpush.bf16.msra.mxu0 %v2733
        %2819 = vmatpush.bf16.msra.mxu0 %v2731
        %2820 = vmatmul.bf16.gmra.mxu0 %v2758
        %v2821 = vpop.f32.mrf.mxu0
        %v2822 = vadd.f32 %v2788, %v2821
        %v2823 = vpop.f32.mrf.mxu0
        %v2824 = vadd.f32 %v2790, %v2823
        %2825 = vmatmul.bf16.gmra.mxu0 %v2761
        %v2826 = vpop.f32.mrf.mxu0
        %v2827 = vadd.f32 %v2793, %v2826
        %v2828 = vpop.f32.mrf.mxu0
        %v2829 = vadd.f32 %v2795, %v2828
        %2830 = vmatmul.bf16.gmra.mxu0 %v2764
        %v2831 = vpop.f32.mrf.mxu0
        %v2832 = vadd.f32 %v2798, %v2831
        %v2833 = vpop.f32.mrf.mxu0
        %v2834 = vadd.f32 %v2800, %v2833
        %2835 = vmatmul.bf16.gmra.mxu0 %v2767
        %v2836 = vpop.f32.mrf.mxu0
        %v2837 = vadd.f32 %v2803, %v2836
        %v2838 = vpop.f32.mrf.mxu0
        %v2839 = vadd.f32 %v2805, %v2838
        %2840 = vmatmul.bf16.gmra.mxu0 %v2770
        %v2841 = vpop.f32.mrf.mxu0
        %v2842 = vadd.f32 %v2808, %v2841
        %v2843 = vpop.f32.mrf.mxu0
        %v2844 = vadd.f32 %v2810, %v2843
        %2845 = vdwg.mxu0
        %2846 = vmatpush.bf16.msra.mxu0 %v2730
        %2847 = vmatpush.bf16.msra.mxu0 %v2728
        %2848 = vmatpush.bf16.msra.mxu0 %v2726
        %2849 = vmatpush.bf16.msra.mxu0 %v2724
        %2850 = vmatpush.bf16.msra.mxu0 %v2722
        %2851 = vmatpush.bf16.msra.mxu0 %v2720
        %2852 = vmatpush.bf16.msra.mxu0 %v2718
        %2853 = vmatpush.bf16.msra.mxu0 %v2716
        %2854 = vmatmul.bf16.gmra.mxu0 %v2325
        %v2855 = vpop.f32.mrf.mxu0
        %v2856 = vadd.f32 %v2628, %v2855
        %v2857 = vpop.f32.mrf.mxu0
        %v2858 = vadd.f32 %v2630, %v2857
        %2859 = vmatmul.bf16.gmra.mxu0 %v2327
        %v2860 = vpop.f32.mrf.mxu0
        %v2861 = vadd.f32 %v2633, %v2860
        %v2862 = vpop.f32.mrf.mxu0
        %v2863 = vadd.f32 %v2635, %v2862
        %2864 = vmatmul.bf16.gmra.mxu0 %v2329
        %v2865 = vpop.f32.mrf.mxu0
        %v2866 = vadd.f32 %v2638, %v2865
        %v2867 = vpop.f32.mrf.mxu0
        %v2868 = vadd.f32 %v2640, %v2867
        %2869 = vmatmul.bf16.gmra.mxu0 %v2331
        %v2870 = vpop.f32.mrf.mxu0
        %v2871 = vadd.f32 %v2643, %v2870
        %v2872 = vpop.f32.mrf.mxu0
        %v2873 = vadd.f32 %v2645, %v2872
        %2874 = vmatmul.bf16.gmra.mxu0 %v2333
        %v2875 = vpop.f32.mrf.mxu0
        %v2876 = vadd.f32 %v2648, %v2875
        %v2877 = vpop.f32.mrf.mxu0
        %v2878 = vadd.f32 %v2650, %v2877
        %2879 = vdwg.mxu0
        %2880 = vmatpush.bf16.msra.mxu0 0
        %2881 = vmatpush.bf16.msra.mxu0 0
        %2882 = vmatpush.bf16.msra.mxu0 0
        %2883 = vmatpush.bf16.msra.mxu0 0
        %2884 = vmatpush.bf16.msra.mxu0 0
        %2885 = vmatpush.bf16.msra.mxu0 %v2776
        %2886 = vmatpush.bf16.msra.mxu0 %v2734
        %2887 = vmatpush.bf16.msra.mxu0 %v2732
        %2888 = vmatmul.bf16.gmra.mxu0 %v2758
        %v2889 = vpop.f32.mrf.mxu0
        %v2890 = vadd.f32 %v2856, %v2889
        %v2891 = vpop.f32.mrf.mxu0
        %v2892 = vadd.f32 %v2858, %v2891
        %2893 = vmatmul.bf16.gmra.mxu0 %v2761
        %v2894 = vpop.f32.mrf.mxu0
        %v2895 = vadd.f32 %v2861, %v2894
        %v2896 = vpop.f32.mrf.mxu0
        %v2897 = vadd.f32 %v2863, %v2896
        %2898 = vmatmul.bf16.gmra.mxu0 %v2764
        %v2899 = vpop.f32.mrf.mxu0
        %v2900 = vadd.f32 %v2866, %v2899
        %v2901 = vpop.f32.mrf.mxu0
        %v2902 = vadd.f32 %v2868, %v2901
        %2903 = vmatmul.bf16.gmra.mxu0 %v2767
        %v2904 = vpop.f32.mrf.mxu0
        %v2905 = vadd.f32 %v2871, %v2904
        %v2906 = vpop.f32.mrf.mxu0
        %v2907 = vadd.f32 %v2873, %v2906
        %2908 = vmatmul.bf16.gmra.mxu0 %v2770
        %v2909 = vpop.f32.mrf.mxu0
        %v2910 = vadd.f32 %v2876, %v2909
        %v2911 = vpop.f32.mrf.mxu0
        %v2912 = vadd.f32 %v2878, %v2911
        %2913 = vdwg.mxu0
        %v2914 = vpack.c.bf16 %v2319, %v2317
        %v2915 = vpack.c.bf16 %v2320, %v2318
        %s2916 = scalar_lea.vmem %s3, 336
        %v2917 = vld [vmem:[%s2916] sm:$0xff]
        %v2918 = vld [vmem:[%s2916 + $0x8] sm:$0xff]
        %v2919 = vld [vmem:[%s2916 + $0x10] sm:$0xff]
        %v2920 = vld [vmem:[%s2916 + $0x18] sm:$0xff]
        %v2921 = vld [vmem:[%s2916 + $0x20] sm:$0xff]
        %v2922 = vld [vmem:[%s2916 + $0x28] sm:$0xff]
        %v2923 = vld [vmem:[%s2916 + $0x30] sm:$0xff]
        %v2924 = vld [vmem:[%s2916 + $0x38] sm:$0xff]
        %v2925 = vld [vmem:[%s2916 + $0x40] sm:$0xff]
        %v2926 = vld [vmem:[%s2916 + $0x48] sm:$0xff]
        %v2927 = vld [vmem:[%s2916 + $0x50] sm:$0xff]
        %v2928 = vld [vmem:[%s2916 + $0x58] sm:$0xff]
        %v2929 = vld [vmem:[%s2916 + $0x60] sm:$0xff]
        %v2930 = vld [vmem:[%s2916 + $0x68] sm:$0xff]
        %v2931 = vld [vmem:[%s2916 + $0x70] sm:$0xff]
        %v2932 = vld [vmem:[%s2916 + $0x78] sm:$0xff]
        %v2933 = vld [vmem:[%s2916 + $0x80] sm:$0xff]
        %v2934 = vld [vmem:[%s2916 + $0x88] sm:$0xff]
        %v2935 = vld [vmem:[%s2916 + $0x90] sm:$0xff]
        %v2936 = vld [vmem:[%s2916 + $0x98] sm:$0xff]
        %v2937 = vld [vmem:[%s2916 + $0xa0] sm:$0x11]
        %v2959 = vunpack.c.l.b16 %v2917
        %v2960 = vunpack.c.h.b16 %v2917
        %v2961 = vunpack.c.l.b16 %v2918
        %v2962 = vunpack.c.h.b16 %v2918
        %v2963 = vunpack.c.l.b16 %v2919
        %v2964 = vunpack.c.h.b16 %v2919
        %v2965 = vunpack.c.l.b16 %v2920
        %v2966 = vunpack.c.h.b16 %v2920
        %v2967 = vunpack.c.l.b16 %v2921
        %v2968 = vunpack.c.h.b16 %v2921
        %v2969 = vunpack.c.l.b16 %v2922
        %v2970 = vunpack.c.h.b16 %v2922
        %v2971 = vunpack.c.l.b16 %v2923
        %v2972 = vunpack.c.h.b16 %v2923
        %v2973 = vunpack.c.l.b16 %v2924
        %v2974 = vunpack.c.h.b16 %v2924
        %v2975 = vunpack.c.l.b16 %v2925
        %v2976 = vunpack.c.h.b16 %v2925
        %v2977 = vunpack.c.l.b16 %v2926
        %v2978 = vunpack.c.h.b16 %v2926
        %v2979 = vunpack.c.l.b16 %v2927
        %v2980 = vunpack.c.h.b16 %v2927
        %v2981 = vunpack.c.l.b16 %v2928
        %v2982 = vunpack.c.h.b16 %v2928
        %v2983 = vunpack.c.l.b16 %v2929
        %v2984 = vunpack.c.h.b16 %v2929
        %v2985 = vunpack.c.l.b16 %v2930
        %v2986 = vunpack.c.h.b16 %v2930
        %v2987 = vunpack.c.l.b16 %v2931
        %v2988 = vunpack.c.h.b16 %v2931
        %v2989 = vunpack.c.l.b16 %v2932
        %v2990 = vunpack.c.h.b16 %v2932
        %v2991 = vunpack.c.l.b16 %v2933
        %v2992 = vunpack.c.h.b16 %v2933
        %v2993 = vunpack.c.l.b16 %v2934
        %v2994 = vunpack.c.h.b16 %v2934
        %v2995 = vunpack.c.l.b16 %v2935
        %v2996 = vunpack.c.h.b16 %v2935
        %v2997 = vunpack.c.l.b16 %v2936
        %v2998 = vunpack.c.h.b16 %v2936
        %v2999 = vunpack.c.l.b16 %v2937
        %v3000 = vunpack.c.h.b16 %v2937
        %v3001 = vpack.c.b16 %v2961, %v2959
        %v3002 = vpack.c.b16 %v2962, %v2960
        %v3003 = vpack.c.b16 %v2965, %v2963
        %v3004 = vpack.c.b16 %v2966, %v2964
        %v3005 = vpack.c.b16 %v2969, %v2967
        %v3006 = vpack.c.b16 %v2970, %v2968
        %v3007 = vpack.c.b16 %v2973, %v2971
        %v3008 = vpack.c.b16 %v2974, %v2972
        %v3009 = vpack.c.b16 %v2977, %v2975
        %v3010 = vpack.c.b16 %v2978, %v2976
        %v3011 = vpack.c.b16 %v2981, %v2979
        %v3012 = vpack.c.b16 %v2982, %v2980
        %v3013 = vpack.c.b16 %v2985, %v2983
        %v3014 = vpack.c.b16 %v2986, %v2984
        %v3015 = vpack.c.b16 %v2989, %v2987
        %v3016 = vpack.c.b16 %v2990, %v2988
        %v3017 = vpack.c.b16 %v2993, %v2991
        %v3018 = vpack.c.b16 %v2994, %v2992
        %v3019 = vpack.c.b16 %v2997, %v2995
        %v3020 = vpack.c.b16 %v2998, %v2996
        %v3021 = vpack.c.b16 %v2999, %v2999
        %v3022 = vpack.c.b16 %v3000, %v3000
        %v3044 = vsel %vm2493, %v2915, 0
        %v3047 = vsel %vm2509, %v3021, 0
        %v3050 = vsel %vm2509, %v3022, 0
        %3052 = vmatpush.bf16.msra.mxu0 %v3015
        %3053 = vmatpush.bf16.msra.mxu0 %v3013
        %3054 = vmatpush.bf16.msra.mxu0 %v3011
        %3055 = vmatpush.bf16.msra.mxu0 %v3009
        %3056 = vmatpush.bf16.msra.mxu0 %v3007
        %3057 = vmatpush.bf16.msra.mxu0 %v3005
        %3058 = vmatpush.bf16.msra.mxu0 %v3003
        %3059 = vmatpush.bf16.msra.mxu0 %v3001
        %3060 = vmatmul.bf16.gmra.mxu0 %v2327
        %v3061 = vpop.f32.mrf.mxu0
        %v3062 = vadd.f32 0.0, %v3061
        %v3063 = vpop.f32.mrf.mxu0
        %v3064 = vadd.f32 0.0, %v3063
        %3065 = vmatmul.bf16.gmra.mxu0 %v2329
        %v3066 = vpop.f32.mrf.mxu0
        %v3067 = vadd.f32 0.0, %v3066
        %v3068 = vpop.f32.mrf.mxu0
        %v3069 = vadd.f32 0.0, %v3068
        %3070 = vmatmul.bf16.gmra.mxu0 %v2331
        %v3071 = vpop.f32.mrf.mxu0
        %v3072 = vadd.f32 0.0, %v3071
        %v3073 = vpop.f32.mrf.mxu0
        %v3074 = vadd.f32 0.0, %v3073
        %3075 = vmatmul.bf16.gmra.mxu0 %v2333
        %v3076 = vpop.f32.mrf.mxu0
        %v3077 = vadd.f32 0.0, %v3076
        %v3078 = vpop.f32.mrf.mxu0
        %v3079 = vadd.f32 0.0, %v3078
        %3080 = vmatmul.bf16.gmra.mxu0 %v2914
        %v3081 = vpop.f32.mrf.mxu0
        %v3082 = vadd.f32 0.0, %v3081
        %v3083 = vpop.f32.mrf.mxu0
        %v3084 = vadd.f32 0.0, %v3083
        %3085 = vdwg.mxu0
        %3086 = vmatpush.bf16.msra.mxu0 0
        %3087 = vmatpush.bf16.msra.mxu0 0
        %3088 = vmatpush.bf16.msra.mxu0 0
        %3089 = vmatpush.bf16.msra.mxu0 0
        %3090 = vmatpush.bf16.msra.mxu0 0
        %3091 = vmatpush.bf16.msra.mxu0 %v3047
        %3092 = vmatpush.bf16.msra.mxu0 %v3019
        %3093 = vmatpush.bf16.msra.mxu0 %v3017
        %3094 = vmatmul.bf16.gmra.mxu0 %v2761
        %v3095 = vpop.f32.mrf.mxu0
        %v3096 = vadd.f32 %v3062, %v3095
        %v3097 = vpop.f32.mrf.mxu0
        %v3098 = vadd.f32 %v3064, %v3097
        %3099 = vmatmul.bf16.gmra.mxu0 %v2764
        %v3100 = vpop.f32.mrf.mxu0
        %v3101 = vadd.f32 %v3067, %v3100
        %v3102 = vpop.f32.mrf.mxu0
        %v3103 = vadd.f32 %v3069, %v3102
        %3104 = vmatmul.bf16.gmra.mxu0 %v2767
        %v3105 = vpop.f32.mrf.mxu0
        %v3106 = vadd.f32 %v3072, %v3105
        %v3107 = vpop.f32.mrf.mxu0
        %v3108 = vadd.f32 %v3074, %v3107
        %3109 = vmatmul.bf16.gmra.mxu0 %v2770
        %v3110 = vpop.f32.mrf.mxu0
        %v3111 = vadd.f32 %v3077, %v3110
        %v3112 = vpop.f32.mrf.mxu0
        %v3113 = vadd.f32 %v3079, %v3112
        %3114 = vmatmul.bf16.gmra.mxu0 %v3044
        %v3115 = vpop.f32.mrf.mxu0
        %v3116 = vadd.f32 %v3082, %v3115
        %v3117 = vpop.f32.mrf.mxu0
        %v3118 = vadd.f32 %v3084, %v3117
        %3119 = vdwg.mxu0
        %3120 = vmatpush.bf16.msra.mxu0 %v3016
        %3121 = vmatpush.bf16.msra.mxu0 %v3014
        %3122 = vmatpush.bf16.msra.mxu0 %v3012
        %3123 = vmatpush.bf16.msra.mxu0 %v3010
        %3124 = vmatpush.bf16.msra.mxu0 %v3008
        %3125 = vmatpush.bf16.msra.mxu0 %v3006
        %3126 = vmatpush.bf16.msra.mxu0 %v3004
        %3127 = vmatpush.bf16.msra.mxu0 %v3002
        %3128 = vmatmul.bf16.gmra.mxu0 %v2327
        %v3129 = vpop.f32.mrf.mxu0
        %v3130 = vadd.f32 0.0, %v3129
        %v3131 = vpop.f32.mrf.mxu0
        %v3132 = vadd.f32 0.0, %v3131
        %3133 = vmatmul.bf16.gmra.mxu0 %v2329
        %v3134 = vpop.f32.mrf.mxu0
        %v3135 = vadd.f32 0.0, %v3134
        %v3136 = vpop.f32.mrf.mxu0
        %v3137 = vadd.f32 0.0, %v3136
        %3138 = vmatmul.bf16.gmra.mxu0 %v2331
        %v3139 = vpop.f32.mrf.mxu0
        %v3140 = vadd.f32 0.0, %v3139
        %v3141 = vpop.f32.mrf.mxu0
        %v3142 = vadd.f32 0.0, %v3141
        %3143 = vmatmul.bf16.gmra.mxu0 %v2333
        %v3144 = vpop.f32.mrf.mxu0
        %v3145 = vadd.f32 0.0, %v3144
        %v3146 = vpop.f32.mrf.mxu0
        %v3147 = vadd.f32 0.0, %v3146
        %3148 = vmatmul.bf16.gmra.mxu0 %v2914
        %v3149 = vpop.f32.mrf.mxu0
        %v3150 = vadd.f32 0.0, %v3149
        %v3151 = vpop.f32.mrf.mxu0
        %v3152 = vadd.f32 0.0, %v3151
        %3153 = vdwg.mxu0
        %3154 = vmatpush.bf16.msra.mxu0 0
        %3155 = vmatpush.bf16.msra.mxu0 0
        %3156 = vmatpush.bf16.msra.mxu0 0
        %3157 = vmatpush.bf16.msra.mxu0 0
        %3158 = vmatpush.bf16.msra.mxu0 0
        %3159 = vmatpush.bf16.msra.mxu0 %v3050
        %3160 = vmatpush.bf16.msra.mxu0 %v3020
        %3161 = vmatpush.bf16.msra.mxu0 %v3018
        %3162 = vmatmul.bf16.gmra.mxu0 %v2761
        %v3163 = vpop.f32.mrf.mxu0
        %v3164 = vadd.f32 %v3130, %v3163
        %v3165 = vpop.f32.mrf.mxu0
        %v3166 = vadd.f32 %v3132, %v3165
        %3167 = vmatmul.bf16.gmra.mxu0 %v2764
        %v3168 = vpop.f32.mrf.mxu0
        %v3169 = vadd.f32 %v3135, %v3168
        %v3170 = vpop.f32.mrf.mxu0
        %v3171 = vadd.f32 %v3137, %v3170
        %3172 = vmatmul.bf16.gmra.mxu0 %v2767
        %v3173 = vpop.f32.mrf.mxu0
        %v3174 = vadd.f32 %v3140, %v3173
        %v3175 = vpop.f32.mrf.mxu0
        %v3176 = vadd.f32 %v3142, %v3175
        %3177 = vmatmul.bf16.gmra.mxu0 %v2770
        %v3178 = vpop.f32.mrf.mxu0
        %v3179 = vadd.f32 %v3145, %v3178
        %v3180 = vpop.f32.mrf.mxu0
        %v3181 = vadd.f32 %v3147, %v3180
        %3182 = vmatmul.bf16.gmra.mxu0 %v3044
        %v3183 = vpop.f32.mrf.mxu0
        %v3184 = vadd.f32 %v3150, %v3183
        %v3185 = vpop.f32.mrf.mxu0
        %v3186 = vadd.f32 %v3152, %v3185
        %3187 = vdwg.mxu0
        %v3188 = vadd.f32 %v2822, %v3096
        %v3189 = vadd.f32 %v2890, %v3164
        %v3190 = vadd.f32 %v2824, %v3098
        %v3191 = vadd.f32 %v2892, %v3166
        %v3192 = vadd.f32 %v2827, %v3101
        %v3193 = vadd.f32 %v2895, %v3169
        %v3194 = vadd.f32 %v2829, %v3103
        %v3195 = vadd.f32 %v2897, %v3171
        %v3196 = vadd.f32 %v2832, %v3106
        %v3197 = vadd.f32 %v2900, %v3174
        %v3198 = vadd.f32 %v2834, %v3108
        %v3199 = vadd.f32 %v2902, %v3176
        %v3200 = vadd.f32 %v2837, %v3111
        %v3201 = vadd.f32 %v2905, %v3179
        %v3202 = vadd.f32 %v2839, %v3113
        %v3203 = vadd.f32 %v2907, %v3181
        %v3204 = vadd.f32 %v2842, %v3116
        %v3205 = vadd.f32 %v2910, %v3184
        %v3206 = vadd.f32 %v2844, %v3118
        %v3207 = vadd.f32 %v2912, %v3186
        %v3208 = vpack.c.bf16 %v2321, %v2319
        %v3209 = vpack.c.bf16 %v2322, %v2320
        %s3210 = scalar_lea.vmem %s3, 504
        %v3211 = vld [vmem:[%s3210] sm:$0xff]
        %v3212 = vld [vmem:[%s3210 + $0x8] sm:$0xff]
        %v3213 = vld [vmem:[%s3210 + $0x10] sm:$0xff]
        %v3214 = vld [vmem:[%s3210 + $0x18] sm:$0xff]
        %v3215 = vld [vmem:[%s3210 + $0x20] sm:$0xff]
        %v3216 = vld [vmem:[%s3210 + $0x28] sm:$0xff]
        %v3217 = vld [vmem:[%s3210 + $0x30] sm:$0xff]
        %v3218 = vld [vmem:[%s3210 + $0x38] sm:$0xff]
        %v3219 = vld [vmem:[%s3210 + $0x40] sm:$0xff]
        %v3220 = vld [vmem:[%s3210 + $0x48] sm:$0xff]
        %v3221 = vld [vmem:[%s3210 + $0x50] sm:$0xff]
        %v3222 = vld [vmem:[%s3210 + $0x58] sm:$0xff]
        %v3223 = vld [vmem:[%s3210 + $0x60] sm:$0xff]
        %v3224 = vld [vmem:[%s3210 + $0x68] sm:$0xff]
        %v3225 = vld [vmem:[%s3210 + $0x70] sm:$0xff]
        %v3226 = vld [vmem:[%s3210 + $0x78] sm:$0xff]
        %v3227 = vld [vmem:[%s3210 + $0x80] sm:$0xff]
        %v3228 = vld [vmem:[%s3210 + $0x88] sm:$0xff]
        %v3229 = vld [vmem:[%s3210 + $0x90] sm:$0xff]
        %v3230 = vld [vmem:[%s3210 + $0x98] sm:$0xff]
        %v3231 = vld [vmem:[%s3210 + $0xa0] sm:$0x11]
        %v3253 = vunpack.c.l.b16 %v3211
        %v3254 = vunpack.c.h.b16 %v3211
        %v3255 = vunpack.c.l.b16 %v3212
        %v3256 = vunpack.c.h.b16 %v3212
        %v3257 = vunpack.c.l.b16 %v3213
        %v3258 = vunpack.c.h.b16 %v3213
        %v3259 = vunpack.c.l.b16 %v3214
        %v3260 = vunpack.c.h.b16 %v3214
        %v3261 = vunpack.c.l.b16 %v3215
        %v3262 = vunpack.c.h.b16 %v3215
        %v3263 = vunpack.c.l.b16 %v3216
        %v3264 = vunpack.c.h.b16 %v3216
        %v3265 = vunpack.c.l.b16 %v3217
        %v3266 = vunpack.c.h.b16 %v3217
        %v3267 = vunpack.c.l.b16 %v3218
        %v3268 = vunpack.c.h.b16 %v3218
        %v3269 = vunpack.c.l.b16 %v3219
        %v3270 = vunpack.c.h.b16 %v3219
        %v3271 = vunpack.c.l.b16 %v3220
        %v3272 = vunpack.c.h.b16 %v3220
        %v3273 = vunpack.c.l.b16 %v3221
        %v3274 = vunpack.c.h.b16 %v3221
        %v3275 = vunpack.c.l.b16 %v3222
        %v3276 = vunpack.c.h.b16 %v3222
        %v3277 = vunpack.c.l.b16 %v3223
        %v3278 = vunpack.c.h.b16 %v3223
        %v3279 = vunpack.c.l.b16 %v3224
        %v3280 = vunpack.c.h.b16 %v3224
        %v3281 = vunpack.c.l.b16 %v3225
        %v3282 = vunpack.c.h.b16 %v3225
        %v3283 = vunpack.c.l.b16 %v3226
        %v3284 = vunpack.c.h.b16 %v3226
        %v3285 = vunpack.c.l.b16 %v3227
        %v3286 = vunpack.c.h.b16 %v3227
        %v3287 = vunpack.c.l.b16 %v3228
        %v3288 = vunpack.c.h.b16 %v3228
        %v3289 = vunpack.c.l.b16 %v3229
        %v3290 = vunpack.c.h.b16 %v3229
        %v3291 = vunpack.c.l.b16 %v3230
        %v3292 = vunpack.c.h.b16 %v3230
        %v3293 = vunpack.c.l.b16 %v3231
        %v3294 = vunpack.c.h.b16 %v3231
        %v3295 = vpack.c.b16 %v3255, %v3253
        %v3296 = vpack.c.b16 %v3256, %v3254
        %v3297 = vpack.c.b16 %v3259, %v3257
        %v3298 = vpack.c.b16 %v3260, %v3258
        %v3299 = vpack.c.b16 %v3263, %v3261
        %v3300 = vpack.c.b16 %v3264, %v3262
        %v3301 = vpack.c.b16 %v3267, %v3265
        %v3302 = vpack.c.b16 %v3268, %v3266
        %v3303 = vpack.c.b16 %v3271, %v3269
        %v3304 = vpack.c.b16 %v3272, %v3270
        %v3305 = vpack.c.b16 %v3275, %v3273
        %v3306 = vpack.c.b16 %v3276, %v3274
        %v3307 = vpack.c.b16 %v3279, %v3277
        %v3308 = vpack.c.b16 %v3280, %v3278
        %v3309 = vpack.c.b16 %v3283, %v3281
        %v3310 = vpack.c.b16 %v3284, %v3282
        %v3311 = vpack.c.b16 %v3287, %v3285
        %v3312 = vpack.c.b16 %v3288, %v3286
        %v3313 = vpack.c.b16 %v3291, %v3289
        %v3314 = vpack.c.b16 %v3292, %v3290
        %v3315 = vpack.c.b16 %v3293, %v3293
        %v3316 = vpack.c.b16 %v3294, %v3294
        %v3338 = vsel %vm2493, %v3209, 0
        %v3341 = vsel %vm2509, %v3315, 0
        %v3344 = vsel %vm2509, %v3316, 0
        %3346 = vmatpush.bf16.msra.mxu0 %v3309
        %3347 = vmatpush.bf16.msra.mxu0 %v3307
        %3348 = vmatpush.bf16.msra.mxu0 %v3305
        %3349 = vmatpush.bf16.msra.mxu0 %v3303
        %3350 = vmatpush.bf16.msra.mxu0 %v3301
        %3351 = vmatpush.bf16.msra.mxu0 %v3299
        %3352 = vmatpush.bf16.msra.mxu0 %v3297
        %3353 = vmatpush.bf16.msra.mxu0 %v3295
        %3354 = vmatmul.bf16.gmra.mxu0 %v2358
        %v3355 = vpop.f32.mrf.mxu0
        %v3356 = vadd.f32 0.0, %v3355
        %v3357 = vpop.f32.mrf.mxu0
        %v3358 = vadd.f32 0.0, %v3357
        %3359 = vmatmul.bf16.gmra.mxu0 %v2360
        %v3360 = vpop.f32.mrf.mxu0
        %v3361 = vadd.f32 0.0, %v3360
        %v3362 = vpop.f32.mrf.mxu0
        %v3363 = vadd.f32 0.0, %v3362
        %3364 = vmatmul.bf16.gmra.mxu0 %v2362
        %v3365 = vpop.f32.mrf.mxu0
        %v3366 = vadd.f32 0.0, %v3365
        %v3367 = vpop.f32.mrf.mxu0
        %v3368 = vadd.f32 0.0, %v3367
        %3369 = vmatmul.bf16.gmra.mxu0 %v2364
        %v3370 = vpop.f32.mrf.mxu0
        %v3371 = vadd.f32 0.0, %v3370
        %v3372 = vpop.f32.mrf.mxu0
        %v3373 = vadd.f32 0.0, %v3372
        %3374 = vmatmul.bf16.gmra.mxu0 %v3208
        %v3375 = vpop.f32.mrf.mxu0
        %v3376 = vadd.f32 0.0, %v3375
        %v3377 = vpop.f32.mrf.mxu0
        %v3378 = vadd.f32 0.0, %v3377
        %3379 = vdwg.mxu0
        %3380 = vmatpush.bf16.msra.mxu0 0
        %3381 = vmatpush.bf16.msra.mxu0 0
        %3382 = vmatpush.bf16.msra.mxu0 0
        %3383 = vmatpush.bf16.msra.mxu0 0
        %3384 = vmatpush.bf16.msra.mxu0 0
        %3385 = vmatpush.bf16.msra.mxu0 %v3341
        %3386 = vmatpush.bf16.msra.mxu0 %v3313
        %3387 = vmatpush.bf16.msra.mxu0 %v3311
        %3388 = vmatmul.bf16.gmra.mxu0 %v2498
        %v3389 = vpop.f32.mrf.mxu0
        %v3390 = vadd.f32 %v3356, %v3389
        %v3391 = vpop.f32.mrf.mxu0
        %v3392 = vadd.f32 %v3358, %v3391
        %3393 = vmatmul.bf16.gmra.mxu0 %v2501
        %v3394 = vpop.f32.mrf.mxu0
        %v3395 = vadd.f32 %v3361, %v3394
        %v3396 = vpop.f32.mrf.mxu0
        %v3397 = vadd.f32 %v3363, %v3396
        %3398 = vmatmul.bf16.gmra.mxu0 %v2504
        %v3399 = vpop.f32.mrf.mxu0
        %v3400 = vadd.f32 %v3366, %v3399
        %v3401 = vpop.f32.mrf.mxu0
        %v3402 = vadd.f32 %v3368, %v3401
        %3403 = vmatmul.bf16.gmra.mxu0 %v2507
        %v3404 = vpop.f32.mrf.mxu0
        %v3405 = vadd.f32 %v3371, %v3404
        %v3406 = vpop.f32.mrf.mxu0
        %v3407 = vadd.f32 %v3373, %v3406
        %3408 = vmatmul.bf16.gmra.mxu0 %v3338
        %v3409 = vpop.f32.mrf.mxu0
        %v3410 = vadd.f32 %v3376, %v3409
        %v3411 = vpop.f32.mrf.mxu0
        %v3412 = vadd.f32 %v3378, %v3411
        %3413 = vdwg.mxu0
        %3414 = vmatpush.bf16.msra.mxu0 %v3310
        %3415 = vmatpush.bf16.msra.mxu0 %v3308
        %3416 = vmatpush.bf16.msra.mxu0 %v3306
        %3417 = vmatpush.bf16.msra.mxu0 %v3304
        %3418 = vmatpush.bf16.msra.mxu0 %v3302
        %3419 = vmatpush.bf16.msra.mxu0 %v3300
        %3420 = vmatpush.bf16.msra.mxu0 %v3298
        %3421 = vmatpush.bf16.msra.mxu0 %v3296
        %3422 = vmatmul.bf16.gmra.mxu0 %v2358
        %v3423 = vpop.f32.mrf.mxu0
        %v3424 = vadd.f32 0.0, %v3423
        %v3425 = vpop.f32.mrf.mxu0
        %v3426 = vadd.f32 0.0, %v3425
        %3427 = vmatmul.bf16.gmra.mxu0 %v2360
        %v3428 = vpop.f32.mrf.mxu0
        %v3429 = vadd.f32 0.0, %v3428
        %v3430 = vpop.f32.mrf.mxu0
        %v3431 = vadd.f32 0.0, %v3430
        %3432 = vmatmul.bf16.gmra.mxu0 %v2362
        %v3433 = vpop.f32.mrf.mxu0
        %v3434 = vadd.f32 0.0, %v3433
        %v3435 = vpop.f32.mrf.mxu0
        %v3436 = vadd.f32 0.0, %v3435
        %3437 = vmatmul.bf16.gmra.mxu0 %v2364
        %v3438 = vpop.f32.mrf.mxu0
        %v3439 = vadd.f32 0.0, %v3438
        %v3440 = vpop.f32.mrf.mxu0
        %v3441 = vadd.f32 0.0, %v3440
        %3442 = vmatmul.bf16.gmra.mxu0 %v3208
        %v3443 = vpop.f32.mrf.mxu0
        %v3444 = vadd.f32 0.0, %v3443
        %v3445 = vpop.f32.mrf.mxu0
        %v3446 = vadd.f32 0.0, %v3445
        %3447 = vdwg.mxu0
        %3448 = vmatpush.bf16.msra.mxu0 0
        %3449 = vmatpush.bf16.msra.mxu0 0
        %3450 = vmatpush.bf16.msra.mxu0 0
        %3451 = vmatpush.bf16.msra.mxu0 0
        %3452 = vmatpush.bf16.msra.mxu0 0
        %3453 = vmatpush.bf16.msra.mxu0 %v3344
        %3454 = vmatpush.bf16.msra.mxu0 %v3314
        %3455 = vmatpush.bf16.msra.mxu0 %v3312
        %3456 = vmatmul.bf16.gmra.mxu0 %v2498
        %v3457 = vpop.f32.mrf.mxu0
        %v3458 = vadd.f32 %v3424, %v3457
        %v3459 = vpop.f32.mrf.mxu0
        %v3460 = vadd.f32 %v3426, %v3459
        %3461 = vmatmul.bf16.gmra.mxu0 %v2501
        %v3462 = vpop.f32.mrf.mxu0
        %v3463 = vadd.f32 %v3429, %v3462
        %v3464 = vpop.f32.mrf.mxu0
        %v3465 = vadd.f32 %v3431, %v3464
        %3466 = vmatmul.bf16.gmra.mxu0 %v2504
        %v3467 = vpop.f32.mrf.mxu0
        %v3468 = vadd.f32 %v3434, %v3467
        %v3469 = vpop.f32.mrf.mxu0
        %v3470 = vadd.f32 %v3436, %v3469
        %3471 = vmatmul.bf16.gmra.mxu0 %v2507
        %v3472 = vpop.f32.mrf.mxu0
        %v3473 = vadd.f32 %v3439, %v3472
        %v3474 = vpop.f32.mrf.mxu0
        %v3475 = vadd.f32 %v3441, %v3474
        %3476 = vmatmul.bf16.gmra.mxu0 %v3338
        %v3477 = vpop.f32.mrf.mxu0
        %v3478 = vadd.f32 %v3444, %v3477
        %v3479 = vpop.f32.mrf.mxu0
        %v3480 = vadd.f32 %v3446, %v3479
        %3481 = vdwg.mxu0
        %v3482 = vadd.f32 %v3188, %v3390
        %v3483 = vadd.f32 %v3189, %v3458
        %v3484 = vadd.f32 %v3190, %v3392
        %v3485 = vadd.f32 %v3191, %v3460
        %v3486 = vadd.f32 %v3192, %v3395
        %v3487 = vadd.f32 %v3193, %v3463
        %v3488 = vadd.f32 %v3194, %v3397
        %v3489 = vadd.f32 %v3195, %v3465
        %v3490 = vadd.f32 %v3196, %v3400
        %v3491 = vadd.f32 %v3197, %v3468
        %v3492 = vadd.f32 %v3198, %v3402
        %v3493 = vadd.f32 %v3199, %v3470
        %v3494 = vadd.f32 %v3200, %v3405
        %v3495 = vadd.f32 %v3201, %v3473
        %v3496 = vadd.f32 %v3202, %v3407
        %v3497 = vadd.f32 %v3203, %v3475
        %v3498 = vadd.f32 %v3204, %v3410
        %v3499 = vadd.f32 %v3205, %v3478
        %v3500 = vadd.f32 %v3206, %v3412
        %v3501 = vadd.f32 %v3207, %v3480
        %v3502 = vpack.c.bf16 %v2323, %v2321
        %v3503 = vpack.c.bf16 %v2324, %v2322
        %s3504 = scalar_lea.vmem %s3, 672
        %v3505 = vld [vmem:[%s3504] sm:$0xff]
        %v3506 = vld [vmem:[%s3504 + $0x8] sm:$0xff]
        %v3507 = vld [vmem:[%s3504 + $0x10] sm:$0xff]
        %v3508 = vld [vmem:[%s3504 + $0x18] sm:$0xff]
        %v3509 = vld [vmem:[%s3504 + $0x20] sm:$0xff]
        %v3510 = vld [vmem:[%s3504 + $0x28] sm:$0xff]
        %v3511 = vld [vmem:[%s3504 + $0x30] sm:$0xff]
        %v3512 = vld [vmem:[%s3504 + $0x38] sm:$0xff]
        %v3513 = vld [vmem:[%s3504 + $0x40] sm:$0xff]
        %v3514 = vld [vmem:[%s3504 + $0x48] sm:$0xff]
        %v3515 = vld [vmem:[%s3504 + $0x50] sm:$0xff]
        %v3516 = vld [vmem:[%s3504 + $0x58] sm:$0xff]
        %v3517 = vld [vmem:[%s3504 + $0x60] sm:$0xff]
        %v3518 = vld [vmem:[%s3504 + $0x68] sm:$0xff]
        %v3519 = vld [vmem:[%s3504 + $0x70] sm:$0xff]
        %v3520 = vld [vmem:[%s3504 + $0x78] sm:$0xff]
        %v3521 = vld [vmem:[%s3504 + $0x80] sm:$0xff]
        %v3522 = vld [vmem:[%s3504 + $0x88] sm:$0xff]
        %v3523 = vld [vmem:[%s3504 + $0x90] sm:$0xff]
        %v3524 = vld [vmem:[%s3504 + $0x98] sm:$0xff]
        %v3525 = vld [vmem:[%s3504 + $0xa0] sm:$0x11]
        %v3547 = vunpack.c.l.b16 %v3505
        %v3548 = vunpack.c.h.b16 %v3505
        %v3549 = vunpack.c.l.b16 %v3506
        %v3550 = vunpack.c.h.b16 %v3506
        %v3551 = vunpack.c.l.b16 %v3507
        %v3552 = vunpack.c.h.b16 %v3507
        %v3553 = vunpack.c.l.b16 %v3508
        %v3554 = vunpack.c.h.b16 %v3508
        %v3555 = vunpack.c.l.b16 %v3509
        %v3556 = vunpack.c.h.b16 %v3509
        %v3557 = vunpack.c.l.b16 %v3510
        %v3558 = vunpack.c.h.b16 %v3510
        %v3559 = vunpack.c.l.b16 %v3511
        %v3560 = vunpack.c.h.b16 %v3511
        %v3561 = vunpack.c.l.b16 %v3512
        %v3562 = vunpack.c.h.b16 %v3512
        %v3563 = vunpack.c.l.b16 %v3513
        %v3564 = vunpack.c.h.b16 %v3513
        %v3565 = vunpack.c.l.b16 %v3514
        %v3566 = vunpack.c.h.b16 %v3514
        %v3567 = vunpack.c.l.b16 %v3515
        %v3568 = vunpack.c.h.b16 %v3515
        %v3569 = vunpack.c.l.b16 %v3516
        %v3570 = vunpack.c.h.b16 %v3516
        %v3571 = vunpack.c.l.b16 %v3517
        %v3572 = vunpack.c.h.b16 %v3517
        %v3573 = vunpack.c.l.b16 %v3518
        %v3574 = vunpack.c.h.b16 %v3518
        %v3575 = vunpack.c.l.b16 %v3519
        %v3576 = vunpack.c.h.b16 %v3519
        %v3577 = vunpack.c.l.b16 %v3520
        %v3578 = vunpack.c.h.b16 %v3520
        %v3579 = vunpack.c.l.b16 %v3521
        %v3580 = vunpack.c.h.b16 %v3521
        %v3581 = vunpack.c.l.b16 %v3522
        %v3582 = vunpack.c.h.b16 %v3522
        %v3583 = vunpack.c.l.b16 %v3523
        %v3584 = vunpack.c.h.b16 %v3523
        %v3585 = vunpack.c.l.b16 %v3524
        %v3586 = vunpack.c.h.b16 %v3524
        %v3587 = vunpack.c.l.b16 %v3525
        %v3588 = vunpack.c.h.b16 %v3525
        %v3589 = vpack.c.b16 %v3549, %v3547
        %v3590 = vpack.c.b16 %v3550, %v3548
        %v3591 = vpack.c.b16 %v3553, %v3551
        %v3592 = vpack.c.b16 %v3554, %v3552
        %v3593 = vpack.c.b16 %v3557, %v3555
        %v3594 = vpack.c.b16 %v3558, %v3556
        %v3595 = vpack.c.b16 %v3561, %v3559
        %v3596 = vpack.c.b16 %v3562, %v3560
        %v3597 = vpack.c.b16 %v3565, %v3563
        %v3598 = vpack.c.b16 %v3566, %v3564
        %v3599 = vpack.c.b16 %v3569, %v3567
        %v3600 = vpack.c.b16 %v3570, %v3568
        %v3601 = vpack.c.b16 %v3573, %v3571
        %v3602 = vpack.c.b16 %v3574, %v3572
        %v3603 = vpack.c.b16 %v3577, %v3575
        %v3604 = vpack.c.b16 %v3578, %v3576
        %v3605 = vpack.c.b16 %v3581, %v3579
        %v3606 = vpack.c.b16 %v3582, %v3580
        %v3607 = vpack.c.b16 %v3585, %v3583
        %v3608 = vpack.c.b16 %v3586, %v3584
        %v3609 = vpack.c.b16 %v3587, %v3587
        %v3610 = vpack.c.b16 %v3588, %v3588
        %v3632 = vsel %vm2493, %v3503, 0
        %v3635 = vsel %vm2509, %v3609, 0
        %v3638 = vsel %vm2509, %v3610, 0
        %3640 = vmatpush.bf16.msra.mxu0 %v3603
        %3641 = vmatpush.bf16.msra.mxu0 %v3601
        %3642 = vmatpush.bf16.msra.mxu0 %v3599
        %3643 = vmatpush.bf16.msra.mxu0 %v3597
        %3644 = vmatpush.bf16.msra.mxu0 %v3595
        %3645 = vmatpush.bf16.msra.mxu0 %v3593
        %3646 = vmatpush.bf16.msra.mxu0 %v3591
        %3647 = vmatpush.bf16.msra.mxu0 %v3589
        %3648 = vmatmul.bf16.gmra.mxu0 %v2329
        %v3649 = vpop.f32.mrf.mxu0
        %v3650 = vadd.f32 0.0, %v3649
        %v3651 = vpop.f32.mrf.mxu0
        %v3652 = vadd.f32 0.0, %v3651
        %3653 = vmatmul.bf16.gmra.mxu0 %v2331
        %v3654 = vpop.f32.mrf.mxu0
        %v3655 = vadd.f32 0.0, %v3654
        %v3656 = vpop.f32.mrf.mxu0
        %v3657 = vadd.f32 0.0, %v3656
        %3658 = vmatmul.bf16.gmra.mxu0 %v2333
        %v3659 = vpop.f32.mrf.mxu0
        %v3660 = vadd.f32 0.0, %v3659
        %v3661 = vpop.f32.mrf.mxu0
        %v3662 = vadd.f32 0.0, %v3661
        %3663 = vmatmul.bf16.gmra.mxu0 %v2914
        %v3664 = vpop.f32.mrf.mxu0
        %v3665 = vadd.f32 0.0, %v3664
        %v3666 = vpop.f32.mrf.mxu0
        %v3667 = vadd.f32 0.0, %v3666
        %3668 = vmatmul.bf16.gmra.mxu0 %v3502
        %v3669 = vpop.f32.mrf.mxu0
        %v3670 = vadd.f32 0.0, %v3669
        %v3671 = vpop.f32.mrf.mxu0
        %v3672 = vadd.f32 0.0, %v3671
        %3673 = vdwg.mxu0
        %3674 = vmatpush.bf16.msra.mxu0 0
        %3675 = vmatpush.bf16.msra.mxu0 0
        %3676 = vmatpush.bf16.msra.mxu0 0
        %3677 = vmatpush.bf16.msra.mxu0 0
        %3678 = vmatpush.bf16.msra.mxu0 0
        %3679 = vmatpush.bf16.msra.mxu0 %v3635
        %3680 = vmatpush.bf16.msra.mxu0 %v3607
        %3681 = vmatpush.bf16.msra.mxu0 %v3605
        %3682 = vmatmul.bf16.gmra.mxu0 %v2764
        %v3683 = vpop.f32.mrf.mxu0
        %v3684 = vadd.f32 %v3650, %v3683
        %v3685 = vpop.f32.mrf.mxu0
        %v3686 = vadd.f32 %v3652, %v3685
        %3687 = vmatmul.bf16.gmra.mxu0 %v2767
        %v3688 = vpop.f32.mrf.mxu0
        %v3689 = vadd.f32 %v3655, %v3688
        %v3690 = vpop.f32.mrf.mxu0
        %v3691 = vadd.f32 %v3657, %v3690
        %3692 = vmatmul.bf16.gmra.mxu0 %v2770
        %v3693 = vpop.f32.mrf.mxu0
        %v3694 = vadd.f32 %v3660, %v3693
        %v3695 = vpop.f32.mrf.mxu0
        %v3696 = vadd.f32 %v3662, %v3695
        %3697 = vmatmul.bf16.gmra.mxu0 %v3044
        %v3698 = vpop.f32.mrf.mxu0
        %v3699 = vadd.f32 %v3665, %v3698
        %v3700 = vpop.f32.mrf.mxu0
        %v3701 = vadd.f32 %v3667, %v3700
        %3702 = vmatmul.bf16.gmra.mxu0 %v3632
        %v3703 = vpop.f32.mrf.mxu0
        %v3704 = vadd.f32 %v3670, %v3703
        %v3705 = vpop.f32.mrf.mxu0
        %v3706 = vadd.f32 %v3672, %v3705
        %3707 = vdwg.mxu0
        %3708 = vmatpush.bf16.msra.mxu0 %v3604
        %3709 = vmatpush.bf16.msra.mxu0 %v3602
        %3710 = vmatpush.bf16.msra.mxu0 %v3600
        %3711 = vmatpush.bf16.msra.mxu0 %v3598
        %3712 = vmatpush.bf16.msra.mxu0 %v3596
        %3713 = vmatpush.bf16.msra.mxu0 %v3594
        %3714 = vmatpush.bf16.msra.mxu0 %v3592
        %3715 = vmatpush.bf16.msra.mxu0 %v3590
        %3716 = vmatmul.bf16.gmra.mxu0 %v2329
        %v3717 = vpop.f32.mrf.mxu0
        %v3718 = vadd.f32 0.0, %v3717
        %v3719 = vpop.f32.mrf.mxu0
        %v3720 = vadd.f32 0.0, %v3719
        %3721 = vmatmul.bf16.gmra.mxu0 %v2331
        %v3722 = vpop.f32.mrf.mxu0
        %v3723 = vadd.f32 0.0, %v3722
        %v3724 = vpop.f32.mrf.mxu0
        %v3725 = vadd.f32 0.0, %v3724
        %3726 = vmatmul.bf16.gmra.mxu0 %v2333
        %v3727 = vpop.f32.mrf.mxu0
        %v3728 = vadd.f32 0.0, %v3727
        %v3729 = vpop.f32.mrf.mxu0
        %v3730 = vadd.f32 0.0, %v3729
        %3731 = vmatmul.bf16.gmra.mxu0 %v2914
        %v3732 = vpop.f32.mrf.mxu0
        %v3733 = vadd.f32 0.0, %v3732
        %v3734 = vpop.f32.mrf.mxu0
        %v3735 = vadd.f32 0.0, %v3734
        %3736 = vmatmul.bf16.gmra.mxu0 %v3502
        %v3737 = vpop.f32.mrf.mxu0
        %v3738 = vadd.f32 0.0, %v3737
        %v3739 = vpop.f32.mrf.mxu0
        %v3740 = vadd.f32 0.0, %v3739
        %3741 = vdwg.mxu0
        %3742 = vmatpush.bf16.msra.mxu0 0
        %3743 = vmatpush.bf16.msra.mxu0 0
        %3744 = vmatpush.bf16.msra.mxu0 0
        %3745 = vmatpush.bf16.msra.mxu0 0
        %3746 = vmatpush.bf16.msra.mxu0 0
        %3747 = vmatpush.bf16.msra.mxu0 %v3638
        %3748 = vmatpush.bf16.msra.mxu0 %v3608
        %3749 = vmatpush.bf16.msra.mxu0 %v3606
        %3750 = vmatmul.bf16.gmra.mxu0 %v2764
        %v3751 = vpop.f32.mrf.mxu0
        %v3752 = vadd.f32 %v3718, %v3751
        %v3753 = vpop.f32.mrf.mxu0
        %v3754 = vadd.f32 %v3720, %v3753
        %3755 = vmatmul.bf16.gmra.mxu0 %v2767
        %v3756 = vpop.f32.mrf.mxu0
        %v3757 = vadd.f32 %v3723, %v3756
        %v3758 = vpop.f32.mrf.mxu0
        %v3759 = vadd.f32 %v3725, %v3758
        %3760 = vmatmul.bf16.gmra.mxu0 %v2770
        %v3761 = vpop.f32.mrf.mxu0
        %v3762 = vadd.f32 %v3728, %v3761
        %v3763 = vpop.f32.mrf.mxu0
        %v3764 = vadd.f32 %v3730, %v3763
        %3765 = vmatmul.bf16.gmra.mxu0 %v3044
        %v3766 = vpop.f32.mrf.mxu0
        %v3767 = vadd.f32 %v3733, %v3766
        %v3768 = vpop.f32.mrf.mxu0
        %v3769 = vadd.f32 %v3735, %v3768
        %3770 = vmatmul.bf16.gmra.mxu0 %v3632
        %v3771 = vpop.f32.mrf.mxu0
        %v3772 = vadd.f32 %v3738, %v3771
        %v3773 = vpop.f32.mrf.mxu0
        %v3774 = vadd.f32 %v3740, %v3773
        %3775 = vdwg.mxu0
        %v3776 = vadd.f32 %v3482, %v3684
        %v3777 = vadd.f32 %v3483, %v3752
        %v3778 = vadd.f32 %v3484, %v3686
        %v3779 = vadd.f32 %v3485, %v3754
        %v3780 = vadd.f32 %v3486, %v3689
        %v3781 = vadd.f32 %v3487, %v3757
        %v3782 = vadd.f32 %v3488, %v3691
        %v3783 = vadd.f32 %v3489, %v3759
        %v3784 = vadd.f32 %v3490, %v3694
        %v3785 = vadd.f32 %v3491, %v3762
        %v3786 = vadd.f32 %v3492, %v3696
        %v3787 = vadd.f32 %v3493, %v3764
        %v3788 = vadd.f32 %v3494, %v3699
        %v3789 = vadd.f32 %v3495, %v3767
        %v3790 = vadd.f32 %v3496, %v3701
        %v3791 = vadd.f32 %v3497, %v3769
        %v3792 = vadd.f32 %v3498, %v3704
        %v3793 = vadd.f32 %v3499, %v3772
        %v3794 = vadd.f32 %v3500, %v3706
        %v3795 = vadd.f32 %v3501, %v3774
        %v3796 = vld [vmem:[%s4] sm:$0x3]
        %v3798 = vperm.slane %v3796, 0
        %v3799 = vperm.slane %v3796, 1
        %v3802 = vadd.f32 %v3776, %v3798
        %v3803 = vadd.f32 %v3777, %v3799
        %v3804 = vadd.f32 %v3778, %v3798
        %v3805 = vadd.f32 %v3779, %v3799
        %v3806 = vadd.f32 %v3780, %v3798
        %v3807 = vadd.f32 %v3781, %v3799
        %v3808 = vadd.f32 %v3782, %v3798
        %v3809 = vadd.f32 %v3783, %v3799
        %v3810 = vadd.f32 %v3784, %v3798
        %v3811 = vadd.f32 %v3785, %v3799
        %v3812 = vadd.f32 %v3786, %v3798
        %v3813 = vadd.f32 %v3787, %v3799
        %v3814 = vadd.f32 %v3788, %v3798
        %v3815 = vadd.f32 %v3789, %v3799
        %v3816 = vadd.f32 %v3790, %v3798
        %v3817 = vadd.f32 %v3791, %v3799
        %v3818 = vadd.f32 %v3792, %v3798
        %v3819 = vadd.f32 %v3793, %v3799
        %v3820 = vadd.f32 %v3794, %v3798
        %v3821 = vadd.f32 %v3795, %v3799
        %v3822 = vmax.f32 %v3802, 0.0
        %v3823 = vmax.f32 %v3803, 0.0
        %v3824 = vmax.f32 %v3804, 0.0
        %v3825 = vmax.f32 %v3805, 0.0
        %v3826 = vmax.f32 %v3806, 0.0
        %v3827 = vmax.f32 %v3807, 0.0
        %v3828 = vmax.f32 %v3808, 0.0
        %v3829 = vmax.f32 %v3809, 0.0
        %v3830 = vmax.f32 %v3810, 0.0
        %v3831 = vmax.f32 %v3811, 0.0
        %v3832 = vmax.f32 %v3812, 0.0
        %v3833 = vmax.f32 %v3813, 0.0
        %v3834 = vmax.f32 %v3814, 0.0
        %v3835 = vmax.f32 %v3815, 0.0
        %v3836 = vmax.f32 %v3816, 0.0
        %v3837 = vmax.f32 %v3817, 0.0
        %v3838 = vmax.f32 %v3818, 0.0
        %v3839 = vmax.f32 %v3819, 0.0
        %v3840 = vmax.f32 %v3820, 0.0
        %v3841 = vmax.f32 %v3821, 0.0
        %v3842 = vmax.f32 %v3822, %v3824
        %v3843 = vmax.f32 %v3823, %v3825
        %v3844 = vmax.f32 %v3826, %v3828
        %v3845 = vmax.f32 %v3827, %v3829
        %v3846 = vmax.f32 %v3830, %v3832
        %v3847 = vmax.f32 %v3831, %v3833
        %v3848 = vmax.f32 %v3834, %v3836
        %v3849 = vmax.f32 %v3835, %v3837
        %v3850 = vmax.f32 %v3838, %v3840
        %v3851 = vmax.f32 %v3839, %v3841
        %3862 = vrot.lane.b32.xlu0 %v3842, 112
        %v3863 = vpop.permute.xlu0 %3862
        %3864 = vrot.lane.b32.xlu0 %v3843, 112
        %v3865 = vpop.permute.xlu0 %3864
        %3866 = vrot.lane.b32.xlu0 %v3844, 112
        %v3867 = vpop.permute.xlu0 %3866
        %3868 = vrot.lane.b32.xlu0 %v3845, 112
        %v3869 = vpop.permute.xlu0 %3868
        %3870 = vrot.lane.b32.xlu0 %v3846, 112
        %v3871 = vpop.permute.xlu0 %3870
        %3872 = vrot.lane.b32.xlu0 %v3847, 112
        %v3873 = vpop.permute.xlu0 %3872
        %3874 = vrot.lane.b32.xlu0 %v3848, 112
        %v3875 = vpop.permute.xlu0 %3874
        %3876 = vrot.lane.b32.xlu0 %v3849, 112
        %v3877 = vpop.permute.xlu0 %3876
        %3878 = vrot.lane.b32.xlu0 %v3850, 112
        %v3879 = vpop.permute.xlu0 %3878
        %3880 = vrot.lane.b32.xlu0 %v3851, 112
        %v3881 = vpop.permute.xlu0 %3880
        %vm3882 = vcmask 916480
        %v3883 = vsel %vm3882, %v3863, %v3865
        %v3884 = vsel %vm3882, %v3867, %v3869
        %v3885 = vsel %vm3882, %v3871, %v3873
        %v3886 = vsel %vm3882, %v3875, %v3877
        %v3887 = vsel %vm3882, %v3879, %v3881
        %v3898 = vmax.f32 %v3842, %v3883
        %v3899 = vmax.f32 %v3843, %v3865
        %v3900 = vmax.f32 %v3844, %v3884
        %v3901 = vmax.f32 %v3845, %v3869
        %v3902 = vmax.f32 %v3846, %v3885
        %v3903 = vmax.f32 %v3847, %v3873
        %v3904 = vmax.f32 %v3848, %v3886
        %v3905 = vmax.f32 %v3849, %v3877
        %v3906 = vmax.f32 %v3850, %v3887
        %v3907 = vmax.f32 %v3851, %v3881
        %v3908 = vpack.c.bf16 %v3898, %v3898
        %v3909 = vpack.c.bf16 %v3899, %v3899
        %v3910 = vld [vmem:[%s5] sm:$0xf]
        %v3911 = vld [vmem:[%s5 + $0x4] sm:$0xf]
        %v3912 = vld [vmem:[%s5 + $0x8] sm:$0xf]
        %v3913 = vld [vmem:[%s5 + $0xc] sm:$0xf]
        %v3914 = vld [vmem:[%s5 + $0x10] sm:$0xf]
        %v3915 = vld [vmem:[%s5 + $0x14] sm:$0xf]
        %v3916 = vld [vmem:[%s5 + $0x18] sm:$0xf]
        %v3917 = vld [vmem:[%s5 + $0x1c] sm:$0xf]
        %v3918 = vld [vmem:[%s5 + $0x20] sm:$0xf]
        %v3919 = vld [vmem:[%s5 + $0x24] sm:$0xf]
        %v3920 = vld [vmem:[%s5 + $0x28] sm:$0xf]
        %v3921 = vld [vmem:[%s5 + $0x2c] sm:$0xf]
        %v3922 = vld [vmem:[%s5 + $0x30] sm:$0xf]
        %v3923 = vld [vmem:[%s5 + $0x34] sm:$0xf]
        %v3924 = vld [vmem:[%s5 + $0x38] sm:$0xf]
        %v3925 = vld [vmem:[%s5 + $0x3c] sm:$0xf]
        %v3926 = vld [vmem:[%s5 + $0x40] sm:$0xf]
        %v3927 = vld [vmem:[%s5 + $0x44] sm:$0xf]
        %v3928 = vpack.c.bf16 %v3900, %v3900
        %v3929 = vpack.c.bf16 %v3901, %v3901
        %s3930 = scalar_lea.vmem %s5, 72
        %v3931 = vld [vmem:[%s3930] sm:$0xf]
        %v3932 = vld [vmem:[%s3930 + $0x4] sm:$0xf]
        %v3933 = vld [vmem:[%s3930 + $0x8] sm:$0xf]
        %v3934 = vld [vmem:[%s3930 + $0xc] sm:$0xf]
        %v3935 = vld [vmem:[%s3930 + $0x10] sm:$0xf]
        %v3936 = vld [vmem:[%s3930 + $0x14] sm:$0xf]
        %v3937 = vld [vmem:[%s3930 + $0x18] sm:$0xf]
        %v3938 = vld [vmem:[%s3930 + $0x1c] sm:$0xf]
        %v3939 = vld [vmem:[%s3930 + $0x20] sm:$0xf]
        %v3940 = vld [vmem:[%s3930 + $0x24] sm:$0xf]
        %v3941 = vld [vmem:[%s3930 + $0x28] sm:$0xf]
        %v3942 = vld [vmem:[%s3930 + $0x2c] sm:$0xf]
        %v3943 = vld [vmem:[%s3930 + $0x30] sm:$0xf]
        %v3944 = vld [vmem:[%s3930 + $0x34] sm:$0xf]
        %v3945 = vld [vmem:[%s3930 + $0x38] sm:$0xf]
        %v3946 = vld [vmem:[%s3930 + $0x3c] sm:$0xf]
        %v3947 = vld [vmem:[%s3930 + $0x40] sm:$0xf]
        %v3948 = vld [vmem:[%s3930 + $0x44] sm:$0xf]
        %v3967 = vunpack.c.l.b16 %v3931
        %v3968 = vunpack.c.l.b16 %v3932
        %v3969 = vunpack.c.l.b16 %v3933
        %v3970 = vunpack.c.l.b16 %v3934
        %v3971 = vunpack.c.l.b16 %v3935
        %v3972 = vunpack.c.l.b16 %v3936
        %v3973 = vunpack.c.l.b16 %v3937
        %v3974 = vunpack.c.l.b16 %v3938
        %v3975 = vunpack.c.l.b16 %v3939
        %v3976 = vunpack.c.l.b16 %v3940
        %v3977 = vunpack.c.l.b16 %v3941
        %v3978 = vunpack.c.l.b16 %v3942
        %v3979 = vunpack.c.l.b16 %v3943
        %v3980 = vunpack.c.l.b16 %v3944
        %v3981 = vunpack.c.l.b16 %v3945
        %v3982 = vunpack.c.l.b16 %v3946
        %v3983 = vunpack.c.l.b16 %v3947
        %v3984 = vunpack.c.l.b16 %v3948
        %v3985 = vpack.c.b16 %v3968, %v3967
        %v3986 = vpack.c.b16 %v3970, %v3969
        %v3987 = vpack.c.b16 %v3972, %v3971
        %v3988 = vpack.c.b16 %v3974, %v3973
        %v3989 = vpack.c.b16 %v3976, %v3975
        %v3990 = vpack.c.b16 %v3978, %v3977
        %v3991 = vpack.c.b16 %v3980, %v3979
        %v3992 = vpack.c.b16 %v3982, %v3981
        %v3993 = vpack.c.b16 %v3984, %v3983
        %vm4003 = vcmask 130048
        %v4005 = vsel %vm4003, %v3929, 0
        %4007 = vmatpush.bf16.msra.mxu0 %v3992
        %4008 = vmatpush.bf16.msra.mxu0 %v3991
        %4009 = vmatpush.bf16.msra.mxu0 %v3990
        %4010 = vmatpush.bf16.msra.mxu0 %v3989
        %4011 = vmatpush.bf16.msra.mxu0 %v3988
        %4012 = vmatpush.bf16.msra.mxu0 %v3987
        %4013 = vmatpush.bf16.msra.mxu0 %v3986
        %4014 = vmatpush.bf16.msra.mxu0 %v3985
        %4015 = vmatmul.bf16.gmra.mxu0 %v3928
        %v4016 = vpop.f32.mrf.mxu0
        %v4017 = vadd.f32 0.0, %v4016
        %v4018 = vpop.f32.mrf.mxu0
        %4019 = vdwg.mxu0
        %4020 = vmatpush.bf16.msra.mxu0 0
        %4021 = vmatpush.bf16.msra.mxu0 0
        %4022 = vmatpush.bf16.msra.mxu0 0
        %4023 = vmatpush.bf16.msra.mxu0 0
        %4024 = vmatpush.bf16.msra.mxu0 0
        %4025 = vmatpush.bf16.msra.mxu0 0
        %4026 = vmatpush.bf16.msra.mxu0 0
        %4027 = vmatpush.bf16.msra.mxu0 %v3993
        %4028 = vmatmul.bf16.gmra.mxu0 %v4005
        %v4029 = vpop.f32.mrf.mxu0
        %v4030 = vadd.f32 %v4017, %v4029
        %v4031 = vpop.f32.mrf.mxu0
        %4032 = vdwg.mxu0
        %v4051 = vunpack.c.l.b16 %v3910
        %v4052 = vunpack.c.l.b16 %v3911
        %v4053 = vunpack.c.l.b16 %v3912
        %v4054 = vunpack.c.l.b16 %v3913
        %v4055 = vunpack.c.l.b16 %v3914
        %v4056 = vunpack.c.l.b16 %v3915
        %v4057 = vunpack.c.l.b16 %v3916
        %v4058 = vunpack.c.l.b16 %v3917
        %v4059 = vunpack.c.l.b16 %v3918
        %v4060 = vunpack.c.l.b16 %v3919
        %v4061 = vunpack.c.l.b16 %v3920
        %v4062 = vunpack.c.l.b16 %v3921
        %v4063 = vunpack.c.l.b16 %v3922
        %v4064 = vunpack.c.l.b16 %v3923
        %v4065 = vunpack.c.l.b16 %v3924
        %v4066 = vunpack.c.l.b16 %v3925
        %v4067 = vunpack.c.l.b16 %v3926
        %v4068 = vunpack.c.l.b16 %v3927
        %v4069 = vpack.c.b16 %v4052, %v4051
        %v4070 = vpack.c.b16 %v4054, %v4053
        %v4071 = vpack.c.b16 %v4056, %v4055
        %v4072 = vpack.c.b16 %v4058, %v4057
        %v4073 = vpack.c.b16 %v4060, %v4059
        %v4074 = vpack.c.b16 %v4062, %v4061
        %v4075 = vpack.c.b16 %v4064, %v4063
        %v4076 = vpack.c.b16 %v4066, %v4065
        %v4077 = vpack.c.b16 %v4068, %v4067
        %v4088 = vsel %vm4003, %v3909, 0
        %4090 = vmatpush.bf16.msra.mxu0 %v4076
        %4091 = vmatpush.bf16.msra.mxu0 %v4075
        %4092 = vmatpush.bf16.msra.mxu0 %v4074
        %4093 = vmatpush.bf16.msra.mxu0 %v4073
        %4094 = vmatpush.bf16.msra.mxu0 %v4072
        %4095 = vmatpush.bf16.msra.mxu0 %v4071
        %4096 = vmatpush.bf16.msra.mxu0 %v4070
        %4097 = vmatpush.bf16.msra.mxu0 %v4069
        %4098 = vmatmul.bf16.gmra.mxu0 %v3908
        %v4099 = vpop.f32.mrf.mxu0
        %v4100 = vadd.f32 %v4030, %v4099
        %v4101 = vpop.f32.mrf.mxu0
        %4102 = vdwg.mxu0
        %4103 = vmatpush.bf16.msra.mxu0 0
        %4104 = vmatpush.bf16.msra.mxu0 0
        %4105 = vmatpush.bf16.msra.mxu0 0
        %4106 = vmatpush.bf16.msra.mxu0 0
        %4107 = vmatpush.bf16.msra.mxu0 0
        %4108 = vmatpush.bf16.msra.mxu0 0
        %4109 = vmatpush.bf16.msra.mxu0 0
        %4110 = vmatpush.bf16.msra.mxu0 %v4077
        %4111 = vmatmul.bf16.gmra.mxu0 %v4088
        %v4112 = vpop.f32.mrf.mxu0
        %v4113 = vadd.f32 %v4100, %v4112
        %v4114 = vpop.f32.mrf.mxu0
        %4115 = vdwg.mxu0
        %v4116 = vpack.c.bf16 %v3902, %v3902
        %v4117 = vpack.c.bf16 %v3903, %v3903
        %s4118 = scalar_lea.vmem %s5, 144
        %v4119 = vld [vmem:[%s4118] sm:$0xf]
        %v4120 = vld [vmem:[%s4118 + $0x4] sm:$0xf]
        %v4121 = vld [vmem:[%s4118 + $0x8] sm:$0xf]
        %v4122 = vld [vmem:[%s4118 + $0xc] sm:$0xf]
        %v4123 = vld [vmem:[%s4118 + $0x10] sm:$0xf]
        %v4124 = vld [vmem:[%s4118 + $0x14] sm:$0xf]
        %v4125 = vld [vmem:[%s4118 + $0x18] sm:$0xf]
        %v4126 = vld [vmem:[%s4118 + $0x1c] sm:$0xf]
        %v4127 = vld [vmem:[%s4118 + $0x20] sm:$0xf]
        %v4128 = vld [vmem:[%s4118 + $0x24] sm:$0xf]
        %v4129 = vld [vmem:[%s4118 + $0x28] sm:$0xf]
        %v4130 = vld [vmem:[%s4118 + $0x2c] sm:$0xf]
        %v4131 = vld [vmem:[%s4118 + $0x30] sm:$0xf]
        %v4132 = vld [vmem:[%s4118 + $0x34] sm:$0xf]
        %v4133 = vld [vmem:[%s4118 + $0x38] sm:$0xf]
        %v4134 = vld [vmem:[%s4118 + $0x3c] sm:$0xf]
        %v4135 = vld [vmem:[%s4118 + $0x40] sm:$0xf]
        %v4136 = vld [vmem:[%s4118 + $0x44] sm:$0xf]
        %v4155 = vunpack.c.l.b16 %v4119
        %v4156 = vunpack.c.l.b16 %v4120
        %v4157 = vunpack.c.l.b16 %v4121
        %v4158 = vunpack.c.l.b16 %v4122
        %v4159 = vunpack.c.l.b16 %v4123
        %v4160 = vunpack.c.l.b16 %v4124
        %v4161 = vunpack.c.l.b16 %v4125
        %v4162 = vunpack.c.l.b16 %v4126
        %v4163 = vunpack.c.l.b16 %v4127
        %v4164 = vunpack.c.l.b16 %v4128
        %v4165 = vunpack.c.l.b16 %v4129
        %v4166 = vunpack.c.l.b16 %v4130
        %v4167 = vunpack.c.l.b16 %v4131
        %v4168 = vunpack.c.l.b16 %v4132
        %v4169 = vunpack.c.l.b16 %v4133
        %v4170 = vunpack.c.l.b16 %v4134
        %v4171 = vunpack.c.l.b16 %v4135
        %v4172 = vunpack.c.l.b16 %v4136
        %v4173 = vpack.c.b16 %v4156, %v4155
        %v4174 = vpack.c.b16 %v4158, %v4157
        %v4175 = vpack.c.b16 %v4160, %v4159
        %v4176 = vpack.c.b16 %v4162, %v4161
        %v4177 = vpack.c.b16 %v4164, %v4163
        %v4178 = vpack.c.b16 %v4166, %v4165
        %v4179 = vpack.c.b16 %v4168, %v4167
        %v4180 = vpack.c.b16 %v4170, %v4169
        %v4181 = vpack.c.b16 %v4172, %v4171
        %v4192 = vsel %vm4003, %v4117, 0
        %4194 = vmatpush.bf16.msra.mxu0 %v4180
        %4195 = vmatpush.bf16.msra.mxu0 %v4179
        %4196 = vmatpush.bf16.msra.mxu0 %v4178
        %4197 = vmatpush.bf16.msra.mxu0 %v4177
        %4198 = vmatpush.bf16.msra.mxu0 %v4176
        %4199 = vmatpush.bf16.msra.mxu0 %v4175
        %4200 = vmatpush.bf16.msra.mxu0 %v4174
        %4201 = vmatpush.bf16.msra.mxu0 %v4173
        %4202 = vmatmul.bf16.gmra.mxu0 %v4116
        %v4203 = vpop.f32.mrf.mxu0
        %v4204 = vadd.f32 0.0, %v4203
        %v4205 = vpop.f32.mrf.mxu0
        %4206 = vdwg.mxu0
        %4207 = vmatpush.bf16.msra.mxu0 0
        %4208 = vmatpush.bf16.msra.mxu0 0
        %4209 = vmatpush.bf16.msra.mxu0 0
        %4210 = vmatpush.bf16.msra.mxu0 0
        %4211 = vmatpush.bf16.msra.mxu0 0
        %4212 = vmatpush.bf16.msra.mxu0 0
        %4213 = vmatpush.bf16.msra.mxu0 0
        %4214 = vmatpush.bf16.msra.mxu0 %v4181
        %4215 = vmatmul.bf16.gmra.mxu0 %v4192
        %v4216 = vpop.f32.mrf.mxu0
        %v4217 = vadd.f32 %v4204, %v4216
        %v4218 = vpop.f32.mrf.mxu0
        %4219 = vdwg.mxu0
        %v4220 = vadd.f32 %v4113, %v4217
        %v4221 = vpack.c.bf16 %v3904, %v3904
        %v4222 = vpack.c.bf16 %v3905, %v3905
        %s4223 = scalar_lea.vmem %s5, 216
        %v4224 = vld [vmem:[%s4223] sm:$0xf]
        %v4225 = vld [vmem:[%s4223 + $0x4] sm:$0xf]
        %v4226 = vld [vmem:[%s4223 + $0x8] sm:$0xf]
        %v4227 = vld [vmem:[%s4223 + $0xc] sm:$0xf]
        %v4228 = vld [vmem:[%s4223 + $0x10] sm:$0xf]
        %v4229 = vld [vmem:[%s4223 + $0x14] sm:$0xf]
        %v4230 = vld [vmem:[%s4223 + $0x18] sm:$0xf]
        %v4231 = vld [vmem:[%s4223 + $0x1c] sm:$0xf]
        %v4232 = vld [vmem:[%s4223 + $0x20] sm:$0xf]
        %v4233 = vld [vmem:[%s4223 + $0x24] sm:$0xf]
        %v4234 = vld [vmem:[%s4223 + $0x28] sm:$0xf]
        %v4235 = vld [vmem:[%s4223 + $0x2c] sm:$0xf]
        %v4236 = vld [vmem:[%s4223 + $0x30] sm:$0xf]
        %v4237 = vld [vmem:[%s4223 + $0x34] sm:$0xf]
        %v4238 = vld [vmem:[%s4223 + $0x38] sm:$0xf]
        %v4239 = vld [vmem:[%s4223 + $0x3c] sm:$0xf]
        %v4240 = vld [vmem:[%s4223 + $0x40] sm:$0xf]
        %v4241 = vld [vmem:[%s4223 + $0x44] sm:$0xf]
        %v4260 = vunpack.c.l.b16 %v4224
        %v4261 = vunpack.c.l.b16 %v4225
        %v4262 = vunpack.c.l.b16 %v4226
        %v4263 = vunpack.c.l.b16 %v4227
        %v4264 = vunpack.c.l.b16 %v4228
        %v4265 = vunpack.c.l.b16 %v4229
        %v4266 = vunpack.c.l.b16 %v4230
        %v4267 = vunpack.c.l.b16 %v4231
        %v4268 = vunpack.c.l.b16 %v4232
        %v4269 = vunpack.c.l.b16 %v4233
        %v4270 = vunpack.c.l.b16 %v4234
        %v4271 = vunpack.c.l.b16 %v4235
        %v4272 = vunpack.c.l.b16 %v4236
        %v4273 = vunpack.c.l.b16 %v4237
        %v4274 = vunpack.c.l.b16 %v4238
        %v4275 = vunpack.c.l.b16 %v4239
        %v4276 = vunpack.c.l.b16 %v4240
        %v4277 = vunpack.c.l.b16 %v4241
        %v4278 = vpack.c.b16 %v4261, %v4260
        %v4279 = vpack.c.b16 %v4263, %v4262
        %v4280 = vpack.c.b16 %v4265, %v4264
        %v4281 = vpack.c.b16 %v4267, %v4266
        %v4282 = vpack.c.b16 %v4269, %v4268
        %v4283 = vpack.c.b16 %v4271, %v4270
        %v4284 = vpack.c.b16 %v4273, %v4272
        %v4285 = vpack.c.b16 %v4275, %v4274
        %v4286 = vpack.c.b16 %v4277, %v4276
        %v4297 = vsel %vm4003, %v4222, 0
        %4299 = vmatpush.bf16.msra.mxu0 %v4285
        %4300 = vmatpush.bf16.msra.mxu0 %v4284
        %4301 = vmatpush.bf16.msra.mxu0 %v4283
        %4302 = vmatpush.bf16.msra.mxu0 %v4282
        %4303 = vmatpush.bf16.msra.mxu0 %v4281
        %4304 = vmatpush.bf16.msra.mxu0 %v4280
        %4305 = vmatpush.bf16.msra.mxu0 %v4279
        %4306 = vmatpush.bf16.msra.mxu0 %v4278
        %4307 = vmatmul.bf16.gmra.mxu0 %v4221
        %v4308 = vpop.f32.mrf.mxu0
        %v4309 = vadd.f32 0.0, %v4308
        %v4310 = vpop.f32.mrf.mxu0
        %4311 = vdwg.mxu0
        %4312 = vmatpush.bf16.msra.mxu0 0
        %4313 = vmatpush.bf16.msra.mxu0 0
        %4314 = vmatpush.bf16.msra.mxu0 0
        %4315 = vmatpush.bf16.msra.mxu0 0
        %4316 = vmatpush.bf16.msra.mxu0 0
        %4317 = vmatpush.bf16.msra.mxu0 0
        %4318 = vmatpush.bf16.msra.mxu0 0
        %4319 = vmatpush.bf16.msra.mxu0 %v4286
        %4320 = vmatmul.bf16.gmra.mxu0 %v4297
        %v4321 = vpop.f32.mrf.mxu0
        %v4322 = vadd.f32 %v4309, %v4321
        %v4323 = vpop.f32.mrf.mxu0
        %4324 = vdwg.mxu0
        %v4325 = vadd.f32 %v4220, %v4322
        %v4326 = vpack.c.bf16 %v3906, %v3906
        %v4327 = vpack.c.bf16 %v3907, %v3907
        %s4328 = scalar_lea.vmem %s5, 288
        %v4329 = vld [vmem:[%s4328] sm:$0xf]
        %v4330 = vld [vmem:[%s4328 + $0x4] sm:$0xf]
        %v4331 = vld [vmem:[%s4328 + $0x8] sm:$0xf]
        %v4332 = vld [vmem:[%s4328 + $0xc] sm:$0xf]
        %v4333 = vld [vmem:[%s4328 + $0x10] sm:$0xf]
        %v4334 = vld [vmem:[%s4328 + $0x14] sm:$0xf]
        %v4335 = vld [vmem:[%s4328 + $0x18] sm:$0xf]
        %v4336 = vld [vmem:[%s4328 + $0x1c] sm:$0xf]
        %v4337 = vld [vmem:[%s4328 + $0x20] sm:$0xf]
        %v4338 = vld [vmem:[%s4328 + $0x24] sm:$0xf]
        %v4339 = vld [vmem:[%s4328 + $0x28] sm:$0xf]
        %v4340 = vld [vmem:[%s4328 + $0x2c] sm:$0xf]
        %v4341 = vld [vmem:[%s4328 + $0x30] sm:$0xf]
        %v4342 = vld [vmem:[%s4328 + $0x34] sm:$0xf]
        %v4343 = vld [vmem:[%s4328 + $0x38] sm:$0xf]
        %v4344 = vld [vmem:[%s4328 + $0x3c] sm:$0xf]
        %v4345 = vld [vmem:[%s4328 + $0x40] sm:$0xf]
        %v4346 = vld [vmem:[%s4328 + $0x44] sm:$0xf]
        %v4365 = vunpack.c.l.b16 %v4329
        %v4366 = vunpack.c.l.b16 %v4330
        %v4367 = vunpack.c.l.b16 %v4331
        %v4368 = vunpack.c.l.b16 %v4332
        %v4369 = vunpack.c.l.b16 %v4333
        %v4370 = vunpack.c.l.b16 %v4334
        %v4371 = vunpack.c.l.b16 %v4335
        %v4372 = vunpack.c.l.b16 %v4336
        %v4373 = vunpack.c.l.b16 %v4337
        %v4374 = vunpack.c.l.b16 %v4338
        %v4375 = vunpack.c.l.b16 %v4339
        %v4376 = vunpack.c.l.b16 %v4340
        %v4377 = vunpack.c.l.b16 %v4341
        %v4378 = vunpack.c.l.b16 %v4342
        %v4379 = vunpack.c.l.b16 %v4343
        %v4380 = vunpack.c.l.b16 %v4344
        %v4381 = vunpack.c.l.b16 %v4345
        %v4382 = vunpack.c.l.b16 %v4346
        %v4383 = vpack.c.b16 %v4366, %v4365
        %v4384 = vpack.c.b16 %v4368, %v4367
        %v4385 = vpack.c.b16 %v4370, %v4369
        %v4386 = vpack.c.b16 %v4372, %v4371
        %v4387 = vpack.c.b16 %v4374, %v4373
        %v4388 = vpack.c.b16 %v4376, %v4375
        %v4389 = vpack.c.b16 %v4378, %v4377
        %v4390 = vpack.c.b16 %v4380, %v4379
        %v4391 = vpack.c.b16 %v4382, %v4381
        %v4402 = vsel %vm4003, %v4327, 0
        %4404 = vmatpush.bf16.msra.mxu0 %v4390
        %4405 = vmatpush.bf16.msra.mxu0 %v4389
        %4406 = vmatpush.bf16.msra.mxu0 %v4388
        %4407 = vmatpush.bf16.msra.mxu0 %v4387
        %4408 = vmatpush.bf16.msra.mxu0 %v4386
        %4409 = vmatpush.bf16.msra.mxu0 %v4385
        %4410 = vmatpush.bf16.msra.mxu0 %v4384
        %4411 = vmatpush.bf16.msra.mxu0 %v4383
        %4412 = vmatmul.bf16.gmra.mxu0 %v4326
        %v4413 = vpop.f32.mrf.mxu0
        %v4414 = vadd.f32 0.0, %v4413
        %v4415 = vpop.f32.mrf.mxu0
        %4416 = vdwg.mxu0
        %4417 = vmatpush.bf16.msra.mxu0 0
        %4418 = vmatpush.bf16.msra.mxu0 0
        %4419 = vmatpush.bf16.msra.mxu0 0
        %4420 = vmatpush.bf16.msra.mxu0 0
        %4421 = vmatpush.bf16.msra.mxu0 0
        %4422 = vmatpush.bf16.msra.mxu0 0
        %4423 = vmatpush.bf16.msra.mxu0 0
        %4424 = vmatpush.bf16.msra.mxu0 %v4391
        %4425 = vmatmul.bf16.gmra.mxu0 %v4402
        %v4426 = vpop.f32.mrf.mxu0
        %v4427 = vadd.f32 %v4414, %v4426
        %v4428 = vpop.f32.mrf.mxu0
        %4429 = vdwg.mxu0
        %v4430 = vadd.f32 %v4325, %v4427
        %v4431 = vld [vmem:[%s6] sm:$0x1]
        %v4433 = vperm.slane %v4431, 0
        %v4435 = vadd.f32 %v4430, %v4433
        %v4436 = vmax.f32 %v4435, 0.0
        %v4437 = vpack.c.bf16 %v4436, %v4436
        %v4438 = vld [vmem:[%s7] sm:$0xf]
        %v4439 = vld [vmem:[%s7 + $0x4] sm:$0xf]
        %v4440 = vld [vmem:[%s7 + $0x8] sm:$0xf]
        %v4441 = vld [vmem:[%s7 + $0xc] sm:$0xf]
        %v4442 = vld [vmem:[%s7 + $0x10] sm:$0xf]
        %v4443 = vld [vmem:[%s7 + $0x14] sm:$0xf]
        %v4444 = vld [vmem:[%s7 + $0x18] sm:$0xf]
        %v4445 = vld [vmem:[%s7 + $0x1c] sm:$0xf]
        %v4446 = vld [vmem:[%s7 + $0x20] sm:$0xf]
        %v4447 = vld [vmem:[%s7 + $0x24] sm:$0xf]
        %v4448 = vld [vmem:[%s7 + $0x28] sm:$0xf]
        %v4449 = vld [vmem:[%s7 + $0x2c] sm:$0xf]
        %v4450 = vld [vmem:[%s7 + $0x30] sm:$0xf]
        %v4451 = vld [vmem:[%s7 + $0x34] sm:$0xf]
        %v4452 = vld [vmem:[%s7 + $0x38] sm:$0xf]
        %v4453 = vld [vmem:[%s7 + $0x3c] sm:$0xf]
        %v4454 = vld [vmem:[%s8] sm:$0x1]
        %v4456 = vperm.slane %v4454, 0
        %v4474 = vunpack.c.l.b16 %v4438
        %v4475 = vunpack.c.l.b16 %v4439
        %v4476 = vunpack.c.l.b16 %v4440
        %v4477 = vunpack.c.l.b16 %v4441
        %v4478 = vunpack.c.l.b16 %v4442
        %v4479 = vunpack.c.l.b16 %v4443
        %v4480 = vunpack.c.l.b16 %v4444
        %v4481 = vunpack.c.l.b16 %v4445
        %v4482 = vunpack.c.l.b16 %v4446
        %v4483 = vunpack.c.l.b16 %v4447
        %v4484 = vunpack.c.l.b16 %v4448
        %v4485 = vunpack.c.l.b16 %v4449
        %v4486 = vunpack.c.l.b16 %v4450
        %v4487 = vunpack.c.l.b16 %v4451
        %v4488 = vunpack.c.l.b16 %v4452
        %v4489 = vunpack.c.l.b16 %v4453
        %v4490 = vpack.c.b16 %v4475, %v4474
        %v4491 = vpack.c.b16 %v4477, %v4476
        %v4492 = vpack.c.b16 %v4479, %v4478
        %v4493 = vpack.c.b16 %v4481, %v4480
        %v4494 = vpack.c.b16 %v4483, %v4482
        %v4495 = vpack.c.b16 %v4485, %v4484
        %v4496 = vpack.c.b16 %v4487, %v4486
        %v4497 = vpack.c.b16 %v4489, %v4488
        %4506 = vmatpush.bf16.msra.mxu0 %v4497
        %4507 = vmatpush.bf16.msra.mxu0 %v4496
        %4508 = vmatpush.bf16.msra.mxu0 %v4495
        %4509 = vmatpush.bf16.msra.mxu0 %v4494
        %4510 = vmatpush.bf16.msra.mxu0 %v4493
        %4511 = vmatpush.bf16.msra.mxu0 %v4492
        %4512 = vmatpush.bf16.msra.mxu0 %v4491
        %4513 = vmatpush.bf16.msra.mxu0 %v4490
        %4514 = vmatmul.bf16.gmra.mxu0 %v4437
        %v4515 = vpop.f32.mrf.mxu0
        %v4516 = vadd.f32 %v4456, %v4515
        %v4517 = vpop.f32.mrf.mxu0
        %4518 = vdwg.mxu0
        %v4519 = vmax.f32 %v4516, 0.0
        %v4520 = vpack.c.bf16 %v4519, %v4519
        %v4521 = vld [vmem:[%s9] sm:$0xf]
        %v4522 = vld [vmem:[%s9 + $0x4] sm:$0xf]
        %v4523 = vld [vmem:[%s9 + $0x8] sm:$0xf]
        %v4524 = vld [vmem:[%s9 + $0xc] sm:$0xf]
        %v4525 = vld [vmem:[%s9 + $0x10] sm:$0xf]
        %v4526 = vld [vmem:[%s9 + $0x14] sm:$0xf]
        %v4527 = vld [vmem:[%s9 + $0x18] sm:$0xf]
        %v4528 = vld [vmem:[%s9 + $0x1c] sm:$0xf]
        %v4529 = vld [vmem:[%s9 + $0x20] sm:$0xf]
        %v4530 = vld [vmem:[%s9 + $0x24] sm:$0xf]
        %v4531 = vld [vmem:[%s9 + $0x28] sm:$0xf]
        %v4532 = vld [vmem:[%s9 + $0x2c] sm:$0xf]
        %v4533 = vld [vmem:[%s9 + $0x30] sm:$0xf]
        %v4534 = vld [vmem:[%s9 + $0x34] sm:$0xf]
        %v4535 = vld [vmem:[%s9 + $0x38] sm:$0xf]
        %v4536 = vld [vmem:[%s9 + $0x3c] sm:$0xf]
        %v4537 = vld [vmem:[%s10] sm:$0x1]
        %v4539 = vperm.slane %v4537, 0
        %v4557 = vunpack.c.l.b16 %v4521
        %v4558 = vunpack.c.l.b16 %v4522
        %v4559 = vunpack.c.l.b16 %v4523
        %v4560 = vunpack.c.l.b16 %v4524
        %v4561 = vunpack.c.l.b16 %v4525
        %v4562 = vunpack.c.l.b16 %v4526
        %v4563 = vunpack.c.l.b16 %v4527
        %v4564 = vunpack.c.l.b16 %v4528
        %v4565 = vunpack.c.l.b16 %v4529
        %v4566 = vunpack.c.l.b16 %v4530
        %v4567 = vunpack.c.l.b16 %v4531
        %v4568 = vunpack.c.l.b16 %v4532
        %v4569 = vunpack.c.l.b16 %v4533
        %v4570 = vunpack.c.l.b16 %v4534
        %v4571 = vunpack.c.l.b16 %v4535
        %v4572 = vunpack.c.l.b16 %v4536
        %v4573 = vpack.c.b16 %v4558, %v4557
        %v4574 = vpack.c.b16 %v4560, %v4559
        %v4575 = vpack.c.b16 %v4562, %v4561
        %v4576 = vpack.c.b16 %v4564, %v4563
        %v4577 = vpack.c.b16 %v4566, %v4565
        %v4578 = vpack.c.b16 %v4568, %v4567
        %v4579 = vpack.c.b16 %v4570, %v4569
        %v4580 = vpack.c.b16 %v4572, %v4571
        %4589 = vmatpush.bf16.msra.mxu0 %v4580
        %4590 = vmatpush.bf16.msra.mxu0 %v4579
        %4591 = vmatpush.bf16.msra.mxu0 %v4578
        %4592 = vmatpush.bf16.msra.mxu0 %v4577
        %4593 = vmatpush.bf16.msra.mxu0 %v4576
        %4594 = vmatpush.bf16.msra.mxu0 %v4575
        %4595 = vmatpush.bf16.msra.mxu0 %v4574
        %4596 = vmatpush.bf16.msra.mxu0 %v4573
        %4597 = vmatmul.bf16.gmra.mxu0 %v4520
        %v4598 = vpop.f32.mrf.mxu0
        %v4599 = vadd.f32 %v4539, %v4598
        %v4600 = vpop.f32.mrf.mxu0
        %4601 = vdwg.mxu0
        %4602 = vst [vmem:[%s543] sm:$0xff] %v4599
        %s4603 = sand.u32 %s269, 1
        %s4604 = scalar_lea.sflag [#allocation4], %s4603
        %s4605 = sand.u32 %s269, 1
        %s4606 = smul.addr %s4605, 8
        %s4607 = scalar_lea.vmem [#allocation3], %s4606
        // Predicated region
        $region103: #{cifarnet_forward.1} parent=97 // pred_check
          %p4608 = pneg %p279
        $region104: #{cifarnet_forward.1} parent=97 // pred_check_branch
          %4610 = sbr.rel (%p4608) target = $region106
        $region105: #{cifarnet_forward.1} parent=97 // pred_region
          %4612 = vsyncadd %s4604, 0
          %s4613 = smul.addr %s25, 8
          %s4614 = scalar_lea.hbm %s11, %s4613
          %s4616 = sshll.u32 %s4607, 4
          %s4617 = int_to_ptr.vmem [resolvable:$true] %s4616
          %s4618 = sshll.u32 %s4614, 4
          %s4619 = int_to_ptr.hbm [resolvable:$true] %s4618
          %4621 = dma.vmem_to_hbm [thread:$0]  %s4617, 128, %s4619, %s4604
        $region106: #{cifarnet_forward.1} parent=97 // pred_fallthru
          _
      $region98: #{cifarnet_forward.1} parent=5 // pred_fallthru
        _
      %p4622 = scmp.le.s32.totalorder 2, %s20
      // Predicated region
      $region107: #{cifarnet_forward.1} parent=5 // pred_check
        %p4623 = pneg %p4622
      $region108: #{cifarnet_forward.1} parent=5 // pred_check_branch
        %4625 = sbr.rel (%p4623) target = $region110
      $region109: #{cifarnet_forward.1} parent=5 // pred_region
        %s4626 = ssub.s32 %s20, 2
        // Predicated region
        $region111: #{cifarnet_forward.1} parent=109 // pred_check
          %p4627 = pneg %p285
        $region112: #{cifarnet_forward.1} parent=109 // pred_check_branch
          %4629 = sbr.rel (%p4627) target = $region114
        $region113: #{cifarnet_forward.1} parent=109 // pred_region
          %s4630 = sand.u32 %s270, 1
          %s4631 = scalar_lea.sflag [#allocation4], %s4630
          %s4632 = sand.u32 %s270, 1
          %s4633 = smul.addr %s4632, 8
          %s4634 = scalar_lea.vmem [#allocation3], %s4633
          %4636 = dma.done %s4631, 128
        $region114: #{cifarnet_forward.1} parent=109 // pred_fallthru
          _
      $region110: #{cifarnet_forward.1} parent=5 // pred_fallthru
        _
    $region6: #{cifarnet_forward.1} parent=1 // loop_footer
      %s24 = sadd.s32 1, %s20
    $region7: #{cifarnet_forward.1} parent=1 // loop_footer_branch
      %19 = sbr.rel target = $region3
    $region8: #{cifarnet_forward.1} parent=1 // loop_exit
      _
    %4637 = vsyncpa [#allocation4], 1
    %s4638 = scalar_lea.sflag [#allocation4], 1
    %4639 = vsyncpa %s4638, 1

</llo_original>
